<compile_context>
chip_gen: v7x
topology: tpu7x:2x2x1
jax: 0.10.0
libtpu: 0.0.40
codegen_flags: <defaults>
</compile_context>

<pallas_src>
import math
import jax
import jax.numpy as jnp
from jax.experimental import pallas as pl
from jax.experimental.pallas import tpu as pltpu


def _make_fused_lstm_kernel(T, Bp, H, num_layers):
    """Build the fused multi-layer LSTM kernel body (closure over sizes)."""

    def kernel(*refs):
        x_ref = refs[0]
        w_refs = refs[1:1 + 3 * num_layers]
        y_ref, hn_ref, cn_ref = refs[1 + 3 * num_layers:4 + 3 * num_layers]
        gx_sc, seq_sc = refs[4 + 3 * num_layers:]

        def run_layer(layer, inp, wih_ref, whh_ref, b_ref, out_seq_ref):
            # Input projection for ALL timesteps at once (MXU-friendly big
            # matmul), hoisted out of the sequential recurrence.
            gx_sc[...] = (jnp.dot(inp, wih_ref[...],
                                  preferred_element_type=jnp.float32)
                          + b_ref[...])
            whh = whh_ref[...]                      # (H, 4H), loop invariant

            def step(t, carry):
                h, c = carry
                row = t * Bp
                gates = gx_sc[pl.ds(row, Bp), :] + jnp.dot(
                    h, whh, preferred_element_type=jnp.float32)
                # PyTorch gate order: input, forget, cell(g), output
                i = jax.nn.sigmoid(gates[:, 0 * H:1 * H])
                f = jax.nn.sigmoid(gates[:, 1 * H:2 * H])
                g = jnp.tanh(gates[:, 2 * H:3 * H])
                o = jax.nn.sigmoid(gates[:, 3 * H:4 * H])
                c = f * c + i * g
                h = o * jnp.tanh(c)
                out_seq_ref[pl.ds(row, Bp), :] = h
                return (h, c)

            h0 = jnp.zeros((Bp, H), jnp.float32)
            c0 = jnp.zeros((Bp, H), jnp.float32)
            h_T, c_T = jax.lax.fori_loop(0, T, step, (h0, c0), unroll=True)
            # Final states written exactly once per layer.
            hn_ref[layer] = h_T
            cn_ref[layer] = c_T

        inp = x_ref[...]                            # (T*Bp, D) for layer 0
        for layer in range(num_layers):
            wih_ref, whh_ref, b_ref = w_refs[3 * layer:3 * layer + 3]
            last = layer == num_layers - 1
            out_seq_ref = y_ref if last else seq_sc
            run_layer(layer, inp, wih_ref, whh_ref, b_ref, out_seq_ref)
            if not last:
                inp = seq_sc[...]                   # (T*Bp, H) for next layer

    return kernel


def _lstm3_fused(x2d, params, *, T, Bp, H):
    """x2d: (T*Bp, D) padded, time-major-flattened input."""
    L = len(params)
    G = 4 * H
    TB, D = x2d.shape

    args = [x2d]
    in_specs = [pl.BlockSpec((TB, D), lambda i: (0, 0))]
    for p in params:
        d_in = p["w_ih_t"].shape[0]
        args += [p["w_ih_t"], p["w_hh_t"], p["bias"]]
        in_specs += [
            pl.BlockSpec((d_in, G), lambda i: (0, 0)),
            pl.BlockSpec((H, G), lambda i: (0, 0)),
            pl.BlockSpec((1, G), lambda i: (0, 0)),
        ]

    out_shape = (
        jax.ShapeDtypeStruct((TB, H), jnp.float32),      # hidden sequence
        jax.ShapeDtypeStruct((L, Bp, H), jnp.float32),   # h_n
        jax.ShapeDtypeStruct((L, Bp, H), jnp.float32),   # c_n
    )
    out_specs = (
        pl.BlockSpec((TB, H), lambda i: (0, 0)),
        pl.BlockSpec((L, Bp, H), lambda i: (0, 0, 0)),
        pl.BlockSpec((L, Bp, H), lambda i: (0, 0, 0)),
    )

    kernel = _make_fused_lstm_kernel(T, Bp, H, L)

    return pl.pallas_call(
        kernel,
        out_shape=out_shape,
        grid=(1,),
        in_specs=in_specs,
        out_specs=out_specs,
        scratch_shapes=[
            pltpu.VMEM((TB, G), jnp.float32),   # precomputed gate projections
            pltpu.VMEM((TB, H), jnp.float32),   # inter-layer hidden sequence
        ],
        compiler_params=pltpu.CompilerParams(
            dimension_semantics=("arbitrary",)),
    )(*args)


def init_network_params(key, input_size, hidden_size, num_layers=3):
    """Deterministic init matching nn.LSTM: U(-1/sqrt(H), 1/sqrt(H))."""
    k = 1.0 / math.sqrt(hidden_size)
    params = []
    for layer in range(num_layers):
        d_in = input_size if layer == 0 else hidden_size
        key, k1, k2, k3, k4 = jax.random.split(key, 5)
        w_ih = jax.random.uniform(k1, (4 * hidden_size, d_in),
                                  jnp.float32, -k, k)
        w_hh = jax.random.uniform(k2, (4 * hidden_size, hidden_size),
                                  jnp.float32, -k, k)
        b_ih = jax.random.uniform(k3, (4 * hidden_size,), jnp.float32, -k, k)
        b_hh = jax.random.uniform(k4, (4 * hidden_size,), jnp.float32, -k, k)
        params.append({
            "w_ih_t": w_ih.T,                       # (D_in, 4H)
            "w_hh_t": w_hh.T,                       # (H, 4H)
            "bias": (b_ih + b_hh)[None, :],         # (1, 4H)
        })
    return params


def network_forward(x, params):
    """Equivalent of Network.forward: returns (output, (h_n, c_n)).

    x: (T, B, input_size)  ->  output: (T, B, H),
    h_n, c_n: (num_layers, B, H).
    """
    T, B, _ = x.shape
    H = params[0]["w_hh_t"].shape[0]

    # Pad batch up to one sublane tile (multiple of 8) — padded rows are
    # independent garbage and sliced off below.
    Bp = ((B + 7) // 8) * 8
    if Bp != B:
        x = jnp.pad(x, ((0, 0), (0, Bp - B), (0, 0)))
    x2d = x.reshape(T * Bp, -1)

    y2d, h_n, c_n = _lstm3_fused(x2d, params, T=T, Bp=Bp, H=H)

    y = y2d.reshape(T, Bp, H)[:, :B, :]
    return y, (h_n[:, :B, :], c_n[:, :B, :])


def _reference_forward(x, params):
    """Pure-JAX reference (lax.scan) for correctness checking."""
    def layer(x_seq, p):
        H = p["w_hh_t"].shape[0]

        def step(carry, x_t):
            h, c = carry
            gates = x_t @ p["w_ih_t"] + h @ p["w_hh_t"] + p["bias"]
            i = jax.nn.sigmoid(gates[:, 0 * H:1 * H])
            f = jax.nn.sigmoid(gates[:, 1 * H:2 * H])
            g = jnp.tanh(gates[:, 2 * H:3 * H])
            o = jax.nn.sigmoid(gates[:, 3 * H:4 * H])
            c = f * c + i * g
            h = o * jnp.tanh(c)
            return (h, c), h

        B = x_seq.shape[1]
        init = (jnp.zeros((B, H), jnp.float32), jnp.zeros((B, H), jnp.float32))
        (h_n, c_n), ys = jax.lax.scan(step, init, x_seq)
        return ys, h_n, c_n

    hs, cs = [], []
    layer_in = x
    for p in params:
        layer_in, h_n, c_n = layer(layer_in, p)
        hs.append(h_n)
        cs.append(c_n)
    return layer_in, (jnp.stack(hs, 0), jnp.stack(cs, 0))


if __name__ == "__main__":
    seq_len, batch, input_size, hidden_size = 8, 4, 16, 32

    key = jax.random.PRNGKey(0)
    key, xkey = jax.random.split(key)
    x = jax.random.normal(xkey, (seq_len, batch, input_size), jnp.float32)
    params = init_network_params(key, input_size, hidden_size, num_layers=3)

    out, (h_n, c_n) = network_forward(x, params)
    jax.block_until_ready((out, h_n, c_n))

    # sanity check against a pure-JAX reference
    ref_out, (ref_h, ref_c) = _reference_forward(x, params)
    assert out.shape == (seq_len, batch, hidden_size)
    assert h_n.shape == (3, batch, hidden_size)
    assert c_n.shape == (3, batch, hidden_size)
    assert jnp.allclose(out, ref_out, atol=1e-4, rtol=1e-4)
    assert jnp.allclose(h_n, ref_h, atol=1e-4, rtol=1e-4)
    assert jnp.allclose(c_n, ref_c, atol=1e-4, rtol=1e-4)

    print("KERNEL_OK")
</pallas_src>

<mosaic_0001>
module attributes {stable_mosaic.version = 11 : i64} {
  func.func @kernel(%arg0: i32, %arg1: memref<64x16xf32, #tpu.memory_space<vmem>>, %arg2: memref<16x128xf32, #tpu.memory_space<vmem>>, %arg3: memref<32x128xf32, #tpu.memory_space<vmem>>, %arg4: memref<1x128xf32, #tpu.memory_space<vmem>>, %arg5: memref<32x128xf32, #tpu.memory_space<vmem>>, %arg6: memref<32x128xf32, #tpu.memory_space<vmem>>, %arg7: memref<1x128xf32, #tpu.memory_space<vmem>>, %arg8: memref<32x128xf32, #tpu.memory_space<vmem>>, %arg9: memref<32x128xf32, #tpu.memory_space<vmem>>, %arg10: memref<1x128xf32, #tpu.memory_space<vmem>>, %arg11: memref<64x32xf32, #tpu.memory_space<vmem>>, %arg12: memref<3x8x32xf32, #tpu.memory_space<vmem>>, %arg13: memref<3x8x32xf32, #tpu.memory_space<vmem>>, %arg14: memref<64x128xf32, #tpu.memory_space<vmem>>, %arg15: memref<64x32xf32, #tpu.memory_space<vmem>>) attributes {dimension_semantics = [#tpu.dimension_semantics<arbitrary>], iteration_bounds = array<i64: 1>, scalar_prefetch = 0 : i64, scratch_operands = 2 : i64, tpu.core_type = #tpu.core_type<tc>, window_params = [{pipeline_mode = #tpu.pipeline_mode<synchronous>, transform_indices = @transform_0, window_bounds = array<i64: 64, 16>}, {pipeline_mode = #tpu.pipeline_mode<synchronous>, transform_indices = @transform_1, window_bounds = array<i64: 16, 128>}, {pipeline_mode = #tpu.pipeline_mode<synchronous>, transform_indices = @transform_2, window_bounds = array<i64: 32, 128>}, {pipeline_mode = #tpu.pipeline_mode<synchronous>, transform_indices = @transform_3, window_bounds = array<i64: 1, 128>}, {pipeline_mode = #tpu.pipeline_mode<synchronous>, transform_indices = @transform_4, window_bounds = array<i64: 32, 128>}, {pipeline_mode = #tpu.pipeline_mode<synchronous>, transform_indices = @transform_5, window_bounds = array<i64: 32, 128>}, {pipeline_mode = #tpu.pipeline_mode<synchronous>, transform_indices = @transform_6, window_bounds = array<i64: 1, 128>}, {pipeline_mode = #tpu.pipeline_mode<synchronous>, transform_indices = @transform_7, window_bounds = array<i64: 32, 128>}, {pipeline_mode = #tpu.pipeline_mode<synchronous>, transform_indices = @transform_8, window_bounds = array<i64: 32, 128>}, {pipeline_mode = #tpu.pipeline_mode<synchronous>, transform_indices = @transform_9, window_bounds = array<i64: 1, 128>}, {pipeline_mode = #tpu.pipeline_mode<synchronous>, transform_indices = @transform_10, window_bounds = array<i64: 64, 32>}, {pipeline_mode = #tpu.pipeline_mode<synchronous>, transform_indices = @transform_11, window_bounds = array<i64: 3, 8, 32>}, {pipeline_mode = #tpu.pipeline_mode<synchronous>, transform_indices = @transform_12, window_bounds = array<i64: 3, 8, 32>}]} {
    %c0 = arith.constant 0 : index
    %c0_0 = arith.constant 0 : index
    %0 = vector.load %arg1[%c0, %c0_0] : memref<64x16xf32, #tpu.memory_space<vmem>>, vector<64x16xf32>
    %c0_1 = arith.constant 0 : index
    %c0_2 = arith.constant 0 : index
    %1 = vector.load %arg2[%c0_1, %c0_2] : memref<16x128xf32, #tpu.memory_space<vmem>>, vector<16x128xf32>
    %cst = arith.constant dense<0.000000e+00> : vector<64x128xf32>
    %2 = tpu.matmul %0, %1, %cst {dimension_numbers = #tpu.dot_dimension_numbers<[1], [0], [0], [1], [0, 0, 1, 1], [], []>} : vector<64x16xf32>, vector<16x128xf32>, vector<64x128xf32> -> vector<64x128xf32>
    %c0_3 = arith.constant 0 : index
    %c0_4 = arith.constant 0 : index
    %3 = vector.load %arg4[%c0_3, %c0_4] : memref<1x128xf32, #tpu.memory_space<vmem>>, vector<1x128xf32>
    %4 = vector.broadcast %3 : vector<1x128xf32> to vector<64x128xf32>
    %5 = arith.addf %2, %4 : vector<64x128xf32>
    %c0_5 = arith.constant 0 : index
    %c0_6 = arith.constant 0 : index
    %6 = vector.load %arg14[%c0_5, %c0_6] : memref<64x128xf32, #tpu.memory_space<vmem>>, vector<64x128xf32>
    tpu.vector_store %arg14[%c0_5, %c0_6], %5 {strides = array<i32>} : memref<64x128xf32, #tpu.memory_space<vmem>>, vector<64x128xf32>,
    %c0_7 = arith.constant 0 : index
    %c0_8 = arith.constant 0 : index
    %7 = vector.load %arg3[%c0_7, %c0_8] : memref<32x128xf32, #tpu.memory_space<vmem>>, vector<32x128xf32>
    %cst_9 = arith.constant 0.000000e+00 : f32
    %8 = vector.broadcast %cst_9 : f32 to vector<8x32xf32>
    %cst_10 = arith.constant 0.000000e+00 : f32
    %9 = vector.broadcast %cst_10 : f32 to vector<8x32xf32>
    %c0_i32 = arith.constant 0 : i32
    %c8_i32 = arith.constant 8 : i32
    %10 = arith.muli %c0_i32, %c8_i32 : i32
    %11 = arith.index_cast %10 : i32 to index
    %c0_11 = arith.constant 0 : index
    %12 = vector.load %arg14[%11, %c0_11] : memref<64x128xf32, #tpu.memory_space<vmem>>, vector<8x128xf32>
    %cst_12 = arith.constant dense<0.000000e+00> : vector<8x128xf32>
    %13 = tpu.matmul %8, %7, %cst_12 {dimension_numbers = #tpu.dot_dimension_numbers<[1], [0], [0], [1], [0, 0, 1, 1], [], []>} : vector<8x32xf32>, vector<32x128xf32>, vector<8x128xf32> -> vector<8x128xf32>
    %14 = arith.addf %12, %13 : vector<8x128xf32>
    %15 = vector.extract_strided_slice %14 {offsets = [0, 0], sizes = [8, 32], strides = [1, 1]} : vector<8x128xf32> to vector<8x32xf32>
    %16 = arith.negf %15 : vector<8x32xf32>
    %17 = math.exp %16 : vector<8x32xf32>
    %cst_13 = arith.constant 1.000000e+00 : f32
    %18 = vector.broadcast %cst_13 : f32 to vector<8x32xf32>
    %19 = arith.addf %18, %17 : vector<8x32xf32>
    %20 = arith.divf %18, %19 : vector<8x32xf32>
    %21 = vector.extract_strided_slice %14 {offsets = [0, 32], sizes = [8, 32], strides = [1, 1]} : vector<8x128xf32> to vector<8x32xf32>
    %22 = arith.negf %21 : vector<8x32xf32>
    %23 = math.exp %22 : vector<8x32xf32>
    %cst_14 = arith.constant 1.000000e+00 : f32
    %24 = vector.broadcast %cst_14 : f32 to vector<8x32xf32>
    %25 = arith.addf %24, %23 : vector<8x32xf32>
    %26 = arith.divf %24, %25 : vector<8x32xf32>
    %27 = vector.extract_strided_slice %14 {offsets = [0, 64], sizes = [8, 32], strides = [1, 1]} : vector<8x128xf32> to vector<8x32xf32>
    %28 = math.tanh %27 : vector<8x32xf32>
    %29 = vector.extract_strided_slice %14 {offsets = [0, 96], sizes = [8, 32], strides = [1, 1]} : vector<8x128xf32> to vector<8x32xf32>
    %30 = arith.negf %29 : vector<8x32xf32>
    %31 = math.exp %30 : vector<8x32xf32>
    %cst_15 = arith.constant 1.000000e+00 : f32
    %32 = vector.broadcast %cst_15 : f32 to vector<8x32xf32>
    %33 = arith.addf %32, %31 : vector<8x32xf32>
    %34 = arith.divf %32, %33 : vector<8x32xf32>
    %35 = arith.mulf %26, %9 : vector<8x32xf32>
    %36 = arith.mulf %20, %28 : vector<8x32xf32>
    %37 = arith.addf %35, %36 : vector<8x32xf32>
    %38 = math.tanh %37 : vector<8x32xf32>
    %39 = arith.mulf %34, %38 : vector<8x32xf32>
    %40 = arith.index_cast %10 : i32 to index
    %c0_16 = arith.constant 0 : index
    %41 = vector.load %arg15[%40, %c0_16] : memref<64x32xf32, #tpu.memory_space<vmem>>, vector<8x32xf32>
    tpu.vector_store %arg15[%40, %c0_16], %39 {strides = array<i32>} : memref<64x32xf32, #tpu.memory_space<vmem>>, vector<8x32xf32>,
    %c1_i32 = arith.constant 1 : i32
    %c8_i32_17 = arith.constant 8 : i32
    %42 = arith.muli %c1_i32, %c8_i32_17 : i32
    %43 = arith.index_cast %42 : i32 to index
    %c0_18 = arith.constant 0 : index
    %44 = vector.load %arg14[%43, %c0_18] : memref<64x128xf32, #tpu.memory_space<vmem>>, vector<8x128xf32>
    %cst_19 = arith.constant dense<0.000000e+00> : vector<8x128xf32>
    %45 = tpu.matmul %39, %7, %cst_19 {dimension_numbers = #tpu.dot_dimension_numbers<[1], [0], [0], [1], [0, 0, 1, 1], [], []>} : vector<8x32xf32>, vector<32x128xf32>, vector<8x128xf32> -> vector<8x128xf32>
    %46 = arith.addf %44, %45 : vector<8x128xf32>
    %47 = vector.extract_strided_slice %46 {offsets = [0, 0], sizes = [8, 32], strides = [1, 1]} : vector<8x128xf32> to vector<8x32xf32>
    %48 = arith.negf %47 : vector<8x32xf32>
    %49 = math.exp %48 : vector<8x32xf32>
    %cst_20 = arith.constant 1.000000e+00 : f32
    %50 = vector.broadcast %cst_20 : f32 to vector<8x32xf32>
    %51 = arith.addf %50, %49 : vector<8x32xf32>
    %52 = arith.divf %50, %51 : vector<8x32xf32>
    %53 = vector.extract_strided_slice %46 {offsets = [0, 32], sizes = [8, 32], strides = [1, 1]} : vector<8x128xf32> to vector<8x32xf32>
    %54 = arith.negf %53 : vector<8x32xf32>
    %55 = math.exp %54 : vector<8x32xf32>
    %cst_21 = arith.constant 1.000000e+00 : f32
    %56 = vector.broadcast %cst_21 : f32 to vector<8x32xf32>
    %57 = arith.addf %56, %55 : vector<8x32xf32>
    %58 = arith.divf %56, %57 : vector<8x32xf32>
    %59 = vector.extract_strided_slice %46 {offsets = [0, 64], sizes = [8, 32], strides = [1, 1]} : vector<8x128xf32> to vector<8x32xf32>
    %60 = math.tanh %59 : vector<8x32xf32>
    %61 = vector.extract_strided_slice %46 {offsets = [0, 96], sizes = [8, 32], strides = [1, 1]} : vector<8x128xf32> to vector<8x32xf32>
    %62 = arith.negf %61 : vector<8x32xf32>
    %63 = math.exp %62 : vector<8x32xf32>
    %cst_22 = arith.constant 1.000000e+00 : f32
    %64 = vector.broadcast %cst_22 : f32 to vector<8x32xf32>
    %65 = arith.addf %64, %63 : vector<8x32xf32>
    %66 = arith.divf %64, %65 : vector<8x32xf32>
    %67 = arith.mulf %58, %37 : vector<8x32xf32>
    %68 = arith.mulf %52, %60 : vector<8x32xf32>
    %69 = arith.addf %67, %68 : vector<8x32xf32>
    %70 = math.tanh %69 : vector<8x32xf32>
    %71 = arith.mulf %66, %70 : vector<8x32xf32>
    %72 = arith.index_cast %42 : i32 to index
    %c0_23 = arith.constant 0 : index
    %73 = vector.load %arg15[%72, %c0_23] : memref<64x32xf32, #tpu.memory_space<vmem>>, vector<8x32xf32>
    tpu.vector_store %arg15[%72, %c0_23], %71 {strides = array<i32>} : memref<64x32xf32, #tpu.memory_space<vmem>>, vector<8x32xf32>,
    %c2_i32 = arith.constant 2 : i32
    %c8_i32_24 = arith.constant 8 : i32
    %74 = arith.muli %c2_i32, %c8_i32_24 : i32
    %75 = arith.index_cast %74 : i32 to index
    %c0_25 = arith.constant 0 : index
    %76 = vector.load %arg14[%75, %c0_25] : memref<64x128xf32, #tpu.memory_space<vmem>>, vector<8x128xf32>
    %cst_26 = arith.constant dense<0.000000e+00> : vector<8x128xf32>
    %77 = tpu.matmul %71, %7, %cst_26 {dimension_numbers = #tpu.dot_dimension_numbers<[1], [0], [0], [1], [0, 0, 1, 1], [], []>} : vector<8x32xf32>, vector<32x128xf32>, vector<8x128xf32> -> vector<8x128xf32>
    %78 = arith.addf %76, %77 : vector<8x128xf32>
    %79 = vector.extract_strided_slice %78 {offsets = [0, 0], sizes = [8, 32], strides = [1, 1]} : vector<8x128xf32> to vector<8x32xf32>
    %80 = arith.negf %79 : vector<8x32xf32>
    %81 = math.exp %80 : vector<8x32xf32>
    %cst_27 = arith.constant 1.000000e+00 : f32
    %82 = vector.broadcast %cst_27 : f32 to vector<8x32xf32>
    %83 = arith.addf %82, %81 : vector<8x32xf32>
    %84 = arith.divf %82, %83 : vector<8x32xf32>
    %85 = vector.extract_strided_slice %78 {offsets = [0, 32], sizes = [8, 32], strides = [1, 1]} : vector<8x128xf32> to vector<8x32xf32>
    %86 = arith.negf %85 : vector<8x32xf32>
    %87 = math.exp %86 : vector<8x32xf32>
    %cst_28 = arith.constant 1.000000e+00 : f32
    %88 = vector.broadcast %cst_28 : f32 to vector<8x32xf32>
    %89 = arith.addf %88, %87 : vector<8x32xf32>
    %90 = arith.divf %88, %89 : vector<8x32xf32>
    %91 = vector.extract_strided_slice %78 {offsets = [0, 64], sizes = [8, 32], strides = [1, 1]} : vector<8x128xf32> to vector<8x32xf32>
    %92 = math.tanh %91 : vector<8x32xf32>
    %93 = vector.extract_strided_slice %78 {offsets = [0, 96], sizes = [8, 32], strides = [1, 1]} : vector<8x128xf32> to vector<8x32xf32>
    %94 = arith.negf %93 : vector<8x32xf32>
    %95 = math.exp %94 : vector<8x32xf32>
    %cst_29 = arith.constant 1.000000e+00 : f32
    %96 = vector.broadcast %cst_29 : f32 to vector<8x32xf32>
    %97 = arith.addf %96, %95 : vector<8x32xf32>
    %98 = arith.divf %96, %97 : vector<8x32xf32>
    %99 = arith.mulf %90, %69 : vector<8x32xf32>
    %100 = arith.mulf %84, %92 : vector<8x32xf32>
    %101 = arith.addf %99, %100 : vector<8x32xf32>
    %102 = math.tanh %101 : vector<8x32xf32>
    %103 = arith.mulf %98, %102 : vector<8x32xf32>
    %104 = arith.index_cast %74 : i32 to index
    %c0_30 = arith.constant 0 : index
    %105 = vector.load %arg15[%104, %c0_30] : memref<64x32xf32, #tpu.memory_space<vmem>>, vector<8x32xf32>
    tpu.vector_store %arg15[%104, %c0_30], %103 {strides = array<i32>} : memref<64x32xf32, #tpu.memory_space<vmem>>, vector<8x32xf32>,
    %c3_i32 = arith.constant 3 : i32
    %c8_i32_31 = arith.constant 8 : i32
    %106 = arith.muli %c3_i32, %c8_i32_31 : i32
    %107 = arith.index_cast %106 : i32 to index
    %c0_32 = arith.constant 0 : index
    %108 = vector.load %arg14[%107, %c0_32] : memref<64x128xf32, #tpu.memory_space<vmem>>, vector<8x128xf32>
    %cst_33 = arith.constant dense<0.000000e+00> : vector<8x128xf32>
    %109 = tpu.matmul %103, %7, %cst_33 {dimension_numbers = #tpu.dot_dimension_numbers<[1], [0], [0], [1], [0, 0, 1, 1], [], []>} : vector<8x32xf32>, vector<32x128xf32>, vector<8x128xf32> -> vector<8x128xf32>
    %110 = arith.addf %108, %109 : vector<8x128xf32>
    %111 = vector.extract_strided_slice %110 {offsets = [0, 0], sizes = [8, 32], strides = [1, 1]} : vector<8x128xf32> to vector<8x32xf32>
    %112 = arith.negf %111 : vector<8x32xf32>
    %113 = math.exp %112 : vector<8x32xf32>
    %cst_34 = arith.constant 1.000000e+00 : f32
    %114 = vector.broadcast %cst_34 : f32 to vector<8x32xf32>
    %115 = arith.addf %114, %113 : vector<8x32xf32>
    %116 = arith.divf %114, %115 : vector<8x32xf32>
    %117 = vector.extract_strided_slice %110 {offsets = [0, 32], sizes = [8, 32], strides = [1, 1]} : vector<8x128xf32> to vector<8x32xf32>
    %118 = arith.negf %117 : vector<8x32xf32>
    %119 = math.exp %118 : vector<8x32xf32>
    %cst_35 = arith.constant 1.000000e+00 : f32
    %120 = vector.broadcast %cst_35 : f32 to vector<8x32xf32>
    %121 = arith.addf %120, %119 : vector<8x32xf32>
    %122 = arith.divf %120, %121 : vector<8x32xf32>
    %123 = vector.extract_strided_slice %110 {offsets = [0, 64], sizes = [8, 32], strides = [1, 1]} : vector<8x128xf32> to vector<8x32xf32>
    %124 = math.tanh %123 : vector<8x32xf32>
    %125 = vector.extract_strided_slice %110 {offsets = [0, 96], sizes = [8, 32], strides = [1, 1]} : vector<8x128xf32> to vector<8x32xf32>
    %126 = arith.negf %125 : vector<8x32xf32>
    %127 = math.exp %126 : vector<8x32xf32>
    %cst_36 = arith.constant 1.000000e+00 : f32
    %128 = vector.broadcast %cst_36 : f32 to vector<8x32xf32>
    %129 = arith.addf %128, %127 : vector<8x32xf32>
    %130 = arith.divf %128, %129 : vector<8x32xf32>
    %131 = arith.mulf %122, %101 : vector<8x32xf32>
    %132 = arith.mulf %116, %124 : vector<8x32xf32>
    %133 = arith.addf %131, %132 : vector<8x32xf32>
    %134 = math.tanh %133 : vector<8x32xf32>
    %135 = arith.mulf %130, %134 : vector<8x32xf32>
    %136 = arith.index_cast %106 : i32 to index
    %c0_37 = arith.constant 0 : index
    %137 = vector.load %arg15[%136, %c0_37] : memref<64x32xf32, #tpu.memory_space<vmem>>, vector<8x32xf32>
    tpu.vector_store %arg15[%136, %c0_37], %135 {strides = array<i32>} : memref<64x32xf32, #tpu.memory_space<vmem>>, vector<8x32xf32>,
    %c4_i32 = arith.constant 4 : i32
    %c8_i32_38 = arith.constant 8 : i32
    %138 = arith.muli %c4_i32, %c8_i32_38 : i32
    %139 = arith.index_cast %138 : i32 to index
    %c0_39 = arith.constant 0 : index
    %140 = vector.load %arg14[%139, %c0_39] : memref<64x128xf32, #tpu.memory_space<vmem>>, vector<8x128xf32>
    %cst_40 = arith.constant dense<0.000000e+00> : vector<8x128xf32>
    %141 = tpu.matmul %135, %7, %cst_40 {dimension_numbers = #tpu.dot_dimension_numbers<[1], [0], [0], [1], [0, 0, 1, 1], [], []>} : vector<8x32xf32>, vector<32x128xf32>, vector<8x128xf32> -> vector<8x128xf32>
    %142 = arith.addf %140, %141 : vector<8x128xf32>
    %143 = vector.extract_strided_slice %142 {offsets = [0, 0], sizes = [8, 32], strides = [1, 1]} : vector<8x128xf32> to vector<8x32xf32>
    %144 = arith.negf %143 : vector<8x32xf32>
    %145 = math.exp %144 : vector<8x32xf32>
    %cst_41 = arith.constant 1.000000e+00 : f32
    %146 = vector.broadcast %cst_41 : f32 to vector<8x32xf32>
    %147 = arith.addf %146, %145 : vector<8x32xf32>
    %148 = arith.divf %146, %147 : vector<8x32xf32>
    %149 = vector.extract_strided_slice %142 {offsets = [0, 32], sizes = [8, 32], strides = [1, 1]} : vector<8x128xf32> to vector<8x32xf32>
    %150 = arith.negf %149 : vector<8x32xf32>
    %151 = math.exp %150 : vector<8x32xf32>
    %cst_42 = arith.constant 1.000000e+00 : f32
    %152 = vector.broadcast %cst_42 : f32 to vector<8x32xf32>
    %153 = arith.addf %152, %151 : vector<8x32xf32>
    %154 = arith.divf %152, %153 : vector<8x32xf32>
    %155 = vector.extract_strided_slice %142 {offsets = [0, 64], sizes = [8, 32], strides = [1, 1]} : vector<8x128xf32> to vector<8x32xf32>
    %156 = math.tanh %155 : vector<8x32xf32>
    %157 = vector.extract_strided_slice %142 {offsets = [0, 96], sizes = [8, 32], strides = [1, 1]} : vector<8x128xf32> to vector<8x32xf32>
    %158 = arith.negf %157 : vector<8x32xf32>
    %159 = math.exp %158 : vector<8x32xf32>
    %cst_43 = arith.constant 1.000000e+00 : f32
    %160 = vector.broadcast %cst_43 : f32 to vector<8x32xf32>
    %161 = arith.addf %160, %159 : vector<8x32xf32>
    %162 = arith.divf %160, %161 : vector<8x32xf32>
    %163 = arith.mulf %154, %133 : vector<8x32xf32>
    %164 = arith.mulf %148, %156 : vector<8x32xf32>
    %165 = arith.addf %163, %164 : vector<8x32xf32>
    %166 = math.tanh %165 : vector<8x32xf32>
    %167 = arith.mulf %162, %166 : vector<8x32xf32>
    %168 = arith.index_cast %138 : i32 to index
    %c0_44 = arith.constant 0 : index
    %169 = vector.load %arg15[%168, %c0_44] : memref<64x32xf32, #tpu.memory_space<vmem>>, vector<8x32xf32>
    tpu.vector_store %arg15[%168, %c0_44], %167 {strides = array<i32>} : memref<64x32xf32, #tpu.memory_space<vmem>>, vector<8x32xf32>,
    %c5_i32 = arith.constant 5 : i32
    %c8_i32_45 = arith.constant 8 : i32
    %170 = arith.muli %c5_i32, %c8_i32_45 : i32
    %171 = arith.index_cast %170 : i32 to index
    %c0_46 = arith.constant 0 : index
    %172 = vector.load %arg14[%171, %c0_46] : memref<64x128xf32, #tpu.memory_space<vmem>>, vector<8x128xf32>
    %cst_47 = arith.constant dense<0.000000e+00> : vector<8x128xf32>
    %173 = tpu.matmul %167, %7, %cst_47 {dimension_numbers = #tpu.dot_dimension_numbers<[1], [0], [0], [1], [0, 0, 1, 1], [], []>} : vector<8x32xf32>, vector<32x128xf32>, vector<8x128xf32> -> vector<8x128xf32>
    %174 = arith.addf %172, %173 : vector<8x128xf32>
    %175 = vector.extract_strided_slice %174 {offsets = [0, 0], sizes = [8, 32], strides = [1, 1]} : vector<8x128xf32> to vector<8x32xf32>
    %176 = arith.negf %175 : vector<8x32xf32>
    %177 = math.exp %176 : vector<8x32xf32>
    %cst_48 = arith.constant 1.000000e+00 : f32
    %178 = vector.broadcast %cst_48 : f32 to vector<8x32xf32>
    %179 = arith.addf %178, %177 : vector<8x32xf32>
    %180 = arith.divf %178, %179 : vector<8x32xf32>
    %181 = vector.extract_strided_slice %174 {offsets = [0, 32], sizes = [8, 32], strides = [1, 1]} : vector<8x128xf32> to vector<8x32xf32>
    %182 = arith.negf %181 : vector<8x32xf32>
    %183 = math.exp %182 : vector<8x32xf32>
    %cst_49 = arith.constant 1.000000e+00 : f32
    %184 = vector.broadcast %cst_49 : f32 to vector<8x32xf32>
    %185 = arith.addf %184, %183 : vector<8x32xf32>
    %186 = arith.divf %184, %185 : vector<8x32xf32>
    %187 = vector.extract_strided_slice %174 {offsets = [0, 64], sizes = [8, 32], strides = [1, 1]} : vector<8x128xf32> to vector<8x32xf32>
    %188 = math.tanh %187 : vector<8x32xf32>
    %189 = vector.extract_strided_slice %174 {offsets = [0, 96], sizes = [8, 32], strides = [1, 1]} : vector<8x128xf32> to vector<8x32xf32>
    %190 = arith.negf %189 : vector<8x32xf32>
    %191 = math.exp %190 : vector<8x32xf32>
    %cst_50 = arith.constant 1.000000e+00 : f32
    %192 = vector.broadcast %cst_50 : f32 to vector<8x32xf32>
    %193 = arith.addf %192, %191 : vector<8x32xf32>
    %194 = arith.divf %192, %193 : vector<8x32xf32>
    %195 = arith.mulf %186, %165 : vector<8x32xf32>
    %196 = arith.mulf %180, %188 : vector<8x32xf32>
    %197 = arith.addf %195, %196 : vector<8x32xf32>
    %198 = math.tanh %197 : vector<8x32xf32>
    %199 = arith.mulf %194, %198 : vector<8x32xf32>
    %200 = arith.index_cast %170 : i32 to index
    %c0_51 = arith.constant 0 : index
    %201 = vector.load %arg15[%200, %c0_51] : memref<64x32xf32, #tpu.memory_space<vmem>>, vector<8x32xf32>
    tpu.vector_store %arg15[%200, %c0_51], %199 {strides = array<i32>} : memref<64x32xf32, #tpu.memory_space<vmem>>, vector<8x32xf32>,
    %c6_i32 = arith.constant 6 : i32
    %c8_i32_52 = arith.constant 8 : i32
    %202 = arith.muli %c6_i32, %c8_i32_52 : i32
    %203 = arith.index_cast %202 : i32 to index
    %c0_53 = arith.constant 0 : index
    %204 = vector.load %arg14[%203, %c0_53] : memref<64x128xf32, #tpu.memory_space<vmem>>, vector<8x128xf32>
    %cst_54 = arith.constant dense<0.000000e+00> : vector<8x128xf32>
    %205 = tpu.matmul %199, %7, %cst_54 {dimension_numbers = #tpu.dot_dimension_numbers<[1], [0], [0], [1], [0, 0, 1, 1], [], []>} : vector<8x32xf32>, vector<32x128xf32>, vector<8x128xf32> -> vector<8x128xf32>
    %206 = arith.addf %204, %205 : vector<8x128xf32>
    %207 = vector.extract_strided_slice %206 {offsets = [0, 0], sizes = [8, 32], strides = [1, 1]} : vector<8x128xf32> to vector<8x32xf32>
    %208 = arith.negf %207 : vector<8x32xf32>
    %209 = math.exp %208 : vector<8x32xf32>
    %cst_55 = arith.constant 1.000000e+00 : f32
    %210 = vector.broadcast %cst_55 : f32 to vector<8x32xf32>
    %211 = arith.addf %210, %209 : vector<8x32xf32>
    %212 = arith.divf %210, %211 : vector<8x32xf32>
    %213 = vector.extract_strided_slice %206 {offsets = [0, 32], sizes = [8, 32], strides = [1, 1]} : vector<8x128xf32> to vector<8x32xf32>
    %214 = arith.negf %213 : vector<8x32xf32>
    %215 = math.exp %214 : vector<8x32xf32>
    %cst_56 = arith.constant 1.000000e+00 : f32
    %216 = vector.broadcast %cst_56 : f32 to vector<8x32xf32>
    %217 = arith.addf %216, %215 : vector<8x32xf32>
    %218 = arith.divf %216, %217 : vector<8x32xf32>
    %219 = vector.extract_strided_slice %206 {offsets = [0, 64], sizes = [8, 32], strides = [1, 1]} : vector<8x128xf32> to vector<8x32xf32>
    %220 = math.tanh %219 : vector<8x32xf32>
    %221 = vector.extract_strided_slice %206 {offsets = [0, 96], sizes = [8, 32], strides = [1, 1]} : vector<8x128xf32> to vector<8x32xf32>
    %222 = arith.negf %221 : vector<8x32xf32>
    %223 = math.exp %222 : vector<8x32xf32>
    %cst_57 = arith.constant 1.000000e+00 : f32
    %224 = vector.broadcast %cst_57 : f32 to vector<8x32xf32>
    %225 = arith.addf %224, %223 : vector<8x32xf32>
    %226 = arith.divf %224, %225 : vector<8x32xf32>
    %227 = arith.mulf %218, %197 : vector<8x32xf32>
    %228 = arith.mulf %212, %220 : vector<8x32xf32>
    %229 = arith.addf %227, %228 : vector<8x32xf32>
    %230 = math.tanh %229 : vector<8x32xf32>
    %231 = arith.mulf %226, %230 : vector<8x32xf32>
    %232 = arith.index_cast %202 : i32 to index
    %c0_58 = arith.constant 0 : index
    %233 = vector.load %arg15[%232, %c0_58] : memref<64x32xf32, #tpu.memory_space<vmem>>, vector<8x32xf32>
    tpu.vector_store %arg15[%232, %c0_58], %231 {strides = array<i32>} : memref<64x32xf32, #tpu.memory_space<vmem>>, vector<8x32xf32>,
    %c7_i32 = arith.constant 7 : i32
    %c8_i32_59 = arith.constant 8 : i32
    %234 = arith.muli %c7_i32, %c8_i32_59 : i32
    %235 = arith.index_cast %234 : i32 to index
    %c0_60 = arith.constant 0 : index
    %236 = vector.load %arg14[%235, %c0_60] : memref<64x128xf32, #tpu.memory_space<vmem>>, vector<8x128xf32>
    %cst_61 = arith.constant dense<0.000000e+00> : vector<8x128xf32>
    %237 = tpu.matmul %231, %7, %cst_61 {dimension_numbers = #tpu.dot_dimension_numbers<[1], [0], [0], [1], [0, 0, 1, 1], [], []>} : vector<8x32xf32>, vector<32x128xf32>, vector<8x128xf32> -> vector<8x128xf32>
    %238 = arith.addf %236, %237 : vector<8x128xf32>
    %239 = vector.extract_strided_slice %238 {offsets = [0, 0], sizes = [8, 32], strides = [1, 1]} : vector<8x128xf32> to vector<8x32xf32>
    %240 = arith.negf %239 : vector<8x32xf32>
    %241 = math.exp %240 : vector<8x32xf32>
    %cst_62 = arith.constant 1.000000e+00 : f32
    %242 = vector.broadcast %cst_62 : f32 to vector<8x32xf32>
    %243 = arith.addf %242, %241 : vector<8x32xf32>
    %244 = arith.divf %242, %243 : vector<8x32xf32>
    %245 = vector.extract_strided_slice %238 {offsets = [0, 32], sizes = [8, 32], strides = [1, 1]} : vector<8x128xf32> to vector<8x32xf32>
    %246 = arith.negf %245 : vector<8x32xf32>
    %247 = math.exp %246 : vector<8x32xf32>
    %cst_63 = arith.constant 1.000000e+00 : f32
    %248 = vector.broadcast %cst_63 : f32 to vector<8x32xf32>
    %249 = arith.addf %248, %247 : vector<8x32xf32>
    %250 = arith.divf %248, %249 : vector<8x32xf32>
    %251 = vector.extract_strided_slice %238 {offsets = [0, 64], sizes = [8, 32], strides = [1, 1]} : vector<8x128xf32> to vector<8x32xf32>
    %252 = math.tanh %251 : vector<8x32xf32>
    %253 = vector.extract_strided_slice %238 {offsets = [0, 96], sizes = [8, 32], strides = [1, 1]} : vector<8x128xf32> to vector<8x32xf32>
    %254 = arith.negf %253 : vector<8x32xf32>
    %255 = math.exp %254 : vector<8x32xf32>
    %cst_64 = arith.constant 1.000000e+00 : f32
    %256 = vector.broadcast %cst_64 : f32 to vector<8x32xf32>
    %257 = arith.addf %256, %255 : vector<8x32xf32>
    %258 = arith.divf %256, %257 : vector<8x32xf32>
    %259 = arith.mulf %250, %229 : vector<8x32xf32>
    %260 = arith.mulf %244, %252 : vector<8x32xf32>
    %261 = arith.addf %259, %260 : vector<8x32xf32>
    %262 = math.tanh %261 : vector<8x32xf32>
    %263 = arith.mulf %258, %262 : vector<8x32xf32>
    %264 = arith.index_cast %234 : i32 to index
    %c0_65 = arith.constant 0 : index
    %265 = vector.load %arg15[%264, %c0_65] : memref<64x32xf32, #tpu.memory_space<vmem>>, vector<8x32xf32>
    tpu.vector_store %arg15[%264, %c0_65], %263 {strides = array<i32>} : memref<64x32xf32, #tpu.memory_space<vmem>>, vector<8x32xf32>,
    %c8_i32_66 = arith.constant 8 : i32
    %c0_67 = arith.constant 0 : index
    %c0_68 = arith.constant 0 : index
    %c0_69 = arith.constant 0 : index
    %266 = vector.load %arg12[%c0_67, %c0_68, %c0_69] : memref<3x8x32xf32, #tpu.memory_space<vmem>>, vector<1x8x32xf32>
    %267 = vector.shape_cast %266 : vector<1x8x32xf32> to vector<8x32xf32>
    %268 = vector.shape_cast %263 : vector<8x32xf32> to vector<1x8x32xf32>
    tpu.vector_store %arg12[%c0_67, %c0_68, %c0_69], %268 {strides = array<i32>} : memref<3x8x32xf32, #tpu.memory_space<vmem>>, vector<1x8x32xf32>,
    %c0_70 = arith.constant 0 : index
    %c0_71 = arith.constant 0 : index
    %c0_72 = arith.constant 0 : index
    %269 = vector.load %arg13[%c0_70, %c0_71, %c0_72] : memref<3x8x32xf32, #tpu.memory_space<vmem>>, vector<1x8x32xf32>
    %270 = vector.shape_cast %269 : vector<1x8x32xf32> to vector<8x32xf32>
    %271 = vector.shape_cast %261 : vector<8x32xf32> to vector<1x8x32xf32>
    tpu.vector_store %arg13[%c0_70, %c0_71, %c0_72], %271 {strides = array<i32>} : memref<3x8x32xf32, #tpu.memory_space<vmem>>, vector<1x8x32xf32>,
    %c0_73 = arith.constant 0 : index
    %c0_74 = arith.constant 0 : index
    %272 = vector.load %arg15[%c0_73, %c0_74] : memref<64x32xf32, #tpu.memory_space<vmem>>, vector<64x32xf32>
    %c0_75 = arith.constant 0 : index
    %c0_76 = arith.constant 0 : index
    %273 = vector.load %arg5[%c0_75, %c0_76] : memref<32x128xf32, #tpu.memory_space<vmem>>, vector<32x128xf32>
    %cst_77 = arith.constant dense<0.000000e+00> : vector<64x128xf32>
    %274 = tpu.matmul %272, %273, %cst_77 {dimension_numbers = #tpu.dot_dimension_numbers<[1], [0], [0], [1], [0, 0, 1, 1], [], []>} : vector<64x32xf32>, vector<32x128xf32>, vector<64x128xf32> -> vector<64x128xf32>
    %c0_78 = arith.constant 0 : index
    %c0_79 = arith.constant 0 : index
    %275 = vector.load %arg7[%c0_78, %c0_79] : memref<1x128xf32, #tpu.memory_space<vmem>>, vector<1x128xf32>
    %276 = vector.broadcast %275 : vector<1x128xf32> to vector<64x128xf32>
    %277 = arith.addf %274, %276 : vector<64x128xf32>
    %c0_80 = arith.constant 0 : index
    %c0_81 = arith.constant 0 : index
    %278 = vector.load %arg14[%c0_80, %c0_81] : memref<64x128xf32, #tpu.memory_space<vmem>>, vector<64x128xf32>
    tpu.vector_store %arg14[%c0_80, %c0_81], %277 {strides = array<i32>} : memref<64x128xf32, #tpu.memory_space<vmem>>, vector<64x128xf32>,
    %c0_82 = arith.constant 0 : index
    %c0_83 = arith.constant 0 : index
    %279 = vector.load %arg6[%c0_82, %c0_83] : memref<32x128xf32, #tpu.memory_space<vmem>>, vector<32x128xf32>
    %cst_84 = arith.constant 0.000000e+00 : f32
    %280 = vector.broadcast %cst_84 : f32 to vector<8x32xf32>
    %cst_85 = arith.constant 0.000000e+00 : f32
    %281 = vector.broadcast %cst_85 : f32 to vector<8x32xf32>
    %c0_i32_86 = arith.constant 0 : i32
    %c8_i32_87 = arith.constant 8 : i32
    %282 = arith.muli %c0_i32_86, %c8_i32_87 : i32
    %283 = arith.index_cast %282 : i32 to index
    %c0_88 = arith.constant 0 : index
    %284 = vector.load %arg14[%283, %c0_88] : memref<64x128xf32, #tpu.memory_space<vmem>>, vector<8x128xf32>
    %cst_89 = arith.constant dense<0.000000e+00> : vector<8x128xf32>
    %285 = tpu.matmul %280, %279, %cst_89 {dimension_numbers = #tpu.dot_dimension_numbers<[1], [0], [0], [1], [0, 0, 1, 1], [], []>} : vector<8x32xf32>, vector<32x128xf32>, vector<8x128xf32> -> vector<8x128xf32>
    %286 = arith.addf %284, %285 : vector<8x128xf32>
    %287 = vector.extract_strided_slice %286 {offsets = [0, 0], sizes = [8, 32], strides = [1, 1]} : vector<8x128xf32> to vector<8x32xf32>
    %288 = arith.negf %287 : vector<8x32xf32>
    %289 = math.exp %288 : vector<8x32xf32>
    %cst_90 = arith.constant 1.000000e+00 : f32
    %290 = vector.broadcast %cst_90 : f32 to vector<8x32xf32>
    %291 = arith.addf %290, %289 : vector<8x32xf32>
    %292 = arith.divf %290, %291 : vector<8x32xf32>
    %293 = vector.extract_strided_slice %286 {offsets = [0, 32], sizes = [8, 32], strides = [1, 1]} : vector<8x128xf32> to vector<8x32xf32>
    %294 = arith.negf %293 : vector<8x32xf32>
    %295 = math.exp %294 : vector<8x32xf32>
    %cst_91 = arith.constant 1.000000e+00 : f32
    %296 = vector.broadcast %cst_91 : f32 to vector<8x32xf32>
    %297 = arith.addf %296, %295 : vector<8x32xf32>
    %298 = arith.divf %296, %297 : vector<8x32xf32>
    %299 = vector.extract_strided_slice %286 {offsets = [0, 64], sizes = [8, 32], strides = [1, 1]} : vector<8x128xf32> to vector<8x32xf32>
    %300 = math.tanh %299 : vector<8x32xf32>
    %301 = vector.extract_strided_slice %286 {offsets = [0, 96], sizes = [8, 32], strides = [1, 1]} : vector<8x128xf32> to vector<8x32xf32>
    %302 = arith.negf %301 : vector<8x32xf32>
    %303 = math.exp %302 : vector<8x32xf32>
    %cst_92 = arith.constant 1.000000e+00 : f32
    %304 = vector.broadcast %cst_92 : f32 to vector<8x32xf32>
    %305 = arith.addf %304, %303 : vector<8x32xf32>
    %306 = arith.divf %304, %305 : vector<8x32xf32>
    %307 = arith.mulf %298, %281 : vector<8x32xf32>
    %308 = arith.mulf %292, %300 : vector<8x32xf32>
    %309 = arith.addf %307, %308 : vector<8x32xf32>
    %310 = math.tanh %309 : vector<8x32xf32>
    %311 = arith.mulf %306, %310 : vector<8x32xf32>
    %312 = arith.index_cast %282 : i32 to index
    %c0_93 = arith.constant 0 : index
    %313 = vector.load %arg15[%312, %c0_93] : memref<64x32xf32, #tpu.memory_space<vmem>>, vector<8x32xf32>
    tpu.vector_store %arg15[%312, %c0_93], %311 {strides = array<i32>} : memref<64x32xf32, #tpu.memory_space<vmem>>, vector<8x32xf32>,
    %c1_i32_94 = arith.constant 1 : i32
    %c8_i32_95 = arith.constant 8 : i32
    %314 = arith.muli %c1_i32_94, %c8_i32_95 : i32
    %315 = arith.index_cast %314 : i32 to index
    %c0_96 = arith.constant 0 : index
    %316 = vector.load %arg14[%315, %c0_96] : memref<64x128xf32, #tpu.memory_space<vmem>>, vector<8x128xf32>
    %cst_97 = arith.constant dense<0.000000e+00> : vector<8x128xf32>
    %317 = tpu.matmul %311, %279, %cst_97 {dimension_numbers = #tpu.dot_dimension_numbers<[1], [0], [0], [1], [0, 0, 1, 1], [], []>} : vector<8x32xf32>, vector<32x128xf32>, vector<8x128xf32> -> vector<8x128xf32>
    %318 = arith.addf %316, %317 : vector<8x128xf32>
    %319 = vector.extract_strided_slice %318 {offsets = [0, 0], sizes = [8, 32], strides = [1, 1]} : vector<8x128xf32> to vector<8x32xf32>
    %320 = arith.negf %319 : vector<8x32xf32>
    %321 = math.exp %320 : vector<8x32xf32>
    %cst_98 = arith.constant 1.000000e+00 : f32
    %322 = vector.broadcast %cst_98 : f32 to vector<8x32xf32>
    %323 = arith.addf %322, %321 : vector<8x32xf32>
    %324 = arith.divf %322, %323 : vector<8x32xf32>
    %325 = vector.extract_strided_slice %318 {offsets = [0, 32], sizes = [8, 32], strides = [1, 1]} : vector<8x128xf32> to vector<8x32xf32>
    %326 = arith.negf %325 : vector<8x32xf32>
    %327 = math.exp %326 : vector<8x32xf32>
    %cst_99 = arith.constant 1.000000e+00 : f32
    %328 = vector.broadcast %cst_99 : f32 to vector<8x32xf32>
    %329 = arith.addf %328, %327 : vector<8x32xf32>
    %330 = arith.divf %328, %329 : vector<8x32xf32>
    %331 = vector.extract_strided_slice %318 {offsets = [0, 64], sizes = [8, 32], strides = [1, 1]} : vector<8x128xf32> to vector<8x32xf32>
    %332 = math.tanh %331 : vector<8x32xf32>
    %333 = vector.extract_strided_slice %318 {offsets = [0, 96], sizes = [8, 32], strides = [1, 1]} : vector<8x128xf32> to vector<8x32xf32>
    %334 = arith.negf %333 : vector<8x32xf32>
    %335 = math.exp %334 : vector<8x32xf32>
    %cst_100 = arith.constant 1.000000e+00 : f32
    %336 = vector.broadcast %cst_100 : f32 to vector<8x32xf32>
    %337 = arith.addf %336, %335 : vector<8x32xf32>
    %338 = arith.divf %336, %337 : vector<8x32xf32>
    %339 = arith.mulf %330, %309 : vector<8x32xf32>
    %340 = arith.mulf %324, %332 : vector<8x32xf32>
    %341 = arith.addf %339, %340 : vector<8x32xf32>
    %342 = math.tanh %341 : vector<8x32xf32>
    %343 = arith.mulf %338, %342 : vector<8x32xf32>
    %344 = arith.index_cast %314 : i32 to index
    %c0_101 = arith.constant 0 : index
    %345 = vector.load %arg15[%344, %c0_101] : memref<64x32xf32, #tpu.memory_space<vmem>>, vector<8x32xf32>
    tpu.vector_store %arg15[%344, %c0_101], %343 {strides = array<i32>} : memref<64x32xf32, #tpu.memory_space<vmem>>, vector<8x32xf32>,
    %c2_i32_102 = arith.constant 2 : i32
    %c8_i32_103 = arith.constant 8 : i32
    %346 = arith.muli %c2_i32_102, %c8_i32_103 : i32
    %347 = arith.index_cast %346 : i32 to index
    %c0_104 = arith.constant 0 : index
    %348 = vector.load %arg14[%347, %c0_104] : memref<64x128xf32, #tpu.memory_space<vmem>>, vector<8x128xf32>
    %cst_105 = arith.constant dense<0.000000e+00> : vector<8x128xf32>
    %349 = tpu.matmul %343, %279, %cst_105 {dimension_numbers = #tpu.dot_dimension_numbers<[1], [0], [0], [1], [0, 0, 1, 1], [], []>} : vector<8x32xf32>, vector<32x128xf32>, vector<8x128xf32> -> vector<8x128xf32>
    %350 = arith.addf %348, %349 : vector<8x128xf32>
    %351 = vector.extract_strided_slice %350 {offsets = [0, 0], sizes = [8, 32], strides = [1, 1]} : vector<8x128xf32> to vector<8x32xf32>
    %352 = arith.negf %351 : vector<8x32xf32>
    %353 = math.exp %352 : vector<8x32xf32>
    %cst_106 = arith.constant 1.000000e+00 : f32
    %354 = vector.broadcast %cst_106 : f32 to vector<8x32xf32>
    %355 = arith.addf %354, %353 : vector<8x32xf32>
    %356 = arith.divf %354, %355 : vector<8x32xf32>
    %357 = vector.extract_strided_slice %350 {offsets = [0, 32], sizes = [8, 32], strides = [1, 1]} : vector<8x128xf32> to vector<8x32xf32>
    %358 = arith.negf %357 : vector<8x32xf32>
    %359 = math.exp %358 : vector<8x32xf32>
    %cst_107 = arith.constant 1.000000e+00 : f32
    %360 = vector.broadcast %cst_107 : f32 to vector<8x32xf32>
    %361 = arith.addf %360, %359 : vector<8x32xf32>
    %362 = arith.divf %360, %361 : vector<8x32xf32>
    %363 = vector.extract_strided_slice %350 {offsets = [0, 64], sizes = [8, 32], strides = [1, 1]} : vector<8x128xf32> to vector<8x32xf32>
    %364 = math.tanh %363 : vector<8x32xf32>
    %365 = vector.extract_strided_slice %350 {offsets = [0, 96], sizes = [8, 32], strides = [1, 1]} : vector<8x128xf32> to vector<8x32xf32>
    %366 = arith.negf %365 : vector<8x32xf32>
    %367 = math.exp %366 : vector<8x32xf32>
    %cst_108 = arith.constant 1.000000e+00 : f32
    %368 = vector.broadcast %cst_108 : f32 to vector<8x32xf32>
    %369 = arith.addf %368, %367 : vector<8x32xf32>
    %370 = arith.divf %368, %369 : vector<8x32xf32>
    %371 = arith.mulf %362, %341 : vector<8x32xf32>
    %372 = arith.mulf %356, %364 : vector<8x32xf32>
    %373 = arith.addf %371, %372 : vector<8x32xf32>
    %374 = math.tanh %373 : vector<8x32xf32>
    %375 = arith.mulf %370, %374 : vector<8x32xf32>
    %376 = arith.index_cast %346 : i32 to index
    %c0_109 = arith.constant 0 : index
    %377 = vector.load %arg15[%376, %c0_109] : memref<64x32xf32, #tpu.memory_space<vmem>>, vector<8x32xf32>
    tpu.vector_store %arg15[%376, %c0_109], %375 {strides = array<i32>} : memref<64x32xf32, #tpu.memory_space<vmem>>, vector<8x32xf32>,
    %c3_i32_110 = arith.constant 3 : i32
    %c8_i32_111 = arith.constant 8 : i32
    %378 = arith.muli %c3_i32_110, %c8_i32_111 : i32
    %379 = arith.index_cast %378 : i32 to index
    %c0_112 = arith.constant 0 : index
    %380 = vector.load %arg14[%379, %c0_112] : memref<64x128xf32, #tpu.memory_space<vmem>>, vector<8x128xf32>
    %cst_113 = arith.constant dense<0.000000e+00> : vector<8x128xf32>
    %381 = tpu.matmul %375, %279, %cst_113 {dimension_numbers = #tpu.dot_dimension_numbers<[1], [0], [0], [1], [0, 0, 1, 1], [], []>} : vector<8x32xf32>, vector<32x128xf32>, vector<8x128xf32> -> vector<8x128xf32>
    %382 = arith.addf %380, %381 : vector<8x128xf32>
    %383 = vector.extract_strided_slice %382 {offsets = [0, 0], sizes = [8, 32], strides = [1, 1]} : vector<8x128xf32> to vector<8x32xf32>
    %384 = arith.negf %383 : vector<8x32xf32>
    %385 = math.exp %384 : vector<8x32xf32>
    %cst_114 = arith.constant 1.000000e+00 : f32
    %386 = vector.broadcast %cst_114 : f32 to vector<8x32xf32>
    %387 = arith.addf %386, %385 : vector<8x32xf32>
    %388 = arith.divf %386, %387 : vector<8x32xf32>
    %389 = vector.extract_strided_slice %382 {offsets = [0, 32], sizes = [8, 32], strides = [1, 1]} : vector<8x128xf32> to vector<8x32xf32>
    %390 = arith.negf %389 : vector<8x32xf32>
    %391 = math.exp %390 : vector<8x32xf32>
    %cst_115 = arith.constant 1.000000e+00 : f32
    %392 = vector.broadcast %cst_115 : f32 to vector<8x32xf32>
    %393 = arith.addf %392, %391 : vector<8x32xf32>
    %394 = arith.divf %392, %393 : vector<8x32xf32>
    %395 = vector.extract_strided_slice %382 {offsets = [0, 64], sizes = [8, 32], strides = [1, 1]} : vector<8x128xf32> to vector<8x32xf32>
    %396 = math.tanh %395 : vector<8x32xf32>
    %397 = vector.extract_strided_slice %382 {offsets = [0, 96], sizes = [8, 32], strides = [1, 1]} : vector<8x128xf32> to vector<8x32xf32>
    %398 = arith.negf %397 : vector<8x32xf32>
    %399 = math.exp %398 : vector<8x32xf32>
    %cst_116 = arith.constant 1.000000e+00 : f32
    %400 = vector.broadcast %cst_116 : f32 to vector<8x32xf32>
    %401 = arith.addf %400, %399 : vector<8x32xf32>
    %402 = arith.divf %400, %401 : vector<8x32xf32>
    %403 = arith.mulf %394, %373 : vector<8x32xf32>
    %404 = arith.mulf %388, %396 : vector<8x32xf32>
    %405 = arith.addf %403, %404 : vector<8x32xf32>
    %406 = math.tanh %405 : vector<8x32xf32>
    %407 = arith.mulf %402, %406 : vector<8x32xf32>
    %408 = arith.index_cast %378 : i32 to index
    %c0_117 = arith.constant 0 : index
    %409 = vector.load %arg15[%408, %c0_117] : memref<64x32xf32, #tpu.memory_space<vmem>>, vector<8x32xf32>
    tpu.vector_store %arg15[%408, %c0_117], %407 {strides = array<i32>} : memref<64x32xf32, #tpu.memory_space<vmem>>, vector<8x32xf32>,
    %c4_i32_118 = arith.constant 4 : i32
    %c8_i32_119 = arith.constant 8 : i32
    %410 = arith.muli %c4_i32_118, %c8_i32_119 : i32
    %411 = arith.index_cast %410 : i32 to index
    %c0_120 = arith.constant 0 : index
    %412 = vector.load %arg14[%411, %c0_120] : memref<64x128xf32, #tpu.memory_space<vmem>>, vector<8x128xf32>
    %cst_121 = arith.constant dense<0.000000e+00> : vector<8x128xf32>
    %413 = tpu.matmul %407, %279, %cst_121 {dimension_numbers = #tpu.dot_dimension_numbers<[1], [0], [0], [1], [0, 0, 1, 1], [], []>} : vector<8x32xf32>, vector<32x128xf32>, vector<8x128xf32> -> vector<8x128xf32>
    %414 = arith.addf %412, %413 : vector<8x128xf32>
    %415 = vector.extract_strided_slice %414 {offsets = [0, 0], sizes = [8, 32], strides = [1, 1]} : vector<8x128xf32> to vector<8x32xf32>
    %416 = arith.negf %415 : vector<8x32xf32>
    %417 = math.exp %416 : vector<8x32xf32>
    %cst_122 = arith.constant 1.000000e+00 : f32
    %418 = vector.broadcast %cst_122 : f32 to vector<8x32xf32>
    %419 = arith.addf %418, %417 : vector<8x32xf32>
    %420 = arith.divf %418, %419 : vector<8x32xf32>
    %421 = vector.extract_strided_slice %414 {offsets = [0, 32], sizes = [8, 32], strides = [1, 1]} : vector<8x128xf32> to vector<8x32xf32>
    %422 = arith.negf %421 : vector<8x32xf32>
    %423 = math.exp %422 : vector<8x32xf32>
    %cst_123 = arith.constant 1.000000e+00 : f32
    %424 = vector.broadcast %cst_123 : f32 to vector<8x32xf32>
    %425 = arith.addf %424, %423 : vector<8x32xf32>
    %426 = arith.divf %424, %425 : vector<8x32xf32>
    %427 = vector.extract_strided_slice %414 {offsets = [0, 64], sizes = [8, 32], strides = [1, 1]} : vector<8x128xf32> to vector<8x32xf32>
    %428 = math.tanh %427 : vector<8x32xf32>
    %429 = vector.extract_strided_slice %414 {offsets = [0, 96], sizes = [8, 32], strides = [1, 1]} : vector<8x128xf32> to vector<8x32xf32>
    %430 = arith.negf %429 : vector<8x32xf32>
    %431 = math.exp %430 : vector<8x32xf32>
    %cst_124 = arith.constant 1.000000e+00 : f32
    %432 = vector.broadcast %cst_124 : f32 to vector<8x32xf32>
    %433 = arith.addf %432, %431 : vector<8x32xf32>
    %434 = arith.divf %432, %433 : vector<8x32xf32>
    %435 = arith.mulf %426, %405 : vector<8x32xf32>
    %436 = arith.mulf %420, %428 : vector<8x32xf32>
    %437 = arith.addf %435, %436 : vector<8x32xf32>
    %438 = math.tanh %437 : vector<8x32xf32>
    %439 = arith.mulf %434, %438 : vector<8x32xf32>
    %440 = arith.index_cast %410 : i32 to index
    %c0_125 = arith.constant 0 : index
    %441 = vector.load %arg15[%440, %c0_125] : memref<64x32xf32, #tpu.memory_space<vmem>>, vector<8x32xf32>
    tpu.vector_store %arg15[%440, %c0_125], %439 {strides = array<i32>} : memref<64x32xf32, #tpu.memory_space<vmem>>, vector<8x32xf32>,
    %c5_i32_126 = arith.constant 5 : i32
    %c8_i32_127 = arith.constant 8 : i32
    %442 = arith.muli %c5_i32_126, %c8_i32_127 : i32
    %443 = arith.index_cast %442 : i32 to index
    %c0_128 = arith.constant 0 : index
    %444 = vector.load %arg14[%443, %c0_128] : memref<64x128xf32, #tpu.memory_space<vmem>>, vector<8x128xf32>
    %cst_129 = arith.constant dense<0.000000e+00> : vector<8x128xf32>
    %445 = tpu.matmul %439, %279, %cst_129 {dimension_numbers = #tpu.dot_dimension_numbers<[1], [0], [0], [1], [0, 0, 1, 1], [], []>} : vector<8x32xf32>, vector<32x128xf32>, vector<8x128xf32> -> vector<8x128xf32>
    %446 = arith.addf %444, %445 : vector<8x128xf32>
    %447 = vector.extract_strided_slice %446 {offsets = [0, 0], sizes = [8, 32], strides = [1, 1]} : vector<8x128xf32> to vector<8x32xf32>
    %448 = arith.negf %447 : vector<8x32xf32>
    %449 = math.exp %448 : vector<8x32xf32>
    %cst_130 = arith.constant 1.000000e+00 : f32
    %450 = vector.broadcast %cst_130 : f32 to vector<8x32xf32>
    %451 = arith.addf %450, %449 : vector<8x32xf32>
    %452 = arith.divf %450, %451 : vector<8x32xf32>
    %453 = vector.extract_strided_slice %446 {offsets = [0, 32], sizes = [8, 32], strides = [1, 1]} : vector<8x128xf32> to vector<8x32xf32>
    %454 = arith.negf %453 : vector<8x32xf32>
    %455 = math.exp %454 : vector<8x32xf32>
    %cst_131 = arith.constant 1.000000e+00 : f32
    %456 = vector.broadcast %cst_131 : f32 to vector<8x32xf32>
    %457 = arith.addf %456, %455 : vector<8x32xf32>
    %458 = arith.divf %456, %457 : vector<8x32xf32>
    %459 = vector.extract_strided_slice %446 {offsets = [0, 64], sizes = [8, 32], strides = [1, 1]} : vector<8x128xf32> to vector<8x32xf32>
    %460 = math.tanh %459 : vector<8x32xf32>
    %461 = vector.extract_strided_slice %446 {offsets = [0, 96], sizes = [8, 32], strides = [1, 1]} : vector<8x128xf32> to vector<8x32xf32>
    %462 = arith.negf %461 : vector<8x32xf32>
    %463 = math.exp %462 : vector<8x32xf32>
    %cst_132 = arith.constant 1.000000e+00 : f32
    %464 = vector.broadcast %cst_132 : f32 to vector<8x32xf32>
    %465 = arith.addf %464, %463 : vector<8x32xf32>
    %466 = arith.divf %464, %465 : vector<8x32xf32>
    %467 = arith.mulf %458, %437 : vector<8x32xf32>
    %468 = arith.mulf %452, %460 : vector<8x32xf32>
    %469 = arith.addf %467, %468 : vector<8x32xf32>
    %470 = math.tanh %469 : vector<8x32xf32>
    %471 = arith.mulf %466, %470 : vector<8x32xf32>
    %472 = arith.index_cast %442 : i32 to index
    %c0_133 = arith.constant 0 : index
    %473 = vector.load %arg15[%472, %c0_133] : memref<64x32xf32, #tpu.memory_space<vmem>>, vector<8x32xf32>
    tpu.vector_store %arg15[%472, %c0_133], %471 {strides = array<i32>} : memref<64x32xf32, #tpu.memory_space<vmem>>, vector<8x32xf32>,
    %c6_i32_134 = arith.constant 6 : i32
    %c8_i32_135 = arith.constant 8 : i32
    %474 = arith.muli %c6_i32_134, %c8_i32_135 : i32
    %475 = arith.index_cast %474 : i32 to index
    %c0_136 = arith.constant 0 : index
    %476 = vector.load %arg14[%475, %c0_136] : memref<64x128xf32, #tpu.memory_space<vmem>>, vector<8x128xf32>
    %cst_137 = arith.constant dense<0.000000e+00> : vector<8x128xf32>
    %477 = tpu.matmul %471, %279, %cst_137 {dimension_numbers = #tpu.dot_dimension_numbers<[1], [0], [0], [1], [0, 0, 1, 1], [], []>} : vector<8x32xf32>, vector<32x128xf32>, vector<8x128xf32> -> vector<8x128xf32>
    %478 = arith.addf %476, %477 : vector<8x128xf32>
    %479 = vector.extract_strided_slice %478 {offsets = [0, 0], sizes = [8, 32], strides = [1, 1]} : vector<8x128xf32> to vector<8x32xf32>
    %480 = arith.negf %479 : vector<8x32xf32>
    %481 = math.exp %480 : vector<8x32xf32>
    %cst_138 = arith.constant 1.000000e+00 : f32
    %482 = vector.broadcast %cst_138 : f32 to vector<8x32xf32>
    %483 = arith.addf %482, %481 : vector<8x32xf32>
    %484 = arith.divf %482, %483 : vector<8x32xf32>
    %485 = vector.extract_strided_slice %478 {offsets = [0, 32], sizes = [8, 32], strides = [1, 1]} : vector<8x128xf32> to vector<8x32xf32>
    %486 = arith.negf %485 : vector<8x32xf32>
    %487 = math.exp %486 : vector<8x32xf32>
    %cst_139 = arith.constant 1.000000e+00 : f32
    %488 = vector.broadcast %cst_139 : f32 to vector<8x32xf32>
    %489 = arith.addf %488, %487 : vector<8x32xf32>
    %490 = arith.divf %488, %489 : vector<8x32xf32>
    %491 = vector.extract_strided_slice %478 {offsets = [0, 64], sizes = [8, 32], strides = [1, 1]} : vector<8x128xf32> to vector<8x32xf32>
    %492 = math.tanh %491 : vector<8x32xf32>
    %493 = vector.extract_strided_slice %478 {offsets = [0, 96], sizes = [8, 32], strides = [1, 1]} : vector<8x128xf32> to vector<8x32xf32>
    %494 = arith.negf %493 : vector<8x32xf32>
    %495 = math.exp %494 : vector<8x32xf32>
    %cst_140 = arith.constant 1.000000e+00 : f32
    %496 = vector.broadcast %cst_140 : f32 to vector<8x32xf32>
    %497 = arith.addf %496, %495 : vector<8x32xf32>
    %498 = arith.divf %496, %497 : vector<8x32xf32>
    %499 = arith.mulf %490, %469 : vector<8x32xf32>
    %500 = arith.mulf %484, %492 : vector<8x32xf32>
    %501 = arith.addf %499, %500 : vector<8x32xf32>
    %502 = math.tanh %501 : vector<8x32xf32>
    %503 = arith.mulf %498, %502 : vector<8x32xf32>
    %504 = arith.index_cast %474 : i32 to index
    %c0_141 = arith.constant 0 : index
    %505 = vector.load %arg15[%504, %c0_141] : memref<64x32xf32, #tpu.memory_space<vmem>>, vector<8x32xf32>
    tpu.vector_store %arg15[%504, %c0_141], %503 {strides = array<i32>} : memref<64x32xf32, #tpu.memory_space<vmem>>, vector<8x32xf32>,
    %c7_i32_142 = arith.constant 7 : i32
    %c8_i32_143 = arith.constant 8 : i32
    %506 = arith.muli %c7_i32_142, %c8_i32_143 : i32
    %507 = arith.index_cast %506 : i32 to index
    %c0_144 = arith.constant 0 : index
    %508 = vector.load %arg14[%507, %c0_144] : memref<64x128xf32, #tpu.memory_space<vmem>>, vector<8x128xf32>
    %cst_145 = arith.constant dense<0.000000e+00> : vector<8x128xf32>
    %509 = tpu.matmul %503, %279, %cst_145 {dimension_numbers = #tpu.dot_dimension_numbers<[1], [0], [0], [1], [0, 0, 1, 1], [], []>} : vector<8x32xf32>, vector<32x128xf32>, vector<8x128xf32> -> vector<8x128xf32>
    %510 = arith.addf %508, %509 : vector<8x128xf32>
    %511 = vector.extract_strided_slice %510 {offsets = [0, 0], sizes = [8, 32], strides = [1, 1]} : vector<8x128xf32> to vector<8x32xf32>
    %512 = arith.negf %511 : vector<8x32xf32>
    %513 = math.exp %512 : vector<8x32xf32>
    %cst_146 = arith.constant 1.000000e+00 : f32
    %514 = vector.broadcast %cst_146 : f32 to vector<8x32xf32>
    %515 = arith.addf %514, %513 : vector<8x32xf32>
    %516 = arith.divf %514, %515 : vector<8x32xf32>
    %517 = vector.extract_strided_slice %510 {offsets = [0, 32], sizes = [8, 32], strides = [1, 1]} : vector<8x128xf32> to vector<8x32xf32>
    %518 = arith.negf %517 : vector<8x32xf32>
    %519 = math.exp %518 : vector<8x32xf32>
    %cst_147 = arith.constant 1.000000e+00 : f32
    %520 = vector.broadcast %cst_147 : f32 to vector<8x32xf32>
    %521 = arith.addf %520, %519 : vector<8x32xf32>
    %522 = arith.divf %520, %521 : vector<8x32xf32>
    %523 = vector.extract_strided_slice %510 {offsets = [0, 64], sizes = [8, 32], strides = [1, 1]} : vector<8x128xf32> to vector<8x32xf32>
    %524 = math.tanh %523 : vector<8x32xf32>
    %525 = vector.extract_strided_slice %510 {offsets = [0, 96], sizes = [8, 32], strides = [1, 1]} : vector<8x128xf32> to vector<8x32xf32>
    %526 = arith.negf %525 : vector<8x32xf32>
    %527 = math.exp %526 : vector<8x32xf32>
    %cst_148 = arith.constant 1.000000e+00 : f32
    %528 = vector.broadcast %cst_148 : f32 to vector<8x32xf32>
    %529 = arith.addf %528, %527 : vector<8x32xf32>
    %530 = arith.divf %528, %529 : vector<8x32xf32>
    %531 = arith.mulf %522, %501 : vector<8x32xf32>
    %532 = arith.mulf %516, %524 : vector<8x32xf32>
    %533 = arith.addf %531, %532 : vector<8x32xf32>
    %534 = math.tanh %533 : vector<8x32xf32>
    %535 = arith.mulf %530, %534 : vector<8x32xf32>
    %536 = arith.index_cast %506 : i32 to index
    %c0_149 = arith.constant 0 : index
    %537 = vector.load %arg15[%536, %c0_149] : memref<64x32xf32, #tpu.memory_space<vmem>>, vector<8x32xf32>
    tpu.vector_store %arg15[%536, %c0_149], %535 {strides = array<i32>} : memref<64x32xf32, #tpu.memory_space<vmem>>, vector<8x32xf32>,
    %c8_i32_150 = arith.constant 8 : i32
    %c1 = arith.constant 1 : index
    %c0_151 = arith.constant 0 : index
    %c0_152 = arith.constant 0 : index
    %538 = vector.load %arg12[%c1, %c0_151, %c0_152] : memref<3x8x32xf32, #tpu.memory_space<vmem>>, vector<1x8x32xf32>
    %539 = vector.shape_cast %538 : vector<1x8x32xf32> to vector<8x32xf32>
    %540 = vector.shape_cast %535 : vector<8x32xf32> to vector<1x8x32xf32>
    tpu.vector_store %arg12[%c1, %c0_151, %c0_152], %540 {strides = array<i32>} : memref<3x8x32xf32, #tpu.memory_space<vmem>>, vector<1x8x32xf32>,
    %c1_153 = arith.constant 1 : index
    %c0_154 = arith.constant 0 : index
    %c0_155 = arith.constant 0 : index
    %541 = vector.load %arg13[%c1_153, %c0_154, %c0_155] : memref<3x8x32xf32, #tpu.memory_space<vmem>>, vector<1x8x32xf32>
    %542 = vector.shape_cast %541 : vector<1x8x32xf32> to vector<8x32xf32>
    %543 = vector.shape_cast %533 : vector<8x32xf32> to vector<1x8x32xf32>
    tpu.vector_store %arg13[%c1_153, %c0_154, %c0_155], %543 {strides = array<i32>} : memref<3x8x32xf32, #tpu.memory_space<vmem>>, vector<1x8x32xf32>,
    %c0_156 = arith.constant 0 : index
    %c0_157 = arith.constant 0 : index
    %544 = vector.load %arg15[%c0_156, %c0_157] : memref<64x32xf32, #tpu.memory_space<vmem>>, vector<64x32xf32>
    %c0_158 = arith.constant 0 : index
    %c0_159 = arith.constant 0 : index
    %545 = vector.load %arg8[%c0_158, %c0_159] : memref<32x128xf32, #tpu.memory_space<vmem>>, vector<32x128xf32>
    %cst_160 = arith.constant dense<0.000000e+00> : vector<64x128xf32>
    %546 = tpu.matmul %544, %545, %cst_160 {dimension_numbers = #tpu.dot_dimension_numbers<[1], [0], [0], [1], [0, 0, 1, 1], [], []>} : vector<64x32xf32>, vector<32x128xf32>, vector<64x128xf32> -> vector<64x128xf32>
    %c0_161 = arith.constant 0 : index
    %c0_162 = arith.constant 0 : index
    %547 = vector.load %arg10[%c0_161, %c0_162] : memref<1x128xf32, #tpu.memory_space<vmem>>, vector<1x128xf32>
    %548 = vector.broadcast %547 : vector<1x128xf32> to vector<64x128xf32>
    %549 = arith.addf %546, %548 : vector<64x128xf32>
    %c0_163 = arith.constant 0 : index
    %c0_164 = arith.constant 0 : index
    %550 = vector.load %arg14[%c0_163, %c0_164] : memref<64x128xf32, #tpu.memory_space<vmem>>, vector<64x128xf32>
    tpu.vector_store %arg14[%c0_163, %c0_164], %549 {strides = array<i32>} : memref<64x128xf32, #tpu.memory_space<vmem>>, vector<64x128xf32>,
    %c0_165 = arith.constant 0 : index
    %c0_166 = arith.constant 0 : index
    %551 = vector.load %arg9[%c0_165, %c0_166] : memref<32x128xf32, #tpu.memory_space<vmem>>, vector<32x128xf32>
    %cst_167 = arith.constant 0.000000e+00 : f32
    %552 = vector.broadcast %cst_167 : f32 to vector<8x32xf32>
    %cst_168 = arith.constant 0.000000e+00 : f32
    %553 = vector.broadcast %cst_168 : f32 to vector<8x32xf32>
    %c0_i32_169 = arith.constant 0 : i32
    %c8_i32_170 = arith.constant 8 : i32
    %554 = arith.muli %c0_i32_169, %c8_i32_170 : i32
    %555 = arith.index_cast %554 : i32 to index
    %c0_171 = arith.constant 0 : index
    %556 = vector.load %arg14[%555, %c0_171] : memref<64x128xf32, #tpu.memory_space<vmem>>, vector<8x128xf32>
    %cst_172 = arith.constant dense<0.000000e+00> : vector<8x128xf32>
    %557 = tpu.matmul %552, %551, %cst_172 {dimension_numbers = #tpu.dot_dimension_numbers<[1], [0], [0], [1], [0, 0, 1, 1], [], []>} : vector<8x32xf32>, vector<32x128xf32>, vector<8x128xf32> -> vector<8x128xf32>
    %558 = arith.addf %556, %557 : vector<8x128xf32>
    %559 = vector.extract_strided_slice %558 {offsets = [0, 0], sizes = [8, 32], strides = [1, 1]} : vector<8x128xf32> to vector<8x32xf32>
    %560 = arith.negf %559 : vector<8x32xf32>
    %561 = math.exp %560 : vector<8x32xf32>
    %cst_173 = arith.constant 1.000000e+00 : f32
    %562 = vector.broadcast %cst_173 : f32 to vector<8x32xf32>
    %563 = arith.addf %562, %561 : vector<8x32xf32>
    %564 = arith.divf %562, %563 : vector<8x32xf32>
    %565 = vector.extract_strided_slice %558 {offsets = [0, 32], sizes = [8, 32], strides = [1, 1]} : vector<8x128xf32> to vector<8x32xf32>
    %566 = arith.negf %565 : vector<8x32xf32>
    %567 = math.exp %566 : vector<8x32xf32>
    %cst_174 = arith.constant 1.000000e+00 : f32
    %568 = vector.broadcast %cst_174 : f32 to vector<8x32xf32>
    %569 = arith.addf %568, %567 : vector<8x32xf32>
    %570 = arith.divf %568, %569 : vector<8x32xf32>
    %571 = vector.extract_strided_slice %558 {offsets = [0, 64], sizes = [8, 32], strides = [1, 1]} : vector<8x128xf32> to vector<8x32xf32>
    %572 = math.tanh %571 : vector<8x32xf32>
    %573 = vector.extract_strided_slice %558 {offsets = [0, 96], sizes = [8, 32], strides = [1, 1]} : vector<8x128xf32> to vector<8x32xf32>
    %574 = arith.negf %573 : vector<8x32xf32>
    %575 = math.exp %574 : vector<8x32xf32>
    %cst_175 = arith.constant 1.000000e+00 : f32
    %576 = vector.broadcast %cst_175 : f32 to vector<8x32xf32>
    %577 = arith.addf %576, %575 : vector<8x32xf32>
    %578 = arith.divf %576, %577 : vector<8x32xf32>
    %579 = arith.mulf %570, %553 : vector<8x32xf32>
    %580 = arith.mulf %564, %572 : vector<8x32xf32>
    %581 = arith.addf %579, %580 : vector<8x32xf32>
    %582 = math.tanh %581 : vector<8x32xf32>
    %583 = arith.mulf %578, %582 : vector<8x32xf32>
    %584 = arith.index_cast %554 : i32 to index
    %c0_176 = arith.constant 0 : index
    %585 = vector.load %arg11[%584, %c0_176] : memref<64x32xf32, #tpu.memory_space<vmem>>, vector<8x32xf32>
    tpu.vector_store %arg11[%584, %c0_176], %583 {strides = array<i32>} : memref<64x32xf32, #tpu.memory_space<vmem>>, vector<8x32xf32>,
    %c1_i32_177 = arith.constant 1 : i32
    %c8_i32_178 = arith.constant 8 : i32
    %586 = arith.muli %c1_i32_177, %c8_i32_178 : i32
    %587 = arith.index_cast %586 : i32 to index
    %c0_179 = arith.constant 0 : index
    %588 = vector.load %arg14[%587, %c0_179] : memref<64x128xf32, #tpu.memory_space<vmem>>, vector<8x128xf32>
    %cst_180 = arith.constant dense<0.000000e+00> : vector<8x128xf32>
    %589 = tpu.matmul %583, %551, %cst_180 {dimension_numbers = #tpu.dot_dimension_numbers<[1], [0], [0], [1], [0, 0, 1, 1], [], []>} : vector<8x32xf32>, vector<32x128xf32>, vector<8x128xf32> -> vector<8x128xf32>
    %590 = arith.addf %588, %589 : vector<8x128xf32>
    %591 = vector.extract_strided_slice %590 {offsets = [0, 0], sizes = [8, 32], strides = [1, 1]} : vector<8x128xf32> to vector<8x32xf32>
    %592 = arith.negf %591 : vector<8x32xf32>
    %593 = math.exp %592 : vector<8x32xf32>
    %cst_181 = arith.constant 1.000000e+00 : f32
    %594 = vector.broadcast %cst_181 : f32 to vector<8x32xf32>
    %595 = arith.addf %594, %593 : vector<8x32xf32>
    %596 = arith.divf %594, %595 : vector<8x32xf32>
    %597 = vector.extract_strided_slice %590 {offsets = [0, 32], sizes = [8, 32], strides = [1, 1]} : vector<8x128xf32> to vector<8x32xf32>
    %598 = arith.negf %597 : vector<8x32xf32>
    %599 = math.exp %598 : vector<8x32xf32>
    %cst_182 = arith.constant 1.000000e+00 : f32
    %600 = vector.broadcast %cst_182 : f32 to vector<8x32xf32>
    %601 = arith.addf %600, %599 : vector<8x32xf32>
    %602 = arith.divf %600, %601 : vector<8x32xf32>
    %603 = vector.extract_strided_slice %590 {offsets = [0, 64], sizes = [8, 32], strides = [1, 1]} : vector<8x128xf32> to vector<8x32xf32>
    %604 = math.tanh %603 : vector<8x32xf32>
    %605 = vector.extract_strided_slice %590 {offsets = [0, 96], sizes = [8, 32], strides = [1, 1]} : vector<8x128xf32> to vector<8x32xf32>
    %606 = arith.negf %605 : vector<8x32xf32>
    %607 = math.exp %606 : vector<8x32xf32>
    %cst_183 = arith.constant 1.000000e+00 : f32
    %608 = vector.broadcast %cst_183 : f32 to vector<8x32xf32>
    %609 = arith.addf %608, %607 : vector<8x32xf32>
    %610 = arith.divf %608, %609 : vector<8x32xf32>
    %611 = arith.mulf %602, %581 : vector<8x32xf32>
    %612 = arith.mulf %596, %604 : vector<8x32xf32>
    %613 = arith.addf %611, %612 : vector<8x32xf32>
    %614 = math.tanh %613 : vector<8x32xf32>
    %615 = arith.mulf %610, %614 : vector<8x32xf32>
    %616 = arith.index_cast %586 : i32 to index
    %c0_184 = arith.constant 0 : index
    %617 = vector.load %arg11[%616, %c0_184] : memref<64x32xf32, #tpu.memory_space<vmem>>, vector<8x32xf32>
    tpu.vector_store %arg11[%616, %c0_184], %615 {strides = array<i32>} : memref<64x32xf32, #tpu.memory_space<vmem>>, vector<8x32xf32>,
    %c2_i32_185 = arith.constant 2 : i32
    %c8_i32_186 = arith.constant 8 : i32
    %618 = arith.muli %c2_i32_185, %c8_i32_186 : i32
    %619 = arith.index_cast %618 : i32 to index
    %c0_187 = arith.constant 0 : index
    %620 = vector.load %arg14[%619, %c0_187] : memref<64x128xf32, #tpu.memory_space<vmem>>, vector<8x128xf32>
    %cst_188 = arith.constant dense<0.000000e+00> : vector<8x128xf32>
    %621 = tpu.matmul %615, %551, %cst_188 {dimension_numbers = #tpu.dot_dimension_numbers<[1], [0], [0], [1], [0, 0, 1, 1], [], []>} : vector<8x32xf32>, vector<32x128xf32>, vector<8x128xf32> -> vector<8x128xf32>
    %622 = arith.addf %620, %621 : vector<8x128xf32>
    %623 = vector.extract_strided_slice %622 {offsets = [0, 0], sizes = [8, 32], strides = [1, 1]} : vector<8x128xf32> to vector<8x32xf32>
    %624 = arith.negf %623 : vector<8x32xf32>
    %625 = math.exp %624 : vector<8x32xf32>
    %cst_189 = arith.constant 1.000000e+00 : f32
    %626 = vector.broadcast %cst_189 : f32 to vector<8x32xf32>
    %627 = arith.addf %626, %625 : vector<8x32xf32>
    %628 = arith.divf %626, %627 : vector<8x32xf32>
    %629 = vector.extract_strided_slice %622 {offsets = [0, 32], sizes = [8, 32], strides = [1, 1]} : vector<8x128xf32> to vector<8x32xf32>
    %630 = arith.negf %629 : vector<8x32xf32>
    %631 = math.exp %630 : vector<8x32xf32>
    %cst_190 = arith.constant 1.000000e+00 : f32
    %632 = vector.broadcast %cst_190 : f32 to vector<8x32xf32>
    %633 = arith.addf %632, %631 : vector<8x32xf32>
    %634 = arith.divf %632, %633 : vector<8x32xf32>
    %635 = vector.extract_strided_slice %622 {offsets = [0, 64], sizes = [8, 32], strides = [1, 1]} : vector<8x128xf32> to vector<8x32xf32>
    %636 = math.tanh %635 : vector<8x32xf32>
    %637 = vector.extract_strided_slice %622 {offsets = [0, 96], sizes = [8, 32], strides = [1, 1]} : vector<8x128xf32> to vector<8x32xf32>
    %638 = arith.negf %637 : vector<8x32xf32>
    %639 = math.exp %638 : vector<8x32xf32>
    %cst_191 = arith.constant 1.000000e+00 : f32
    %640 = vector.broadcast %cst_191 : f32 to vector<8x32xf32>
    %641 = arith.addf %640, %639 : vector<8x32xf32>
    %642 = arith.divf %640, %641 : vector<8x32xf32>
    %643 = arith.mulf %634, %613 : vector<8x32xf32>
    %644 = arith.mulf %628, %636 : vector<8x32xf32>
    %645 = arith.addf %643, %644 : vector<8x32xf32>
    %646 = math.tanh %645 : vector<8x32xf32>
    %647 = arith.mulf %642, %646 : vector<8x32xf32>
    %648 = arith.index_cast %618 : i32 to index
    %c0_192 = arith.constant 0 : index
    %649 = vector.load %arg11[%648, %c0_192] : memref<64x32xf32, #tpu.memory_space<vmem>>, vector<8x32xf32>
    tpu.vector_store %arg11[%648, %c0_192], %647 {strides = array<i32>} : memref<64x32xf32, #tpu.memory_space<vmem>>, vector<8x32xf32>,
    %c3_i32_193 = arith.constant 3 : i32
    %c8_i32_194 = arith.constant 8 : i32
    %650 = arith.muli %c3_i32_193, %c8_i32_194 : i32
    %651 = arith.index_cast %650 : i32 to index
    %c0_195 = arith.constant 0 : index
    %652 = vector.load %arg14[%651, %c0_195] : memref<64x128xf32, #tpu.memory_space<vmem>>, vector<8x128xf32>
    %cst_196 = arith.constant dense<0.000000e+00> : vector<8x128xf32>
    %653 = tpu.matmul %647, %551, %cst_196 {dimension_numbers = #tpu.dot_dimension_numbers<[1], [0], [0], [1], [0, 0, 1, 1], [], []>} : vector<8x32xf32>, vector<32x128xf32>, vector<8x128xf32> -> vector<8x128xf32>
    %654 = arith.addf %652, %653 : vector<8x128xf32>
    %655 = vector.extract_strided_slice %654 {offsets = [0, 0], sizes = [8, 32], strides = [1, 1]} : vector<8x128xf32> to vector<8x32xf32>
    %656 = arith.negf %655 : vector<8x32xf32>
    %657 = math.exp %656 : vector<8x32xf32>
    %cst_197 = arith.constant 1.000000e+00 : f32
    %658 = vector.broadcast %cst_197 : f32 to vector<8x32xf32>
    %659 = arith.addf %658, %657 : vector<8x32xf32>
    %660 = arith.divf %658, %659 : vector<8x32xf32>
    %661 = vector.extract_strided_slice %654 {offsets = [0, 32], sizes = [8, 32], strides = [1, 1]} : vector<8x128xf32> to vector<8x32xf32>
    %662 = arith.negf %661 : vector<8x32xf32>
    %663 = math.exp %662 : vector<8x32xf32>
    %cst_198 = arith.constant 1.000000e+00 : f32
    %664 = vector.broadcast %cst_198 : f32 to vector<8x32xf32>
    %665 = arith.addf %664, %663 : vector<8x32xf32>
    %666 = arith.divf %664, %665 : vector<8x32xf32>
    %667 = vector.extract_strided_slice %654 {offsets = [0, 64], sizes = [8, 32], strides = [1, 1]} : vector<8x128xf32> to vector<8x32xf32>
    %668 = math.tanh %667 : vector<8x32xf32>
    %669 = vector.extract_strided_slice %654 {offsets = [0, 96], sizes = [8, 32], strides = [1, 1]} : vector<8x128xf32> to vector<8x32xf32>
    %670 = arith.negf %669 : vector<8x32xf32>
    %671 = math.exp %670 : vector<8x32xf32>
    %cst_199 = arith.constant 1.000000e+00 : f32
    %672 = vector.broadcast %cst_199 : f32 to vector<8x32xf32>
    %673 = arith.addf %672, %671 : vector<8x32xf32>
    %674 = arith.divf %672, %673 : vector<8x32xf32>
    %675 = arith.mulf %666, %645 : vector<8x32xf32>
    %676 = arith.mulf %660, %668 : vector<8x32xf32>
    %677 = arith.addf %675, %676 : vector<8x32xf32>
    %678 = math.tanh %677 : vector<8x32xf32>
    %679 = arith.mulf %674, %678 : vector<8x32xf32>
    %680 = arith.index_cast %650 : i32 to index
    %c0_200 = arith.constant 0 : index
    %681 = vector.load %arg11[%680, %c0_200] : memref<64x32xf32, #tpu.memory_space<vmem>>, vector<8x32xf32>
    tpu.vector_store %arg11[%680, %c0_200], %679 {strides = array<i32>} : memref<64x32xf32, #tpu.memory_space<vmem>>, vector<8x32xf32>,
    %c4_i32_201 = arith.constant 4 : i32
    %c8_i32_202 = arith.constant 8 : i32
    %682 = arith.muli %c4_i32_201, %c8_i32_202 : i32
    %683 = arith.index_cast %682 : i32 to index
    %c0_203 = arith.constant 0 : index
    %684 = vector.load %arg14[%683, %c0_203] : memref<64x128xf32, #tpu.memory_space<vmem>>, vector<8x128xf32>
    %cst_204 = arith.constant dense<0.000000e+00> : vector<8x128xf32>
    %685 = tpu.matmul %679, %551, %cst_204 {dimension_numbers = #tpu.dot_dimension_numbers<[1], [0], [0], [1], [0, 0, 1, 1], [], []>} : vector<8x32xf32>, vector<32x128xf32>, vector<8x128xf32> -> vector<8x128xf32>
    %686 = arith.addf %684, %685 : vector<8x128xf32>
    %687 = vector.extract_strided_slice %686 {offsets = [0, 0], sizes = [8, 32], strides = [1, 1]} : vector<8x128xf32> to vector<8x32xf32>
    %688 = arith.negf %687 : vector<8x32xf32>
    %689 = math.exp %688 : vector<8x32xf32>
    %cst_205 = arith.constant 1.000000e+00 : f32
    %690 = vector.broadcast %cst_205 : f32 to vector<8x32xf32>
    %691 = arith.addf %690, %689 : vector<8x32xf32>
    %692 = arith.divf %690, %691 : vector<8x32xf32>
    %693 = vector.extract_strided_slice %686 {offsets = [0, 32], sizes = [8, 32], strides = [1, 1]} : vector<8x128xf32> to vector<8x32xf32>
    %694 = arith.negf %693 : vector<8x32xf32>
    %695 = math.exp %694 : vector<8x32xf32>
    %cst_206 = arith.constant 1.000000e+00 : f32
    %696 = vector.broadcast %cst_206 : f32 to vector<8x32xf32>
    %697 = arith.addf %696, %695 : vector<8x32xf32>
    %698 = arith.divf %696, %697 : vector<8x32xf32>
    %699 = vector.extract_strided_slice %686 {offsets = [0, 64], sizes = [8, 32], strides = [1, 1]} : vector<8x128xf32> to vector<8x32xf32>
    %700 = math.tanh %699 : vector<8x32xf32>
    %701 = vector.extract_strided_slice %686 {offsets = [0, 96], sizes = [8, 32], strides = [1, 1]} : vector<8x128xf32> to vector<8x32xf32>
    %702 = arith.negf %701 : vector<8x32xf32>
    %703 = math.exp %702 : vector<8x32xf32>
    %cst_207 = arith.constant 1.000000e+00 : f32
    %704 = vector.broadcast %cst_207 : f32 to vector<8x32xf32>
    %705 = arith.addf %704, %703 : vector<8x32xf32>
    %706 = arith.divf %704, %705 : vector<8x32xf32>
    %707 = arith.mulf %698, %677 : vector<8x32xf32>
    %708 = arith.mulf %692, %700 : vector<8x32xf32>
    %709 = arith.addf %707, %708 : vector<8x32xf32>
    %710 = math.tanh %709 : vector<8x32xf32>
    %711 = arith.mulf %706, %710 : vector<8x32xf32>
    %712 = arith.index_cast %682 : i32 to index
    %c0_208 = arith.constant 0 : index
    %713 = vector.load %arg11[%712, %c0_208] : memref<64x32xf32, #tpu.memory_space<vmem>>, vector<8x32xf32>
    tpu.vector_store %arg11[%712, %c0_208], %711 {strides = array<i32>} : memref<64x32xf32, #tpu.memory_space<vmem>>, vector<8x32xf32>,
    %c5_i32_209 = arith.constant 5 : i32
    %c8_i32_210 = arith.constant 8 : i32
    %714 = arith.muli %c5_i32_209, %c8_i32_210 : i32
    %715 = arith.index_cast %714 : i32 to index
    %c0_211 = arith.constant 0 : index
    %716 = vector.load %arg14[%715, %c0_211] : memref<64x128xf32, #tpu.memory_space<vmem>>, vector<8x128xf32>
    %cst_212 = arith.constant dense<0.000000e+00> : vector<8x128xf32>
    %717 = tpu.matmul %711, %551, %cst_212 {dimension_numbers = #tpu.dot_dimension_numbers<[1], [0], [0], [1], [0, 0, 1, 1], [], []>} : vector<8x32xf32>, vector<32x128xf32>, vector<8x128xf32> -> vector<8x128xf32>
    %718 = arith.addf %716, %717 : vector<8x128xf32>
    %719 = vector.extract_strided_slice %718 {offsets = [0, 0], sizes = [8, 32], strides = [1, 1]} : vector<8x128xf32> to vector<8x32xf32>
    %720 = arith.negf %719 : vector<8x32xf32>
    %721 = math.exp %720 : vector<8x32xf32>
    %cst_213 = arith.constant 1.000000e+00 : f32
    %722 = vector.broadcast %cst_213 : f32 to vector<8x32xf32>
    %723 = arith.addf %722, %721 : vector<8x32xf32>
    %724 = arith.divf %722, %723 : vector<8x32xf32>
    %725 = vector.extract_strided_slice %718 {offsets = [0, 32], sizes = [8, 32], strides = [1, 1]} : vector<8x128xf32> to vector<8x32xf32>
    %726 = arith.negf %725 : vector<8x32xf32>
    %727 = math.exp %726 : vector<8x32xf32>
    %cst_214 = arith.constant 1.000000e+00 : f32
    %728 = vector.broadcast %cst_214 : f32 to vector<8x32xf32>
    %729 = arith.addf %728, %727 : vector<8x32xf32>
    %730 = arith.divf %728, %729 : vector<8x32xf32>
    %731 = vector.extract_strided_slice %718 {offsets = [0, 64], sizes = [8, 32], strides = [1, 1]} : vector<8x128xf32> to vector<8x32xf32>
    %732 = math.tanh %731 : vector<8x32xf32>
    %733 = vector.extract_strided_slice %718 {offsets = [0, 96], sizes = [8, 32], strides = [1, 1]} : vector<8x128xf32> to vector<8x32xf32>
    %734 = arith.negf %733 : vector<8x32xf32>
    %735 = math.exp %734 : vector<8x32xf32>
    %cst_215 = arith.constant 1.000000e+00 : f32
    %736 = vector.broadcast %cst_215 : f32 to vector<8x32xf32>
    %737 = arith.addf %736, %735 : vector<8x32xf32>
    %738 = arith.divf %736, %737 : vector<8x32xf32>
    %739 = arith.mulf %730, %709 : vector<8x32xf32>
    %740 = arith.mulf %724, %732 : vector<8x32xf32>
    %741 = arith.addf %739, %740 : vector<8x32xf32>
    %742 = math.tanh %741 : vector<8x32xf32>
    %743 = arith.mulf %738, %742 : vector<8x32xf32>
    %744 = arith.index_cast %714 : i32 to index
    %c0_216 = arith.constant 0 : index
    %745 = vector.load %arg11[%744, %c0_216] : memref<64x32xf32, #tpu.memory_space<vmem>>, vector<8x32xf32>
    tpu.vector_store %arg11[%744, %c0_216], %743 {strides = array<i32>} : memref<64x32xf32, #tpu.memory_space<vmem>>, vector<8x32xf32>,
    %c6_i32_217 = arith.constant 6 : i32
    %c8_i32_218 = arith.constant 8 : i32
    %746 = arith.muli %c6_i32_217, %c8_i32_218 : i32
    %747 = arith.index_cast %746 : i32 to index
    %c0_219 = arith.constant 0 : index
    %748 = vector.load %arg14[%747, %c0_219] : memref<64x128xf32, #tpu.memory_space<vmem>>, vector<8x128xf32>
    %cst_220 = arith.constant dense<0.000000e+00> : vector<8x128xf32>
    %749 = tpu.matmul %743, %551, %cst_220 {dimension_numbers = #tpu.dot_dimension_numbers<[1], [0], [0], [1], [0, 0, 1, 1], [], []>} : vector<8x32xf32>, vector<32x128xf32>, vector<8x128xf32> -> vector<8x128xf32>
    %750 = arith.addf %748, %749 : vector<8x128xf32>
    %751 = vector.extract_strided_slice %750 {offsets = [0, 0], sizes = [8, 32], strides = [1, 1]} : vector<8x128xf32> to vector<8x32xf32>
    %752 = arith.negf %751 : vector<8x32xf32>
    %753 = math.exp %752 : vector<8x32xf32>
    %cst_221 = arith.constant 1.000000e+00 : f32
    %754 = vector.broadcast %cst_221 : f32 to vector<8x32xf32>
    %755 = arith.addf %754, %753 : vector<8x32xf32>
    %756 = arith.divf %754, %755 : vector<8x32xf32>
    %757 = vector.extract_strided_slice %750 {offsets = [0, 32], sizes = [8, 32], strides = [1, 1]} : vector<8x128xf32> to vector<8x32xf32>
    %758 = arith.negf %757 : vector<8x32xf32>
    %759 = math.exp %758 : vector<8x32xf32>
    %cst_222 = arith.constant 1.000000e+00 : f32
    %760 = vector.broadcast %cst_222 : f32 to vector<8x32xf32>
    %761 = arith.addf %760, %759 : vector<8x32xf32>
    %762 = arith.divf %760, %761 : vector<8x32xf32>
    %763 = vector.extract_strided_slice %750 {offsets = [0, 64], sizes = [8, 32], strides = [1, 1]} : vector<8x128xf32> to vector<8x32xf32>
    %764 = math.tanh %763 : vector<8x32xf32>
    %765 = vector.extract_strided_slice %750 {offsets = [0, 96], sizes = [8, 32], strides = [1, 1]} : vector<8x128xf32> to vector<8x32xf32>
    %766 = arith.negf %765 : vector<8x32xf32>
    %767 = math.exp %766 : vector<8x32xf32>
    %cst_223 = arith.constant 1.000000e+00 : f32
    %768 = vector.broadcast %cst_223 : f32 to vector<8x32xf32>
    %769 = arith.addf %768, %767 : vector<8x32xf32>
    %770 = arith.divf %768, %769 : vector<8x32xf32>
    %771 = arith.mulf %762, %741 : vector<8x32xf32>
    %772 = arith.mulf %756, %764 : vector<8x32xf32>
    %773 = arith.addf %771, %772 : vector<8x32xf32>
    %774 = math.tanh %773 : vector<8x32xf32>
    %775 = arith.mulf %770, %774 : vector<8x32xf32>
    %776 = arith.index_cast %746 : i32 to index
    %c0_224 = arith.constant 0 : index
    %777 = vector.load %arg11[%776, %c0_224] : memref<64x32xf32, #tpu.memory_space<vmem>>, vector<8x32xf32>
    tpu.vector_store %arg11[%776, %c0_224], %775 {strides = array<i32>} : memref<64x32xf32, #tpu.memory_space<vmem>>, vector<8x32xf32>,
    %c7_i32_225 = arith.constant 7 : i32
    %c8_i32_226 = arith.constant 8 : i32
    %778 = arith.muli %c7_i32_225, %c8_i32_226 : i32
    %779 = arith.index_cast %778 : i32 to index
    %c0_227 = arith.constant 0 : index
    %780 = vector.load %arg14[%779, %c0_227] : memref<64x128xf32, #tpu.memory_space<vmem>>, vector<8x128xf32>
    %cst_228 = arith.constant dense<0.000000e+00> : vector<8x128xf32>
    %781 = tpu.matmul %775, %551, %cst_228 {dimension_numbers = #tpu.dot_dimension_numbers<[1], [0], [0], [1], [0, 0, 1, 1], [], []>} : vector<8x32xf32>, vector<32x128xf32>, vector<8x128xf32> -> vector<8x128xf32>
    %782 = arith.addf %780, %781 : vector<8x128xf32>
    %783 = vector.extract_strided_slice %782 {offsets = [0, 0], sizes = [8, 32], strides = [1, 1]} : vector<8x128xf32> to vector<8x32xf32>
    %784 = arith.negf %783 : vector<8x32xf32>
    %785 = math.exp %784 : vector<8x32xf32>
    %cst_229 = arith.constant 1.000000e+00 : f32
    %786 = vector.broadcast %cst_229 : f32 to vector<8x32xf32>
    %787 = arith.addf %786, %785 : vector<8x32xf32>
    %788 = arith.divf %786, %787 : vector<8x32xf32>
    %789 = vector.extract_strided_slice %782 {offsets = [0, 32], sizes = [8, 32], strides = [1, 1]} : vector<8x128xf32> to vector<8x32xf32>
    %790 = arith.negf %789 : vector<8x32xf32>
    %791 = math.exp %790 : vector<8x32xf32>
    %cst_230 = arith.constant 1.000000e+00 : f32
    %792 = vector.broadcast %cst_230 : f32 to vector<8x32xf32>
    %793 = arith.addf %792, %791 : vector<8x32xf32>
    %794 = arith.divf %792, %793 : vector<8x32xf32>
    %795 = vector.extract_strided_slice %782 {offsets = [0, 64], sizes = [8, 32], strides = [1, 1]} : vector<8x128xf32> to vector<8x32xf32>
    %796 = math.tanh %795 : vector<8x32xf32>
    %797 = vector.extract_strided_slice %782 {offsets = [0, 96], sizes = [8, 32], strides = [1, 1]} : vector<8x128xf32> to vector<8x32xf32>
    %798 = arith.negf %797 : vector<8x32xf32>
    %799 = math.exp %798 : vector<8x32xf32>
    %cst_231 = arith.constant 1.000000e+00 : f32
    %800 = vector.broadcast %cst_231 : f32 to vector<8x32xf32>
    %801 = arith.addf %800, %799 : vector<8x32xf32>
    %802 = arith.divf %800, %801 : vector<8x32xf32>
    %803 = arith.mulf %794, %773 : vector<8x32xf32>
    %804 = arith.mulf %788, %796 : vector<8x32xf32>
    %805 = arith.addf %803, %804 : vector<8x32xf32>
    %806 = math.tanh %805 : vector<8x32xf32>
    %807 = arith.mulf %802, %806 : vector<8x32xf32>
    %808 = arith.index_cast %778 : i32 to index
    %c0_232 = arith.constant 0 : index
    %809 = vector.load %arg11[%808, %c0_232] : memref<64x32xf32, #tpu.memory_space<vmem>>, vector<8x32xf32>
    tpu.vector_store %arg11[%808, %c0_232], %807 {strides = array<i32>} : memref<64x32xf32, #tpu.memory_space<vmem>>, vector<8x32xf32>,
    %c8_i32_233 = arith.constant 8 : i32
    %c2 = arith.constant 2 : index
    %c0_234 = arith.constant 0 : index
    %c0_235 = arith.constant 0 : index
    %810 = vector.load %arg12[%c2, %c0_234, %c0_235] : memref<3x8x32xf32, #tpu.memory_space<vmem>>, vector<1x8x32xf32>
    %811 = vector.shape_cast %810 : vector<1x8x32xf32> to vector<8x32xf32>
    %812 = vector.shape_cast %807 : vector<8x32xf32> to vector<1x8x32xf32>
    tpu.vector_store %arg12[%c2, %c0_234, %c0_235], %812 {strides = array<i32>} : memref<3x8x32xf32, #tpu.memory_space<vmem>>, vector<1x8x32xf32>,
    %c2_236 = arith.constant 2 : index
    %c0_237 = arith.constant 0 : index
    %c0_238 = arith.constant 0 : index
    %813 = vector.load %arg13[%c2_236, %c0_237, %c0_238] : memref<3x8x32xf32, #tpu.memory_space<vmem>>, vector<1x8x32xf32>
    %814 = vector.shape_cast %813 : vector<1x8x32xf32> to vector<8x32xf32>
    %815 = vector.shape_cast %805 : vector<8x32xf32> to vector<1x8x32xf32>
    tpu.vector_store %arg13[%c2_236, %c0_237, %c0_238], %815 {strides = array<i32>} : memref<3x8x32xf32, #tpu.memory_space<vmem>>, vector<1x8x32xf32>,
    return
  }
  func.func @transform_0(%arg0: i32) -> (i32, i32) {
    %c0_i32 = arith.constant 0 : i32
    %c0_i32_0 = arith.constant 0 : i32
    %c0_i32_1 = arith.constant 0 : i32
    return %c0_i32, %c0_i32_0 : i32, i32
  }
  func.func @transform_1(%arg0: i32) -> (i32, i32) {
    %c0_i32 = arith.constant 0 : i32
    %c0_i32_0 = arith.constant 0 : i32
    %c0_i32_1 = arith.constant 0 : i32
    return %c0_i32, %c0_i32_0 : i32, i32
  }
  func.func @transform_2(%arg0: i32) -> (i32, i32) {
    %c0_i32 = arith.constant 0 : i32
    %c0_i32_0 = arith.constant 0 : i32
    %c0_i32_1 = arith.constant 0 : i32
    return %c0_i32, %c0_i32_0 : i32, i32
  }
  func.func @transform_3(%arg0: i32) -> (i32, i32) {
    %c0_i32 = arith.constant 0 : i32
    %c0_i32_0 = arith.constant 0 : i32
    %c0_i32_1 = arith.constant 0 : i32
    return %c0_i32, %c0_i32_0 : i32, i32
  }
  func.func @transform_4(%arg0: i32) -> (i32, i32) {
    %c0_i32 = arith.constant 0 : i32
    %c0_i32_0 = arith.constant 0 : i32
    %c0_i32_1 = arith.constant 0 : i32
    return %c0_i32, %c0_i32_0 : i32, i32
  }
  func.func @transform_5(%arg0: i32) -> (i32, i32) {
    %c0_i32 = arith.constant 0 : i32
    %c0_i32_0 = arith.constant 0 : i32
    %c0_i32_1 = arith.constant 0 : i32
    return %c0_i32, %c0_i32_0 : i32, i32
  }
  func.func @transform_6(%arg0: i32) -> (i32, i32) {
    %c0_i32 = arith.constant 0 : i32
    %c0_i32_0 = arith.constant 0 : i32
    %c0_i32_1 = arith.constant 0 : i32
    return %c0_i32, %c0_i32_0 : i32, i32
  }
  func.func @transform_7(%arg0: i32) -> (i32, i32) {
    %c0_i32 = arith.constant 0 : i32
    %c0_i32_0 = arith.constant 0 : i32
    %c0_i32_1 = arith.constant 0 : i32
    return %c0_i32, %c0_i32_0 : i32, i32
  }
  func.func @transform_8(%arg0: i32) -> (i32, i32) {
    %c0_i32 = arith.constant 0 : i32
    %c0_i32_0 = arith.constant 0 : i32
    %c0_i32_1 = arith.constant 0 : i32
    return %c0_i32, %c0_i32_0 : i32, i32
  }
  func.func @transform_9(%arg0: i32) -> (i32, i32) {
    %c0_i32 = arith.constant 0 : i32
    %c0_i32_0 = arith.constant 0 : i32
    %c0_i32_1 = arith.constant 0 : i32
    return %c0_i32, %c0_i32_0 : i32, i32
  }
  func.func @transform_10(%arg0: i32) -> (i32, i32) {
    %c0_i32 = arith.constant 0 : i32
    %c0_i32_0 = arith.constant 0 : i32
    %c0_i32_1 = arith.constant 0 : i32
    return %c0_i32, %c0_i32_0 : i32, i32
  }
  func.func @transform_11(%arg0: i32) -> (i32, i32, i32) {
    %c0_i32 = arith.constant 0 : i32
    %c0_i32_0 = arith.constant 0 : i32
    %c0_i32_1 = arith.constant 0 : i32
    %c0_i32_2 = arith.constant 0 : i32
    return %c0_i32, %c0_i32_0, %c0_i32_1 : i32, i32, i32
  }
  func.func @transform_12(%arg0: i32) -> (i32, i32, i32) {
    %c0_i32 = arith.constant 0 : i32
    %c0_i32_0 = arith.constant 0 : i32
    %c0_i32_1 = arith.constant 0 : i32
    %c0_i32_2 = arith.constant 0 : i32
    return %c0_i32, %c0_i32_0, %c0_i32_1 : i32, i32, i32
  }
}

</mosaic_0001>

<llo_original>
// kernel: tpu_custom_call.1
$region0: #{tpu_custom_call.1}
  #allocation0 [shape = 'u32[]', space=smem, size = 0x4, offset = 0x4, fixed_abs, tag = 'smem constant byte address 0x4 - core index']
  #allocation1 [shape = 'u32[144,128]{1,0:T(1,128)}', space=vmem, size = 0x12000, scoped, tag = 'internal scratch']
  #allocation2 [shape = 'f32[64,128]{1,0:T(8,128)}', space=vmem, size = 0x8000, scoped, tag = 'scratch operand']
  #allocation3 [shape = 'f32[64,32]{1,0:T(8,128)}', space=vmem, size = 0x8000, scoped, tag = 'scratch operand']
  %s0 = inlined_call_operand.vmem [shape: f32[64,16], index: 0, kind: input, shape index: {}]
  %s1 = inlined_call_operand.hbm [shape: f32[16,128], index: 1, kind: input, shape index: {}]
  %s2 = inlined_call_operand.vmem [shape: f32[32,128], index: 2, kind: input, shape index: {}]
  %s3 = inlined_call_operand.vmem [shape: f32[1,128], index: 3, kind: input, shape index: {}]
  %s4 = inlined_call_operand.vmem [shape: f32[32,128], index: 4, kind: input, shape index: {}]
  %s5 = inlined_call_operand.vmem [shape: f32[32,128], index: 5, kind: input, shape index: {}]
  %s6 = inlined_call_operand.vmem [shape: f32[1,128], index: 6, kind: input, shape index: {}]
  %s7 = inlined_call_operand.hbm [shape: f32[32,128], index: 7, kind: input, shape index: {}]
  %s8 = inlined_call_operand.hbm [shape: f32[32,128], index: 8, kind: input, shape index: {}]
  %s9 = inlined_call_operand.vmem [shape: f32[1,128], index: 9, kind: input, shape index: {}]
  %s10 = inlined_call_operand.vmem [shape: f32[64,32], index: 10, kind: output, shape index: {0}]
  %s11 = inlined_call_operand.hbm [shape: f32[3,8,32], index: 11, kind: output, shape index: {1}]
  %s12 = inlined_call_operand.hbm [shape: f32[3,8,32], index: 12, kind: output, shape index: {2}]
  %13 = xla_tuple %s10, %s11, %s12
  %s14 = sld [smem:[#allocation0]]
  $region78: #{tpu_custom_call.1} parent=0
    _
  %s16 = ssub.s32 1, %s14
  %s17 = scalar_select 0, %s16, %s14
  $region1: #{tpu_custom_call.1} parent=0
    #allocation4 [shape = 'u8[8192]{0}', space=vmem, size = 0x2000, scoped, tag = 'input window, operand 1, single buffered']
    #allocation5 [shape = 's32[1]{0}', space=sflag, size = 0x4, scoped, tag = 'scoped memory for tpu_custom_call.1']
    #allocation6 [shape = 's32[1]{0}', space=sflag, size = 0x4, scoped, tag = 'scoped memory for tpu_custom_call.1']
    #allocation7 [shape = 'u8[16384]{0}', space=vmem, size = 0x4000, scoped, tag = 'input window, operand 7, single buffered']
    #allocation8 [shape = 's32[1]{0}', space=sflag, size = 0x4, scoped, tag = 'scoped memory for tpu_custom_call.1']
    #allocation9 [shape = 'u8[16384]{0}', space=vmem, size = 0x4000, scoped, tag = 'input window, operand 8, single buffered']
    #allocation10 [shape = 'u8[12288]{0}', space=vmem, size = 0x3000, scoped, tag = 'output window, operand 1, single buffered']
    #allocation11 [shape = 'u8[12288]{0}', space=vmem, size = 0x3000, scoped, tag = 'output window, operand 2, single buffered']
    #allocation12 [shape = 's32[1]{0}', space=sflag, size = 0x4, scoped, tag = 'scoped memory for tpu_custom_call.1']
    %18 = vsyncpa [#allocation5], 0
    %19 = vsyncpa [#allocation8], 0
    %20 = vsyncpa [#allocation6], 0
    %21 = vsyncpa [#allocation12], 0
    // Predicated region
    $region2: #{tpu_custom_call.1} parent=1 // pred_check
      _
    $region3: #{tpu_custom_call.1} parent=1 // pred_check_branch
      %23 = sbr.rel (0) target = $region5
    $region4: #{tpu_custom_call.1} parent=1 // pred_region
      _
    $region5: #{tpu_custom_call.1} parent=1 // pred_fallthru
      _
    // Predicated region
    $region6: #{tpu_custom_call.1} parent=1 // pred_check
      _
    $region7: #{tpu_custom_call.1} parent=1 // pred_check_branch
      %25 = sbr.rel (0) target = $region9
    $region8: #{tpu_custom_call.1} parent=1 // pred_region
      %s27 = ssub.s32 256, 256
      %28 = vsyncadd [#allocation5], %s27
      %s29 = sshll.u32 [#allocation4], 4
      %s30 = int_to_ptr.vmem [resolvable:$true] %s29
      %35 = dma.hbm_to_vmem [thread:$0]  %s1, 256, %s30, [#allocation5], 128, 128, 8
    $region9: #{tpu_custom_call.1} parent=1 // pred_fallthru
      _
    // Predicated region
    $region10: #{tpu_custom_call.1} parent=1 // pred_check
      _
    $region11: #{tpu_custom_call.1} parent=1 // pred_check_branch
      %37 = sbr.rel (0) target = $region13
    $region12: #{tpu_custom_call.1} parent=1 // pred_region
      _
    $region13: #{tpu_custom_call.1} parent=1 // pred_fallthru
      _
    // Predicated region
    $region14: #{tpu_custom_call.1} parent=1 // pred_check
      _
    $region15: #{tpu_custom_call.1} parent=1 // pred_check_branch
      %39 = sbr.rel (0) target = $region17
    $region16: #{tpu_custom_call.1} parent=1 // pred_region
      _
    $region17: #{tpu_custom_call.1} parent=1 // pred_fallthru
      _
    // Predicated region
    $region18: #{tpu_custom_call.1} parent=1 // pred_check
      _
    $region19: #{tpu_custom_call.1} parent=1 // pred_check_branch
      %41 = sbr.rel (0) target = $region21
    $region20: #{tpu_custom_call.1} parent=1 // pred_region
      _
    $region21: #{tpu_custom_call.1} parent=1 // pred_fallthru
      _
    // Predicated region
    $region22: #{tpu_custom_call.1} parent=1 // pred_check
      _
    $region23: #{tpu_custom_call.1} parent=1 // pred_check_branch
      %43 = sbr.rel (0) target = $region25
    $region24: #{tpu_custom_call.1} parent=1 // pred_region
      _
    $region25: #{tpu_custom_call.1} parent=1 // pred_fallthru
      _
    // Predicated region
    $region26: #{tpu_custom_call.1} parent=1 // pred_check
      _
    $region27: #{tpu_custom_call.1} parent=1 // pred_check_branch
      %45 = sbr.rel (0) target = $region29
    $region28: #{tpu_custom_call.1} parent=1 // pred_region
      _
    $region29: #{tpu_custom_call.1} parent=1 // pred_fallthru
      _
    // Predicated region
    $region30: #{tpu_custom_call.1} parent=1 // pred_check
      _
    $region31: #{tpu_custom_call.1} parent=1 // pred_check_branch
      %47 = sbr.rel (0) target = $region33
    $region32: #{tpu_custom_call.1} parent=1 // pred_region
      %s49 = ssub.s32 512, 512
      %50 = vsyncadd [#allocation8], %s49
      %s51 = sshll.u32 [#allocation7], 4
      %s52 = int_to_ptr.vmem [resolvable:$true] %s51
      %57 = dma.hbm_to_vmem [thread:$0]  %s7, 512, %s52, [#allocation8], 128, 128, 8
    $region33: #{tpu_custom_call.1} parent=1 // pred_fallthru
      _
    // Predicated region
    $region34: #{tpu_custom_call.1} parent=1 // pred_check
      _
    $region35: #{tpu_custom_call.1} parent=1 // pred_check_branch
      %59 = sbr.rel (0) target = $region37
    $region36: #{tpu_custom_call.1} parent=1 // pred_region
      %s61 = ssub.s32 512, 512
      %62 = vsyncadd [#allocation8], %s61
      %s63 = sshll.u32 [#allocation9], 4
      %s64 = int_to_ptr.vmem [resolvable:$true] %s63
      %69 = dma.hbm_to_vmem [thread:$0]  %s8, 512, %s64, [#allocation8], 128, 128, 8
    $region37: #{tpu_custom_call.1} parent=1 // pred_fallthru
      _
    // Predicated region
    $region38: #{tpu_custom_call.1} parent=1 // pred_check
      _
    $region39: #{tpu_custom_call.1} parent=1 // pred_check_branch
      %71 = sbr.rel (0) target = $region41
    $region40: #{tpu_custom_call.1} parent=1 // pred_region
      _
    $region41: #{tpu_custom_call.1} parent=1 // pred_fallthru
      _
    // Predicated region
    $region42: #{tpu_custom_call.1} parent=1 // pred_check
      _
    $region43: #{tpu_custom_call.1} parent=1 // pred_check_branch
      %73 = sbr.rel (0) target = $region45
    $region44: #{tpu_custom_call.1} parent=1 // pred_region
      %74 = dma.done [#allocation5], 256
    $region45: #{tpu_custom_call.1} parent=1 // pred_fallthru
      _
    // Predicated region
    $region46: #{tpu_custom_call.1} parent=1 // pred_check
      _
    $region47: #{tpu_custom_call.1} parent=1 // pred_check_branch
      %76 = sbr.rel (0) target = $region49
    $region48: #{tpu_custom_call.1} parent=1 // pred_region
      %77 = dma.done [#allocation8], 512
    $region49: #{tpu_custom_call.1} parent=1 // pred_fallthru
      _
    // Predicated region
    $region50: #{tpu_custom_call.1} parent=1 // pred_check
      _
    $region51: #{tpu_custom_call.1} parent=1 // pred_check_branch
      %79 = sbr.rel (0) target = $region53
    $region52: #{tpu_custom_call.1} parent=1 // pred_region
      %80 = dma.done [#allocation8], 512
    $region53: #{tpu_custom_call.1} parent=1 // pred_fallthru
      _
    %v81 = vld [vmem:[%s0] sm:$0xff]
    %v82 = vld [vmem:[%s0 + $0x8] sm:$0xff]
    %v83 = vld [vmem:[%s0 + $0x10] sm:$0xff]
    %v84 = vld [vmem:[%s0 + $0x18] sm:$0xff]
    %v85 = vld [vmem:[%s0 + $0x20] sm:$0xff]
    %v86 = vld [vmem:[%s0 + $0x28] sm:$0xff]
    %v87 = vld [vmem:[%s0 + $0x30] sm:$0xff]
    %v88 = vld [vmem:[%s0 + $0x38] sm:$0xff]
    %v89 = vld [vmem:[#allocation4] sm:$0xff]
    %v90 = vld [vmem:[#allocation4 + $0x8] sm:$0xff]
    %v91 = vld [vmem:[%s3] sm:$0x1]
    %v93 = vlaneseq
    %v94 = vshrl.u32 %v93, 7
    %v95 = vsub.s32 0, %v94
    %v96 = vrot.slane %v91, %v95
    %vm98 = vcmask 130048
    %v100 = vsel %vm98, %v81, 0
    %v103 = vsel %vm98, %v82, 0
    %v106 = vsel %vm98, %v83, 0
    %v109 = vsel %vm98, %v84, 0
    %v112 = vsel %vm98, %v85, 0
    %v115 = vsel %vm98, %v86, 0
    %v118 = vsel %vm98, %v87, 0
    %v121 = vsel %vm98, %v88, 0
    %123 = vmatprep.subr.mxu0 0.0
    %124 = vmatpush1.msra.mxu0 %v89
    %125 = vmatprep.subr.mxu0 0.0
    %126 = vmatpush1.msra.mxu0 %v90
    %127 = vmatprep.subr.mxu0 0.0
    %128 = vmatpush1.msra.mxu0 0.0
    %129 = vmatprep.subr.mxu0 0.0
    %130 = vmatpush1.msra.mxu0 0.0
    %131 = vmatprep.subr.mxu0 0.0
    %132 = vmatpush1.msra.mxu0 0.0
    %133 = vmatprep.subr.mxu0 0.0
    %134 = vmatpush1.msra.mxu0 0.0
    %135 = vmatprep.subr.mxu0 0.0
    %136 = vmatpush1.msra.mxu0 0.0
    %137 = vmatprep.subr.mxu0 0.0
    %138 = vmatpush1.msra.mxu0 0.0
    %139 = vmatprep.subr.mxu0 0.0
    %140 = vmatpush1.msra.mxu0 0.0
    %141 = vmatprep.subr.mxu0 0.0
    %142 = vmatpush1.msra.mxu0 0.0
    %143 = vmatprep.subr.mxu0 0.0
    %144 = vmatpush1.msra.mxu0 0.0
    %145 = vmatprep.subr.mxu0 0.0
    %146 = vmatpush1.msra.mxu0 0.0
    %147 = vmatprep.subr.mxu0 0.0
    %148 = vmatpush1.msra.mxu0 0.0
    %149 = vmatprep.subr.mxu0 0.0
    %150 = vmatpush1.msra.mxu0 0.0
    %151 = vmatprep.subr.mxu0 0.0
    %152 = vmatpush1.msra.mxu0 0.0
    %153 = vmatprep.subr.mxu0 0.0
    %154 = vmatpush1.msra.mxu0 0.0
    %155 = vmatprep.subr.mxu0 0.0
    %156 = vmatpush1.msra.mxu0 0.0
    %157 = vmatprep.subr.mxu0 0.0
    %158 = vmatpush1.msra.mxu0 0.0
    %159 = vmatprep.subr.mxu0 0.0
    %160 = vmatpush1.msra.mxu0 0.0
    %161 = vmatprep.subr.mxu0 0.0
    %162 = vmatpush1.msra.mxu0 0.0
    %163 = vmatprep.subr.mxu0 0.0
    %164 = vmatpush1.msra.mxu0 0.0
    %165 = vmatprep.subr.mxu0 0.0
    %166 = vmatpush1.msra.mxu0 0.0
    %167 = vmatprep.subr.mxu0 0.0
    %168 = vmatpush1.msra.mxu0 0.0
    %169 = vmatprep.subr.mxu0 0.0
    %170 = vmatpush1.msra.mxu0 0.0
    %171 = vmatprep.subr.mxu0 0.0
    %172 = vmatpush1.msra.mxu0 0.0
    %173 = vmatprep.subr.mxu0 0.0
    %174 = vmatpush1.msra.mxu0 0.0
    %175 = vmatprep.subr.mxu0 0.0
    %176 = vmatpush1.msra.mxu0 0.0
    %177 = vmatprep.subr.mxu0 0.0
    %178 = vmatpush1.msra.mxu0 0.0
    %179 = vmatprep.subr.mxu0 0.0
    %180 = vmatpush1.msra.mxu0 0.0
    %181 = vmatprep.subr.mxu0 0.0
    %182 = vmatpush1.msra.mxu0 0.0
    %183 = vmatprep.subr.mxu0 0.0
    %184 = vmatpush1.msra.mxu0 0.0
    %185 = vmatprep.subr.mxu0 0.0
    %186 = vmatpush1.msra.mxu0 0.0
    %187 = vmatprep.mubr.f32.mxu0 0.0
    %188 = vmatmul.mubr.f32.gmra.mrb[0].mxu0 %v100
    %v189 = vpop.f32.mrb[0].mxu0
    %v190 = vadd.f32 %v96, %v189
    %v191 = vpop.f32.mrb[0].mxu0
    %192 = vmatprep.mubr.f32.mxu0 0.0
    %193 = vmatmul.mubr.f32.gmra.mrb[0].mxu0 %v103
    %v194 = vpop.f32.mrb[0].mxu0
    %v195 = vadd.f32 %v96, %v194
    %v196 = vpop.f32.mrb[0].mxu0
    %197 = vmatprep.mubr.f32.mxu0 0.0
    %198 = vmatmul.mubr.f32.gmra.mrb[0].mxu0 %v106
    %v199 = vpop.f32.mrb[0].mxu0
    %v200 = vadd.f32 %v96, %v199
    %v201 = vpop.f32.mrb[0].mxu0
    %202 = vmatprep.mubr.f32.mxu0 0.0
    %203 = vmatmul.mubr.f32.gmra.mrb[0].mxu0 %v109
    %v204 = vpop.f32.mrb[0].mxu0
    %v205 = vadd.f32 %v96, %v204
    %v206 = vpop.f32.mrb[0].mxu0
    %207 = vmatprep.mubr.f32.mxu0 0.0
    %208 = vmatmul.mubr.f32.gmra.mrb[0].mxu0 %v112
    %v209 = vpop.f32.mrb[0].mxu0
    %v210 = vadd.f32 %v96, %v209
    %v211 = vpop.f32.mrb[0].mxu0
    %212 = vmatprep.mubr.f32.mxu0 0.0
    %213 = vmatmul.mubr.f32.gmra.mrb[0].mxu0 %v115
    %v214 = vpop.f32.mrb[0].mxu0
    %v215 = vadd.f32 %v96, %v214
    %v216 = vpop.f32.mrb[0].mxu0
    %217 = vmatprep.mubr.f32.mxu0 0.0
    %218 = vmatmul.mubr.f32.gmra.mrb[0].mxu0 %v118
    %v219 = vpop.f32.mrb[0].mxu0
    %v220 = vadd.f32 %v96, %v219
    %v221 = vpop.f32.mrb[0].mxu0
    %222 = vmatprep.mubr.f32.mxu0 0.0
    %223 = vmatmul.mubr.f32.gmra.mrb[0].mxu0 %v121
    %v224 = vpop.f32.mrb[0].mxu0
    %v225 = vadd.f32 %v96, %v224
    %v226 = vpop.f32.mrb[0].mxu0
    %227 = vdwg.mxu0
    %228 = vst [vmem:[#allocation2] sm:$0xff] %v190
    %229 = vst [vmem:[#allocation2 + $0x8] sm:$0xff] %v195
    %230 = vst [vmem:[#allocation2 + $0x10] sm:$0xff] %v200
    %231 = vst [vmem:[#allocation2 + $0x18] sm:$0xff] %v205
    %232 = vst [vmem:[#allocation2 + $0x20] sm:$0xff] %v210
    %233 = vst [vmem:[#allocation2 + $0x28] sm:$0xff] %v215
    %234 = vst [vmem:[#allocation2 + $0x30] sm:$0xff] %v220
    %235 = vst [vmem:[#allocation2 + $0x38] sm:$0xff] %v225
    %v236 = vld [vmem:[%s2] sm:$0xff]
    %v237 = vld [vmem:[%s2 + $0x8] sm:$0xff]
    %v238 = vld [vmem:[%s2 + $0x10] sm:$0xff]
    %v239 = vld [vmem:[%s2 + $0x18] sm:$0xff]
    %v240 = vld [vmem:[#allocation2] sm:$0xff]
    %vm241 = vcmask 261120
    %v243 = vsel %vm241, 0.0, 0
    %245 = vmatprep.subr.mxu0 0.0
    %246 = vmatpush1.msra.mxu0 %v236
    %247 = vmatprep.subr.mxu0 0.0
    %248 = vmatpush1.msra.mxu0 %v237
    %249 = vmatprep.subr.mxu0 0.0
    %250 = vmatpush1.msra.mxu0 %v238
    %251 = vmatprep.subr.mxu0 0.0
    %252 = vmatpush1.msra.mxu0 %v239
    %253 = vmatprep.subr.mxu0 0.0
    %254 = vmatpush1.msra.mxu0 0.0
    %255 = vmatprep.subr.mxu0 0.0
    %256 = vmatpush1.msra.mxu0 0.0
    %257 = vmatprep.subr.mxu0 0.0
    %258 = vmatpush1.msra.mxu0 0.0
    %259 = vmatprep.subr.mxu0 0.0
    %260 = vmatpush1.msra.mxu0 0.0
    %261 = vmatprep.subr.mxu0 0.0
    %262 = vmatpush1.msra.mxu0 0.0
    %263 = vmatprep.subr.mxu0 0.0
    %264 = vmatpush1.msra.mxu0 0.0
    %265 = vmatprep.subr.mxu0 0.0
    %266 = vmatpush1.msra.mxu0 0.0
    %267 = vmatprep.subr.mxu0 0.0
    %268 = vmatpush1.msra.mxu0 0.0
    %269 = vmatprep.subr.mxu0 0.0
    %270 = vmatpush1.msra.mxu0 0.0
    %271 = vmatprep.subr.mxu0 0.0
    %272 = vmatpush1.msra.mxu0 0.0
    %273 = vmatprep.subr.mxu0 0.0
    %274 = vmatpush1.msra.mxu0 0.0
    %275 = vmatprep.subr.mxu0 0.0
    %276 = vmatpush1.msra.mxu0 0.0
    %277 = vmatprep.subr.mxu0 0.0
    %278 = vmatpush1.msra.mxu0 0.0
    %279 = vmatprep.subr.mxu0 0.0
    %280 = vmatpush1.msra.mxu0 0.0
    %281 = vmatprep.subr.mxu0 0.0
    %282 = vmatpush1.msra.mxu0 0.0
    %283 = vmatprep.subr.mxu0 0.0
    %284 = vmatpush1.msra.mxu0 0.0
    %285 = vmatprep.subr.mxu0 0.0
    %286 = vmatpush1.msra.mxu0 0.0
    %287 = vmatprep.subr.mxu0 0.0
    %288 = vmatpush1.msra.mxu0 0.0
    %289 = vmatprep.subr.mxu0 0.0
    %290 = vmatpush1.msra.mxu0 0.0
    %291 = vmatprep.subr.mxu0 0.0
    %292 = vmatpush1.msra.mxu0 0.0
    %293 = vmatprep.subr.mxu0 0.0
    %294 = vmatpush1.msra.mxu0 0.0
    %295 = vmatprep.subr.mxu0 0.0
    %296 = vmatpush1.msra.mxu0 0.0
    %297 = vmatprep.subr.mxu0 0.0
    %298 = vmatpush1.msra.mxu0 0.0
    %299 = vmatprep.subr.mxu0 0.0
    %300 = vmatpush1.msra.mxu0 0.0
    %301 = vmatprep.subr.mxu0 0.0
    %302 = vmatpush1.msra.mxu0 0.0
    %303 = vmatprep.subr.mxu0 0.0
    %304 = vmatpush1.msra.mxu0 0.0
    %305 = vmatprep.subr.mxu0 0.0
    %306 = vmatpush1.msra.mxu0 0.0
    %307 = vmatprep.subr.mxu0 0.0
    %308 = vmatpush1.msra.mxu0 0.0
    %309 = vmatprep.mubr.f32.mxu0 0.0
    %310 = vmatmul.mubr.f32.gmra.mrb[0].mxu0 %v243
    %v311 = vpop.f32.mrb[0].mxu0
    %v312 = vadd.f32 0.0, %v311
    %v313 = vpop.f32.mrb[0].mxu0
    %314 = vdwg.mxu0
    %v315 = vadd.f32 %v240, %v312
    %v316 = vxor.u32 %v315, 2147483648
    %v317 = vmul.f32 %v316, 1.442695
    %v318 = vpow.pop %v317
    %v319 = vadd.f32 %v318, 1.0
    %v320 = vrcp.pop %v319
    %v321 = vmul.f32 1.0, %v320
    %v322 = vtanh.pop %v315
    %v323 = vmul.f32 %v321, 0.0
    %325 = vrot.lane.b32.xlu0 %v322, 64
    %v326 = vpop.permute.xlu0 %325
    %v328 = vmul.f32 %v321, %v326
    %330 = vrot.lane.b32.xlu0 %v328, 32
    %v331 = vpop.permute.xlu0 %330
    %v333 = vadd.f32 %v323, %v331
    %v334 = vtanh.pop %v333
    %336 = vrot.lane.b32.xlu0 %v334, 64
    %v337 = vpop.permute.xlu0 %336
    %v339 = vmul.f32 %v321, %v337
    %341 = vrot.lane.b32.xlu0 %v339, 32
    %v342 = vpop.permute.xlu0 %341
    %344 = vst.msk [vmem:[#allocation3] sm:$0xff] %vm241, %v342
    %v345 = vld [vmem:[#allocation2 + $0x8] sm:$0xff]
    %v346 = vsel %vm241, %v342, 0
    %348 = vmatprep.subr.mxu0 0.0
    %349 = vmatpush1.msra.mxu0 %v236
    %350 = vmatprep.subr.mxu0 0.0
    %351 = vmatpush1.msra.mxu0 %v237
    %352 = vmatprep.subr.mxu0 0.0
    %353 = vmatpush1.msra.mxu0 %v238
    %354 = vmatprep.subr.mxu0 0.0
    %355 = vmatpush1.msra.mxu0 %v239
    %356 = vmatprep.subr.mxu0 0.0
    %357 = vmatpush1.msra.mxu0 0.0
    %358 = vmatprep.subr.mxu0 0.0
    %359 = vmatpush1.msra.mxu0 0.0
    %360 = vmatprep.subr.mxu0 0.0
    %361 = vmatpush1.msra.mxu0 0.0
    %362 = vmatprep.subr.mxu0 0.0
    %363 = vmatpush1.msra.mxu0 0.0
    %364 = vmatprep.subr.mxu0 0.0
    %365 = vmatpush1.msra.mxu0 0.0
    %366 = vmatprep.subr.mxu0 0.0
    %367 = vmatpush1.msra.mxu0 0.0
    %368 = vmatprep.subr.mxu0 0.0
    %369 = vmatpush1.msra.mxu0 0.0
    %370 = vmatprep.subr.mxu0 0.0
    %371 = vmatpush1.msra.mxu0 0.0
    %372 = vmatprep.subr.mxu0 0.0
    %373 = vmatpush1.msra.mxu0 0.0
    %374 = vmatprep.subr.mxu0 0.0
    %375 = vmatpush1.msra.mxu0 0.0
    %376 = vmatprep.subr.mxu0 0.0
    %377 = vmatpush1.msra.mxu0 0.0
    %378 = vmatprep.subr.mxu0 0.0
    %379 = vmatpush1.msra.mxu0 0.0
    %380 = vmatprep.subr.mxu0 0.0
    %381 = vmatpush1.msra.mxu0 0.0
    %382 = vmatprep.subr.mxu0 0.0
    %383 = vmatpush1.msra.mxu0 0.0
    %384 = vmatprep.subr.mxu0 0.0
    %385 = vmatpush1.msra.mxu0 0.0
    %386 = vmatprep.subr.mxu0 0.0
    %387 = vmatpush1.msra.mxu0 0.0
    %388 = vmatprep.subr.mxu0 0.0
    %389 = vmatpush1.msra.mxu0 0.0
    %390 = vmatprep.subr.mxu0 0.0
    %391 = vmatpush1.msra.mxu0 0.0
    %392 = vmatprep.subr.mxu0 0.0
    %393 = vmatpush1.msra.mxu0 0.0
    %394 = vmatprep.subr.mxu0 0.0
    %395 = vmatpush1.msra.mxu0 0.0
    %396 = vmatprep.subr.mxu0 0.0
    %397 = vmatpush1.msra.mxu0 0.0
    %398 = vmatprep.subr.mxu0 0.0
    %399 = vmatpush1.msra.mxu0 0.0
    %400 = vmatprep.subr.mxu0 0.0
    %401 = vmatpush1.msra.mxu0 0.0
    %402 = vmatprep.subr.mxu0 0.0
    %403 = vmatpush1.msra.mxu0 0.0
    %404 = vmatprep.subr.mxu0 0.0
    %405 = vmatpush1.msra.mxu0 0.0
    %406 = vmatprep.subr.mxu0 0.0
    %407 = vmatpush1.msra.mxu0 0.0
    %408 = vmatprep.subr.mxu0 0.0
    %409 = vmatpush1.msra.mxu0 0.0
    %410 = vmatprep.subr.mxu0 0.0
    %411 = vmatpush1.msra.mxu0 0.0
    %412 = vmatprep.mubr.f32.mxu0 0.0
    %413 = vmatmul.mubr.f32.gmra.mrb[0].mxu0 %v346
    %v414 = vpop.f32.mrb[0].mxu0
    %v415 = vadd.f32 0.0, %v414
    %v416 = vpop.f32.mrb[0].mxu0
    %417 = vdwg.mxu0
    %v418 = vadd.f32 %v345, %v415
    %v419 = vxor.u32 %v418, 2147483648
    %v420 = vmul.f32 %v419, 1.442695
    %v421 = vpow.pop %v420
    %v422 = vadd.f32 %v421, 1.0
    %v423 = vrcp.pop %v422
    %v424 = vmul.f32 1.0, %v423
    %v425 = vtanh.pop %v418
    %v426 = vmul.f32 %v424, %v333
    %428 = vrot.lane.b32.xlu0 %v425, 64
    %v429 = vpop.permute.xlu0 %428
    %v431 = vmul.f32 %v424, %v429
    %433 = vrot.lane.b32.xlu0 %v431, 32
    %v434 = vpop.permute.xlu0 %433
    %v436 = vadd.f32 %v426, %v434
    %v437 = vtanh.pop %v436
    %439 = vrot.lane.b32.xlu0 %v437, 64
    %v440 = vpop.permute.xlu0 %439
    %v442 = vmul.f32 %v424, %v440
    %444 = vrot.lane.b32.xlu0 %v442, 32
    %v445 = vpop.permute.xlu0 %444
    %447 = vst.msk [vmem:[#allocation3 + $0x8] sm:$0xff] %vm241, %v445
    %v448 = vld [vmem:[#allocation2 + $0x10] sm:$0xff]
    %v449 = vsel %vm241, %v445, 0
    %451 = vmatprep.subr.mxu0 0.0
    %452 = vmatpush1.msra.mxu0 %v236
    %453 = vmatprep.subr.mxu0 0.0
    %454 = vmatpush1.msra.mxu0 %v237
    %455 = vmatprep.subr.mxu0 0.0
    %456 = vmatpush1.msra.mxu0 %v238
    %457 = vmatprep.subr.mxu0 0.0
    %458 = vmatpush1.msra.mxu0 %v239
    %459 = vmatprep.subr.mxu0 0.0
    %460 = vmatpush1.msra.mxu0 0.0
    %461 = vmatprep.subr.mxu0 0.0
    %462 = vmatpush1.msra.mxu0 0.0
    %463 = vmatprep.subr.mxu0 0.0
    %464 = vmatpush1.msra.mxu0 0.0
    %465 = vmatprep.subr.mxu0 0.0
    %466 = vmatpush1.msra.mxu0 0.0
    %467 = vmatprep.subr.mxu0 0.0
    %468 = vmatpush1.msra.mxu0 0.0
    %469 = vmatprep.subr.mxu0 0.0
    %470 = vmatpush1.msra.mxu0 0.0
    %471 = vmatprep.subr.mxu0 0.0
    %472 = vmatpush1.msra.mxu0 0.0
    %473 = vmatprep.subr.mxu0 0.0
    %474 = vmatpush1.msra.mxu0 0.0
    %475 = vmatprep.subr.mxu0 0.0
    %476 = vmatpush1.msra.mxu0 0.0
    %477 = vmatprep.subr.mxu0 0.0
    %478 = vmatpush1.msra.mxu0 0.0
    %479 = vmatprep.subr.mxu0 0.0
    %480 = vmatpush1.msra.mxu0 0.0
    %481 = vmatprep.subr.mxu0 0.0
    %482 = vmatpush1.msra.mxu0 0.0
    %483 = vmatprep.subr.mxu0 0.0
    %484 = vmatpush1.msra.mxu0 0.0
    %485 = vmatprep.subr.mxu0 0.0
    %486 = vmatpush1.msra.mxu0 0.0
    %487 = vmatprep.subr.mxu0 0.0
    %488 = vmatpush1.msra.mxu0 0.0
    %489 = vmatprep.subr.mxu0 0.0
    %490 = vmatpush1.msra.mxu0 0.0
    %491 = vmatprep.subr.mxu0 0.0
    %492 = vmatpush1.msra.mxu0 0.0
    %493 = vmatprep.subr.mxu0 0.0
    %494 = vmatpush1.msra.mxu0 0.0
    %495 = vmatprep.subr.mxu0 0.0
    %496 = vmatpush1.msra.mxu0 0.0
    %497 = vmatprep.subr.mxu0 0.0
    %498 = vmatpush1.msra.mxu0 0.0
    %499 = vmatprep.subr.mxu0 0.0
    %500 = vmatpush1.msra.mxu0 0.0
    %501 = vmatprep.subr.mxu0 0.0
    %502 = vmatpush1.msra.mxu0 0.0
    %503 = vmatprep.subr.mxu0 0.0
    %504 = vmatpush1.msra.mxu0 0.0
    %505 = vmatprep.subr.mxu0 0.0
    %506 = vmatpush1.msra.mxu0 0.0
    %507 = vmatprep.subr.mxu0 0.0
    %508 = vmatpush1.msra.mxu0 0.0
    %509 = vmatprep.subr.mxu0 0.0
    %510 = vmatpush1.msra.mxu0 0.0
    %511 = vmatprep.subr.mxu0 0.0
    %512 = vmatpush1.msra.mxu0 0.0
    %513 = vmatprep.subr.mxu0 0.0
    %514 = vmatpush1.msra.mxu0 0.0
    %515 = vmatprep.mubr.f32.mxu0 0.0
    %516 = vmatmul.mubr.f32.gmra.mrb[0].mxu0 %v449
    %v517 = vpop.f32.mrb[0].mxu0
    %v518 = vadd.f32 0.0, %v517
    %v519 = vpop.f32.mrb[0].mxu0
    %520 = vdwg.mxu0
    %v521 = vadd.f32 %v448, %v518
    %v522 = vxor.u32 %v521, 2147483648
    %v523 = vmul.f32 %v522, 1.442695
    %v524 = vpow.pop %v523
    %v525 = vadd.f32 %v524, 1.0
    %v526 = vrcp.pop %v525
    %v527 = vmul.f32 1.0, %v526
    %v528 = vtanh.pop %v521
    %v529 = vmul.f32 %v527, %v436
    %531 = vrot.lane.b32.xlu0 %v528, 64
    %v532 = vpop.permute.xlu0 %531
    %v534 = vmul.f32 %v527, %v532
    %536 = vrot.lane.b32.xlu0 %v534, 32
    %v537 = vpop.permute.xlu0 %536
    %v539 = vadd.f32 %v529, %v537
    %v540 = vtanh.pop %v539
    %542 = vrot.lane.b32.xlu0 %v540, 64
    %v543 = vpop.permute.xlu0 %542
    %v545 = vmul.f32 %v527, %v543
    %547 = vrot.lane.b32.xlu0 %v545, 32
    %v548 = vpop.permute.xlu0 %547
    %550 = vst.msk [vmem:[#allocation3 + $0x10] sm:$0xff] %vm241, %v548
    %v551 = vld [vmem:[#allocation2 + $0x18] sm:$0xff]
    %v552 = vsel %vm241, %v548, 0
    %554 = vmatprep.subr.mxu0 0.0
    %555 = vmatpush1.msra.mxu0 %v236
    %556 = vmatprep.subr.mxu0 0.0
    %557 = vmatpush1.msra.mxu0 %v237
    %558 = vmatprep.subr.mxu0 0.0
    %559 = vmatpush1.msra.mxu0 %v238
    %560 = vmatprep.subr.mxu0 0.0
    %561 = vmatpush1.msra.mxu0 %v239
    %562 = vmatprep.subr.mxu0 0.0
    %563 = vmatpush1.msra.mxu0 0.0
    %564 = vmatprep.subr.mxu0 0.0
    %565 = vmatpush1.msra.mxu0 0.0
    %566 = vmatprep.subr.mxu0 0.0
    %567 = vmatpush1.msra.mxu0 0.0
    %568 = vmatprep.subr.mxu0 0.0
    %569 = vmatpush1.msra.mxu0 0.0
    %570 = vmatprep.subr.mxu0 0.0
    %571 = vmatpush1.msra.mxu0 0.0
    %572 = vmatprep.subr.mxu0 0.0
    %573 = vmatpush1.msra.mxu0 0.0
    %574 = vmatprep.subr.mxu0 0.0
    %575 = vmatpush1.msra.mxu0 0.0
    %576 = vmatprep.subr.mxu0 0.0
    %577 = vmatpush1.msra.mxu0 0.0
    %578 = vmatprep.subr.mxu0 0.0
    %579 = vmatpush1.msra.mxu0 0.0
    %580 = vmatprep.subr.mxu0 0.0
    %581 = vmatpush1.msra.mxu0 0.0
    %582 = vmatprep.subr.mxu0 0.0
    %583 = vmatpush1.msra.mxu0 0.0
    %584 = vmatprep.subr.mxu0 0.0
    %585 = vmatpush1.msra.mxu0 0.0
    %586 = vmatprep.subr.mxu0 0.0
    %587 = vmatpush1.msra.mxu0 0.0
    %588 = vmatprep.subr.mxu0 0.0
    %589 = vmatpush1.msra.mxu0 0.0
    %590 = vmatprep.subr.mxu0 0.0
    %591 = vmatpush1.msra.mxu0 0.0
    %592 = vmatprep.subr.mxu0 0.0
    %593 = vmatpush1.msra.mxu0 0.0
    %594 = vmatprep.subr.mxu0 0.0
    %595 = vmatpush1.msra.mxu0 0.0
    %596 = vmatprep.subr.mxu0 0.0
    %597 = vmatpush1.msra.mxu0 0.0
    %598 = vmatprep.subr.mxu0 0.0
    %599 = vmatpush1.msra.mxu0 0.0
    %600 = vmatprep.subr.mxu0 0.0
    %601 = vmatpush1.msra.mxu0 0.0
    %602 = vmatprep.subr.mxu0 0.0
    %603 = vmatpush1.msra.mxu0 0.0
    %604 = vmatprep.subr.mxu0 0.0
    %605 = vmatpush1.msra.mxu0 0.0
    %606 = vmatprep.subr.mxu0 0.0
    %607 = vmatpush1.msra.mxu0 0.0
    %608 = vmatprep.subr.mxu0 0.0
    %609 = vmatpush1.msra.mxu0 0.0
    %610 = vmatprep.subr.mxu0 0.0
    %611 = vmatpush1.msra.mxu0 0.0
    %612 = vmatprep.subr.mxu0 0.0
    %613 = vmatpush1.msra.mxu0 0.0
    %614 = vmatprep.subr.mxu0 0.0
    %615 = vmatpush1.msra.mxu0 0.0
    %616 = vmatprep.subr.mxu0 0.0
    %617 = vmatpush1.msra.mxu0 0.0
    %618 = vmatprep.mubr.f32.mxu0 0.0
    %619 = vmatmul.mubr.f32.gmra.mrb[0].mxu0 %v552
    %v620 = vpop.f32.mrb[0].mxu0
    %v621 = vadd.f32 0.0, %v620
    %v622 = vpop.f32.mrb[0].mxu0
    %623 = vdwg.mxu0
    %v624 = vadd.f32 %v551, %v621
    %v625 = vxor.u32 %v624, 2147483648
    %v626 = vmul.f32 %v625, 1.442695
    %v627 = vpow.pop %v626
    %v628 = vadd.f32 %v627, 1.0
    %v629 = vrcp.pop %v628
    %v630 = vmul.f32 1.0, %v629
    %v631 = vtanh.pop %v624
    %v632 = vmul.f32 %v630, %v539
    %634 = vrot.lane.b32.xlu0 %v631, 64
    %v635 = vpop.permute.xlu0 %634
    %v637 = vmul.f32 %v630, %v635
    %639 = vrot.lane.b32.xlu0 %v637, 32
    %v640 = vpop.permute.xlu0 %639
    %v642 = vadd.f32 %v632, %v640
    %v643 = vtanh.pop %v642
    %645 = vrot.lane.b32.xlu0 %v643, 64
    %v646 = vpop.permute.xlu0 %645
    %v648 = vmul.f32 %v630, %v646
    %650 = vrot.lane.b32.xlu0 %v648, 32
    %v651 = vpop.permute.xlu0 %650
    %653 = vst.msk [vmem:[#allocation3 + $0x18] sm:$0xff] %vm241, %v651
    %v654 = vld [vmem:[#allocation2 + $0x20] sm:$0xff]
    %v655 = vsel %vm241, %v651, 0
    %657 = vmatprep.subr.mxu0 0.0
    %658 = vmatpush1.msra.mxu0 %v236
    %659 = vmatprep.subr.mxu0 0.0
    %660 = vmatpush1.msra.mxu0 %v237
    %661 = vmatprep.subr.mxu0 0.0
    %662 = vmatpush1.msra.mxu0 %v238
    %663 = vmatprep.subr.mxu0 0.0
    %664 = vmatpush1.msra.mxu0 %v239
    %665 = vmatprep.subr.mxu0 0.0
    %666 = vmatpush1.msra.mxu0 0.0
    %667 = vmatprep.subr.mxu0 0.0
    %668 = vmatpush1.msra.mxu0 0.0
    %669 = vmatprep.subr.mxu0 0.0
    %670 = vmatpush1.msra.mxu0 0.0
    %671 = vmatprep.subr.mxu0 0.0
    %672 = vmatpush1.msra.mxu0 0.0
    %673 = vmatprep.subr.mxu0 0.0
    %674 = vmatpush1.msra.mxu0 0.0
    %675 = vmatprep.subr.mxu0 0.0
    %676 = vmatpush1.msra.mxu0 0.0
    %677 = vmatprep.subr.mxu0 0.0
    %678 = vmatpush1.msra.mxu0 0.0
    %679 = vmatprep.subr.mxu0 0.0
    %680 = vmatpush1.msra.mxu0 0.0
    %681 = vmatprep.subr.mxu0 0.0
    %682 = vmatpush1.msra.mxu0 0.0
    %683 = vmatprep.subr.mxu0 0.0
    %684 = vmatpush1.msra.mxu0 0.0
    %685 = vmatprep.subr.mxu0 0.0
    %686 = vmatpush1.msra.mxu0 0.0
    %687 = vmatprep.subr.mxu0 0.0
    %688 = vmatpush1.msra.mxu0 0.0
    %689 = vmatprep.subr.mxu0 0.0
    %690 = vmatpush1.msra.mxu0 0.0
    %691 = vmatprep.subr.mxu0 0.0
    %692 = vmatpush1.msra.mxu0 0.0
    %693 = vmatprep.subr.mxu0 0.0
    %694 = vmatpush1.msra.mxu0 0.0
    %695 = vmatprep.subr.mxu0 0.0
    %696 = vmatpush1.msra.mxu0 0.0
    %697 = vmatprep.subr.mxu0 0.0
    %698 = vmatpush1.msra.mxu0 0.0
    %699 = vmatprep.subr.mxu0 0.0
    %700 = vmatpush1.msra.mxu0 0.0
    %701 = vmatprep.subr.mxu0 0.0
    %702 = vmatpush1.msra.mxu0 0.0
    %703 = vmatprep.subr.mxu0 0.0
    %704 = vmatpush1.msra.mxu0 0.0
    %705 = vmatprep.subr.mxu0 0.0
    %706 = vmatpush1.msra.mxu0 0.0
    %707 = vmatprep.subr.mxu0 0.0
    %708 = vmatpush1.msra.mxu0 0.0
    %709 = vmatprep.subr.mxu0 0.0
    %710 = vmatpush1.msra.mxu0 0.0
    %711 = vmatprep.subr.mxu0 0.0
    %712 = vmatpush1.msra.mxu0 0.0
    %713 = vmatprep.subr.mxu0 0.0
    %714 = vmatpush1.msra.mxu0 0.0
    %715 = vmatprep.subr.mxu0 0.0
    %716 = vmatpush1.msra.mxu0 0.0
    %717 = vmatprep.subr.mxu0 0.0
    %718 = vmatpush1.msra.mxu0 0.0
    %719 = vmatprep.subr.mxu0 0.0
    %720 = vmatpush1.msra.mxu0 0.0
    %721 = vmatprep.mubr.f32.mxu0 0.0
    %722 = vmatmul.mubr.f32.gmra.mrb[0].mxu0 %v655
    %v723 = vpop.f32.mrb[0].mxu0
    %v724 = vadd.f32 0.0, %v723
    %v725 = vpop.f32.mrb[0].mxu0
    %726 = vdwg.mxu0
    %v727 = vadd.f32 %v654, %v724
    %v728 = vxor.u32 %v727, 2147483648
    %v729 = vmul.f32 %v728, 1.442695
    %v730 = vpow.pop %v729
    %v731 = vadd.f32 %v730, 1.0
    %v732 = vrcp.pop %v731
    %v733 = vmul.f32 1.0, %v732
    %v734 = vtanh.pop %v727
    %v735 = vmul.f32 %v733, %v642
    %737 = vrot.lane.b32.xlu0 %v734, 64
    %v738 = vpop.permute.xlu0 %737
    %v740 = vmul.f32 %v733, %v738
    %742 = vrot.lane.b32.xlu0 %v740, 32
    %v743 = vpop.permute.xlu0 %742
    %v745 = vadd.f32 %v735, %v743
    %v746 = vtanh.pop %v745
    %748 = vrot.lane.b32.xlu0 %v746, 64
    %v749 = vpop.permute.xlu0 %748
    %v751 = vmul.f32 %v733, %v749
    %753 = vrot.lane.b32.xlu0 %v751, 32
    %v754 = vpop.permute.xlu0 %753
    %756 = vst.msk [vmem:[#allocation3 + $0x20] sm:$0xff] %vm241, %v754
    %v757 = vld [vmem:[#allocation2 + $0x28] sm:$0xff]
    %v758 = vsel %vm241, %v754, 0
    %760 = vmatprep.subr.mxu0 0.0
    %761 = vmatpush1.msra.mxu0 %v236
    %762 = vmatprep.subr.mxu0 0.0
    %763 = vmatpush1.msra.mxu0 %v237
    %764 = vmatprep.subr.mxu0 0.0
    %765 = vmatpush1.msra.mxu0 %v238
    %766 = vmatprep.subr.mxu0 0.0
    %767 = vmatpush1.msra.mxu0 %v239
    %768 = vmatprep.subr.mxu0 0.0
    %769 = vmatpush1.msra.mxu0 0.0
    %770 = vmatprep.subr.mxu0 0.0
    %771 = vmatpush1.msra.mxu0 0.0
    %772 = vmatprep.subr.mxu0 0.0
    %773 = vmatpush1.msra.mxu0 0.0
    %774 = vmatprep.subr.mxu0 0.0
    %775 = vmatpush1.msra.mxu0 0.0
    %776 = vmatprep.subr.mxu0 0.0
    %777 = vmatpush1.msra.mxu0 0.0
    %778 = vmatprep.subr.mxu0 0.0
    %779 = vmatpush1.msra.mxu0 0.0
    %780 = vmatprep.subr.mxu0 0.0
    %781 = vmatpush1.msra.mxu0 0.0
    %782 = vmatprep.subr.mxu0 0.0
    %783 = vmatpush1.msra.mxu0 0.0
    %784 = vmatprep.subr.mxu0 0.0
    %785 = vmatpush1.msra.mxu0 0.0
    %786 = vmatprep.subr.mxu0 0.0
    %787 = vmatpush1.msra.mxu0 0.0
    %788 = vmatprep.subr.mxu0 0.0
    %789 = vmatpush1.msra.mxu0 0.0
    %790 = vmatprep.subr.mxu0 0.0
    %791 = vmatpush1.msra.mxu0 0.0
    %792 = vmatprep.subr.mxu0 0.0
    %793 = vmatpush1.msra.mxu0 0.0
    %794 = vmatprep.subr.mxu0 0.0
    %795 = vmatpush1.msra.mxu0 0.0
    %796 = vmatprep.subr.mxu0 0.0
    %797 = vmatpush1.msra.mxu0 0.0
    %798 = vmatprep.subr.mxu0 0.0
    %799 = vmatpush1.msra.mxu0 0.0
    %800 = vmatprep.subr.mxu0 0.0
    %801 = vmatpush1.msra.mxu0 0.0
    %802 = vmatprep.subr.mxu0 0.0
    %803 = vmatpush1.msra.mxu0 0.0
    %804 = vmatprep.subr.mxu0 0.0
    %805 = vmatpush1.msra.mxu0 0.0
    %806 = vmatprep.subr.mxu0 0.0
    %807 = vmatpush1.msra.mxu0 0.0
    %808 = vmatprep.subr.mxu0 0.0
    %809 = vmatpush1.msra.mxu0 0.0
    %810 = vmatprep.subr.mxu0 0.0
    %811 = vmatpush1.msra.mxu0 0.0
    %812 = vmatprep.subr.mxu0 0.0
    %813 = vmatpush1.msra.mxu0 0.0
    %814 = vmatprep.subr.mxu0 0.0
    %815 = vmatpush1.msra.mxu0 0.0
    %816 = vmatprep.subr.mxu0 0.0
    %817 = vmatpush1.msra.mxu0 0.0
    %818 = vmatprep.subr.mxu0 0.0
    %819 = vmatpush1.msra.mxu0 0.0
    %820 = vmatprep.subr.mxu0 0.0
    %821 = vmatpush1.msra.mxu0 0.0
    %822 = vmatprep.subr.mxu0 0.0
    %823 = vmatpush1.msra.mxu0 0.0
    %824 = vmatprep.mubr.f32.mxu0 0.0
    %825 = vmatmul.mubr.f32.gmra.mrb[0].mxu0 %v758
    %v826 = vpop.f32.mrb[0].mxu0
    %v827 = vadd.f32 0.0, %v826
    %v828 = vpop.f32.mrb[0].mxu0
    %829 = vdwg.mxu0
    %v830 = vadd.f32 %v757, %v827
    %v831 = vxor.u32 %v830, 2147483648
    %v832 = vmul.f32 %v831, 1.442695
    %v833 = vpow.pop %v832
    %v834 = vadd.f32 %v833, 1.0
    %v835 = vrcp.pop %v834
    %v836 = vmul.f32 1.0, %v835
    %v837 = vtanh.pop %v830
    %v838 = vmul.f32 %v836, %v745
    %840 = vrot.lane.b32.xlu0 %v837, 64
    %v841 = vpop.permute.xlu0 %840
    %v843 = vmul.f32 %v836, %v841
    %845 = vrot.lane.b32.xlu0 %v843, 32
    %v846 = vpop.permute.xlu0 %845
    %v848 = vadd.f32 %v838, %v846
    %v849 = vtanh.pop %v848
    %851 = vrot.lane.b32.xlu0 %v849, 64
    %v852 = vpop.permute.xlu0 %851
    %v854 = vmul.f32 %v836, %v852
    %856 = vrot.lane.b32.xlu0 %v854, 32
    %v857 = vpop.permute.xlu0 %856
    %859 = vst.msk [vmem:[#allocation3 + $0x28] sm:$0xff] %vm241, %v857
    %v860 = vld [vmem:[#allocation2 + $0x30] sm:$0xff]
    %v861 = vsel %vm241, %v857, 0
    %863 = vmatprep.subr.mxu0 0.0
    %864 = vmatpush1.msra.mxu0 %v236
    %865 = vmatprep.subr.mxu0 0.0
    %866 = vmatpush1.msra.mxu0 %v237
    %867 = vmatprep.subr.mxu0 0.0
    %868 = vmatpush1.msra.mxu0 %v238
    %869 = vmatprep.subr.mxu0 0.0
    %870 = vmatpush1.msra.mxu0 %v239
    %871 = vmatprep.subr.mxu0 0.0
    %872 = vmatpush1.msra.mxu0 0.0
    %873 = vmatprep.subr.mxu0 0.0
    %874 = vmatpush1.msra.mxu0 0.0
    %875 = vmatprep.subr.mxu0 0.0
    %876 = vmatpush1.msra.mxu0 0.0
    %877 = vmatprep.subr.mxu0 0.0
    %878 = vmatpush1.msra.mxu0 0.0
    %879 = vmatprep.subr.mxu0 0.0
    %880 = vmatpush1.msra.mxu0 0.0
    %881 = vmatprep.subr.mxu0 0.0
    %882 = vmatpush1.msra.mxu0 0.0
    %883 = vmatprep.subr.mxu0 0.0
    %884 = vmatpush1.msra.mxu0 0.0
    %885 = vmatprep.subr.mxu0 0.0
    %886 = vmatpush1.msra.mxu0 0.0
    %887 = vmatprep.subr.mxu0 0.0
    %888 = vmatpush1.msra.mxu0 0.0
    %889 = vmatprep.subr.mxu0 0.0
    %890 = vmatpush1.msra.mxu0 0.0
    %891 = vmatprep.subr.mxu0 0.0
    %892 = vmatpush1.msra.mxu0 0.0
    %893 = vmatprep.subr.mxu0 0.0
    %894 = vmatpush1.msra.mxu0 0.0
    %895 = vmatprep.subr.mxu0 0.0
    %896 = vmatpush1.msra.mxu0 0.0
    %897 = vmatprep.subr.mxu0 0.0
    %898 = vmatpush1.msra.mxu0 0.0
    %899 = vmatprep.subr.mxu0 0.0
    %900 = vmatpush1.msra.mxu0 0.0
    %901 = vmatprep.subr.mxu0 0.0
    %902 = vmatpush1.msra.mxu0 0.0
    %903 = vmatprep.subr.mxu0 0.0
    %904 = vmatpush1.msra.mxu0 0.0
    %905 = vmatprep.subr.mxu0 0.0
    %906 = vmatpush1.msra.mxu0 0.0
    %907 = vmatprep.subr.mxu0 0.0
    %908 = vmatpush1.msra.mxu0 0.0
    %909 = vmatprep.subr.mxu0 0.0
    %910 = vmatpush1.msra.mxu0 0.0
    %911 = vmatprep.subr.mxu0 0.0
    %912 = vmatpush1.msra.mxu0 0.0
    %913 = vmatprep.subr.mxu0 0.0
    %914 = vmatpush1.msra.mxu0 0.0
    %915 = vmatprep.subr.mxu0 0.0
    %916 = vmatpush1.msra.mxu0 0.0
    %917 = vmatprep.subr.mxu0 0.0
    %918 = vmatpush1.msra.mxu0 0.0
    %919 = vmatprep.subr.mxu0 0.0
    %920 = vmatpush1.msra.mxu0 0.0
    %921 = vmatprep.subr.mxu0 0.0
    %922 = vmatpush1.msra.mxu0 0.0
    %923 = vmatprep.subr.mxu0 0.0
    %924 = vmatpush1.msra.mxu0 0.0
    %925 = vmatprep.subr.mxu0 0.0
    %926 = vmatpush1.msra.mxu0 0.0
    %927 = vmatprep.mubr.f32.mxu0 0.0
    %928 = vmatmul.mubr.f32.gmra.mrb[0].mxu0 %v861
    %v929 = vpop.f32.mrb[0].mxu0
    %v930 = vadd.f32 0.0, %v929
    %v931 = vpop.f32.mrb[0].mxu0
    %932 = vdwg.mxu0
    %v933 = vadd.f32 %v860, %v930
    %v934 = vxor.u32 %v933, 2147483648
    %v935 = vmul.f32 %v934, 1.442695
    %v936 = vpow.pop %v935
    %v937 = vadd.f32 %v936, 1.0
    %v938 = vrcp.pop %v937
    %v939 = vmul.f32 1.0, %v938
    %v940 = vtanh.pop %v933
    %v941 = vmul.f32 %v939, %v848
    %943 = vrot.lane.b32.xlu0 %v940, 64
    %v944 = vpop.permute.xlu0 %943
    %v946 = vmul.f32 %v939, %v944
    %948 = vrot.lane.b32.xlu0 %v946, 32
    %v949 = vpop.permute.xlu0 %948
    %v951 = vadd.f32 %v941, %v949
    %v952 = vtanh.pop %v951
    %954 = vrot.lane.b32.xlu0 %v952, 64
    %v955 = vpop.permute.xlu0 %954
    %v957 = vmul.f32 %v939, %v955
    %959 = vrot.lane.b32.xlu0 %v957, 32
    %v960 = vpop.permute.xlu0 %959
    %962 = vst.msk [vmem:[#allocation3 + $0x30] sm:$0xff] %vm241, %v960
    %v963 = vld [vmem:[#allocation2 + $0x38] sm:$0xff]
    %v964 = vsel %vm241, %v960, 0
    %966 = vmatprep.subr.mxu0 0.0
    %967 = vmatpush1.msra.mxu0 %v236
    %968 = vmatprep.subr.mxu0 0.0
    %969 = vmatpush1.msra.mxu0 %v237
    %970 = vmatprep.subr.mxu0 0.0
    %971 = vmatpush1.msra.mxu0 %v238
    %972 = vmatprep.subr.mxu0 0.0
    %973 = vmatpush1.msra.mxu0 %v239
    %974 = vmatprep.subr.mxu0 0.0
    %975 = vmatpush1.msra.mxu0 0.0
    %976 = vmatprep.subr.mxu0 0.0
    %977 = vmatpush1.msra.mxu0 0.0
    %978 = vmatprep.subr.mxu0 0.0
    %979 = vmatpush1.msra.mxu0 0.0
    %980 = vmatprep.subr.mxu0 0.0
    %981 = vmatpush1.msra.mxu0 0.0
    %982 = vmatprep.subr.mxu0 0.0
    %983 = vmatpush1.msra.mxu0 0.0
    %984 = vmatprep.subr.mxu0 0.0
    %985 = vmatpush1.msra.mxu0 0.0
    %986 = vmatprep.subr.mxu0 0.0
    %987 = vmatpush1.msra.mxu0 0.0
    %988 = vmatprep.subr.mxu0 0.0
    %989 = vmatpush1.msra.mxu0 0.0
    %990 = vmatprep.subr.mxu0 0.0
    %991 = vmatpush1.msra.mxu0 0.0
    %992 = vmatprep.subr.mxu0 0.0
    %993 = vmatpush1.msra.mxu0 0.0
    %994 = vmatprep.subr.mxu0 0.0
    %995 = vmatpush1.msra.mxu0 0.0
    %996 = vmatprep.subr.mxu0 0.0
    %997 = vmatpush1.msra.mxu0 0.0
    %998 = vmatprep.subr.mxu0 0.0
    %999 = vmatpush1.msra.mxu0 0.0
    %1000 = vmatprep.subr.mxu0 0.0
    %1001 = vmatpush1.msra.mxu0 0.0
    %1002 = vmatprep.subr.mxu0 0.0
    %1003 = vmatpush1.msra.mxu0 0.0
    %1004 = vmatprep.subr.mxu0 0.0
    %1005 = vmatpush1.msra.mxu0 0.0
    %1006 = vmatprep.subr.mxu0 0.0
    %1007 = vmatpush1.msra.mxu0 0.0
    %1008 = vmatprep.subr.mxu0 0.0
    %1009 = vmatpush1.msra.mxu0 0.0
    %1010 = vmatprep.subr.mxu0 0.0
    %1011 = vmatpush1.msra.mxu0 0.0
    %1012 = vmatprep.subr.mxu0 0.0
    %1013 = vmatpush1.msra.mxu0 0.0
    %1014 = vmatprep.subr.mxu0 0.0
    %1015 = vmatpush1.msra.mxu0 0.0
    %1016 = vmatprep.subr.mxu0 0.0
    %1017 = vmatpush1.msra.mxu0 0.0
    %1018 = vmatprep.subr.mxu0 0.0
    %1019 = vmatpush1.msra.mxu0 0.0
    %1020 = vmatprep.subr.mxu0 0.0
    %1021 = vmatpush1.msra.mxu0 0.0
    %1022 = vmatprep.subr.mxu0 0.0
    %1023 = vmatpush1.msra.mxu0 0.0
    %1024 = vmatprep.subr.mxu0 0.0
    %1025 = vmatpush1.msra.mxu0 0.0
    %1026 = vmatprep.subr.mxu0 0.0
    %1027 = vmatpush1.msra.mxu0 0.0
    %1028 = vmatprep.subr.mxu0 0.0
    %1029 = vmatpush1.msra.mxu0 0.0
    %1030 = vmatprep.mubr.f32.mxu0 0.0
    %1031 = vmatmul.mubr.f32.gmra.mrb[0].mxu0 %v964
    %v1032 = vpop.f32.mrb[0].mxu0
    %v1033 = vadd.f32 0.0, %v1032
    %v1034 = vpop.f32.mrb[0].mxu0
    %1035 = vdwg.mxu0
    %v1036 = vadd.f32 %v963, %v1033
    %v1037 = vxor.u32 %v1036, 2147483648
    %v1038 = vmul.f32 %v1037, 1.442695
    %v1039 = vpow.pop %v1038
    %v1040 = vadd.f32 %v1039, 1.0
    %v1041 = vrcp.pop %v1040
    %v1042 = vmul.f32 1.0, %v1041
    %v1043 = vtanh.pop %v1036
    %v1044 = vmul.f32 %v1042, %v951
    %1046 = vrot.lane.b32.xlu0 %v1043, 64
    %v1047 = vpop.permute.xlu0 %1046
    %v1049 = vmul.f32 %v1042, %v1047
    %1051 = vrot.lane.b32.xlu0 %v1049, 32
    %v1052 = vpop.permute.xlu0 %1051
    %v1054 = vadd.f32 %v1044, %v1052
    %v1055 = vtanh.pop %v1054
    %1057 = vrot.lane.b32.xlu0 %v1055, 64
    %v1058 = vpop.permute.xlu0 %1057
    %v1060 = vmul.f32 %v1042, %v1058
    %1062 = vrot.lane.b32.xlu0 %v1060, 32
    %v1063 = vpop.permute.xlu0 %1062
    %1065 = vst.msk [vmem:[#allocation3 + $0x38] sm:$0xff] %vm241, %v1063
    %1066 = vst.msk [vmem:[#allocation10] sm:$0xff] %vm241, %v1063
    %1068 = vrot.lane.b32.xlu0 %v1054, 96
    %v1069 = vpop.permute.xlu0 %1068
    %1071 = vst.msk [vmem:[#allocation11] sm:$0xff] %vm241, %v1069
    %v1072 = vld [vmem:[#allocation3] sm:$0xff]
    %v1073 = vld [vmem:[#allocation3 + $0x8] sm:$0xff]
    %v1074 = vld [vmem:[#allocation3 + $0x10] sm:$0xff]
    %v1075 = vld [vmem:[#allocation3 + $0x18] sm:$0xff]
    %v1076 = vld [vmem:[#allocation3 + $0x20] sm:$0xff]
    %v1077 = vld [vmem:[#allocation3 + $0x28] sm:$0xff]
    %v1078 = vld [vmem:[#allocation3 + $0x30] sm:$0xff]
    %v1079 = vld [vmem:[#allocation3 + $0x38] sm:$0xff]
    %v1080 = vld [vmem:[%s4] sm:$0xff]
    %v1081 = vld [vmem:[%s4 + $0x8] sm:$0xff]
    %v1082 = vld [vmem:[%s4 + $0x10] sm:$0xff]
    %v1083 = vld [vmem:[%s4 + $0x18] sm:$0xff]
    %v1084 = vld [vmem:[%s6] sm:$0x1]
    %v1086 = vlaneseq
    %v1087 = vshrl.u32 %v1086, 7
    %v1088 = vsub.s32 0, %v1087
    %v1089 = vrot.slane %v1084, %v1088
    %v1092 = vsel %vm241, %v1072, 0
    %v1095 = vsel %vm241, %v1073, 0
    %v1098 = vsel %vm241, %v1074, 0
    %v1101 = vsel %vm241, %v1075, 0
    %v1104 = vsel %vm241, %v1076, 0
    %v1107 = vsel %vm241, %v1077, 0
    %v1110 = vsel %vm241, %v1078, 0
    %v1113 = vsel %vm241, %v1079, 0
    %1115 = vmatprep.subr.mxu0 0.0
    %1116 = vmatpush1.msra.mxu0 %v1080
    %1117 = vmatprep.subr.mxu0 0.0
    %1118 = vmatpush1.msra.mxu0 %v1081
    %1119 = vmatprep.subr.mxu0 0.0
    %1120 = vmatpush1.msra.mxu0 %v1082
    %1121 = vmatprep.subr.mxu0 0.0
    %1122 = vmatpush1.msra.mxu0 %v1083
    %1123 = vmatprep.subr.mxu0 0.0
    %1124 = vmatpush1.msra.mxu0 0.0
    %1125 = vmatprep.subr.mxu0 0.0
    %1126 = vmatpush1.msra.mxu0 0.0
    %1127 = vmatprep.subr.mxu0 0.0
    %1128 = vmatpush1.msra.mxu0 0.0
    %1129 = vmatprep.subr.mxu0 0.0
    %1130 = vmatpush1.msra.mxu0 0.0
    %1131 = vmatprep.subr.mxu0 0.0
    %1132 = vmatpush1.msra.mxu0 0.0
    %1133 = vmatprep.subr.mxu0 0.0
    %1134 = vmatpush1.msra.mxu0 0.0
    %1135 = vmatprep.subr.mxu0 0.0
    %1136 = vmatpush1.msra.mxu0 0.0
    %1137 = vmatprep.subr.mxu0 0.0
    %1138 = vmatpush1.msra.mxu0 0.0
    %1139 = vmatprep.subr.mxu0 0.0
    %1140 = vmatpush1.msra.mxu0 0.0
    %1141 = vmatprep.subr.mxu0 0.0
    %1142 = vmatpush1.msra.mxu0 0.0
    %1143 = vmatprep.subr.mxu0 0.0
    %1144 = vmatpush1.msra.mxu0 0.0
    %1145 = vmatprep.subr.mxu0 0.0
    %1146 = vmatpush1.msra.mxu0 0.0
    %1147 = vmatprep.subr.mxu0 0.0
    %1148 = vmatpush1.msra.mxu0 0.0
    %1149 = vmatprep.subr.mxu0 0.0
    %1150 = vmatpush1.msra.mxu0 0.0
    %1151 = vmatprep.subr.mxu0 0.0
    %1152 = vmatpush1.msra.mxu0 0.0
    %1153 = vmatprep.subr.mxu0 0.0
    %1154 = vmatpush1.msra.mxu0 0.0
    %1155 = vmatprep.subr.mxu0 0.0
    %1156 = vmatpush1.msra.mxu0 0.0
    %1157 = vmatprep.subr.mxu0 0.0
    %1158 = vmatpush1.msra.mxu0 0.0
    %1159 = vmatprep.subr.mxu0 0.0
    %1160 = vmatpush1.msra.mxu0 0.0
    %1161 = vmatprep.subr.mxu0 0.0
    %1162 = vmatpush1.msra.mxu0 0.0
    %1163 = vmatprep.subr.mxu0 0.0
    %1164 = vmatpush1.msra.mxu0 0.0
    %1165 = vmatprep.subr.mxu0 0.0
    %1166 = vmatpush1.msra.mxu0 0.0
    %1167 = vmatprep.subr.mxu0 0.0
    %1168 = vmatpush1.msra.mxu0 0.0
    %1169 = vmatprep.subr.mxu0 0.0
    %1170 = vmatpush1.msra.mxu0 0.0
    %1171 = vmatprep.subr.mxu0 0.0
    %1172 = vmatpush1.msra.mxu0 0.0
    %1173 = vmatprep.subr.mxu0 0.0
    %1174 = vmatpush1.msra.mxu0 0.0
    %1175 = vmatprep.subr.mxu0 0.0
    %1176 = vmatpush1.msra.mxu0 0.0
    %1177 = vmatprep.subr.mxu0 0.0
    %1178 = vmatpush1.msra.mxu0 0.0
    %1179 = vmatprep.mubr.f32.mxu0 0.0
    %1180 = vmatmul.mubr.f32.gmra.mrb[0].mxu0 %v1092
    %v1181 = vpop.f32.mrb[0].mxu0
    %v1182 = vadd.f32 %v1089, %v1181
    %v1183 = vpop.f32.mrb[0].mxu0
    %1184 = vmatprep.mubr.f32.mxu0 0.0
    %1185 = vmatmul.mubr.f32.gmra.mrb[0].mxu0 %v1095
    %v1186 = vpop.f32.mrb[0].mxu0
    %v1187 = vadd.f32 %v1089, %v1186
    %v1188 = vpop.f32.mrb[0].mxu0
    %1189 = vmatprep.mubr.f32.mxu0 0.0
    %1190 = vmatmul.mubr.f32.gmra.mrb[0].mxu0 %v1098
    %v1191 = vpop.f32.mrb[0].mxu0
    %v1192 = vadd.f32 %v1089, %v1191
    %v1193 = vpop.f32.mrb[0].mxu0
    %1194 = vmatprep.mubr.f32.mxu0 0.0
    %1195 = vmatmul.mubr.f32.gmra.mrb[0].mxu0 %v1101
    %v1196 = vpop.f32.mrb[0].mxu0
    %v1197 = vadd.f32 %v1089, %v1196
    %v1198 = vpop.f32.mrb[0].mxu0
    %1199 = vmatprep.mubr.f32.mxu0 0.0
    %1200 = vmatmul.mubr.f32.gmra.mrb[0].mxu0 %v1104
    %v1201 = vpop.f32.mrb[0].mxu0
    %v1202 = vadd.f32 %v1089, %v1201
    %v1203 = vpop.f32.mrb[0].mxu0
    %1204 = vmatprep.mubr.f32.mxu0 0.0
    %1205 = vmatmul.mubr.f32.gmra.mrb[0].mxu0 %v1107
    %v1206 = vpop.f32.mrb[0].mxu0
    %v1207 = vadd.f32 %v1089, %v1206
    %v1208 = vpop.f32.mrb[0].mxu0
    %1209 = vmatprep.mubr.f32.mxu0 0.0
    %1210 = vmatmul.mubr.f32.gmra.mrb[0].mxu0 %v1110
    %v1211 = vpop.f32.mrb[0].mxu0
    %v1212 = vadd.f32 %v1089, %v1211
    %v1213 = vpop.f32.mrb[0].mxu0
    %1214 = vmatprep.mubr.f32.mxu0 0.0
    %1215 = vmatmul.mubr.f32.gmra.mrb[0].mxu0 %v1113
    %v1216 = vpop.f32.mrb[0].mxu0
    %v1217 = vadd.f32 %v1089, %v1216
    %v1218 = vpop.f32.mrb[0].mxu0
    %1219 = vdwg.mxu0
    %1220 = vst [vmem:[#allocation2] sm:$0xff] %v1182
    %1221 = vst [vmem:[#allocation2 + $0x8] sm:$0xff] %v1187
    %1222 = vst [vmem:[#allocation2 + $0x10] sm:$0xff] %v1192
    %1223 = vst [vmem:[#allocation2 + $0x18] sm:$0xff] %v1197
    %1224 = vst [vmem:[#allocation2 + $0x20] sm:$0xff] %v1202
    %1225 = vst [vmem:[#allocation2 + $0x28] sm:$0xff] %v1207
    %1226 = vst [vmem:[#allocation2 + $0x30] sm:$0xff] %v1212
    %1227 = vst [vmem:[#allocation2 + $0x38] sm:$0xff] %v1217
    %v1228 = vld [vmem:[%s5] sm:$0xff]
    %v1229 = vld [vmem:[%s5 + $0x8] sm:$0xff]
    %v1230 = vld [vmem:[%s5 + $0x10] sm:$0xff]
    %v1231 = vld [vmem:[%s5 + $0x18] sm:$0xff]
    %v1232 = vld [vmem:[#allocation2] sm:$0xff]
    %1233 = vmatprep.subr.mxu0 0.0
    %1234 = vmatpush1.msra.mxu0 %v1228
    %1235 = vmatprep.subr.mxu0 0.0
    %1236 = vmatpush1.msra.mxu0 %v1229
    %1237 = vmatprep.subr.mxu0 0.0
    %1238 = vmatpush1.msra.mxu0 %v1230
    %1239 = vmatprep.subr.mxu0 0.0
    %1240 = vmatpush1.msra.mxu0 %v1231
    %1241 = vmatprep.subr.mxu0 0.0
    %1242 = vmatpush1.msra.mxu0 0.0
    %1243 = vmatprep.subr.mxu0 0.0
    %1244 = vmatpush1.msra.mxu0 0.0
    %1245 = vmatprep.subr.mxu0 0.0
    %1246 = vmatpush1.msra.mxu0 0.0
    %1247 = vmatprep.subr.mxu0 0.0
    %1248 = vmatpush1.msra.mxu0 0.0
    %1249 = vmatprep.subr.mxu0 0.0
    %1250 = vmatpush1.msra.mxu0 0.0
    %1251 = vmatprep.subr.mxu0 0.0
    %1252 = vmatpush1.msra.mxu0 0.0
    %1253 = vmatprep.subr.mxu0 0.0
    %1254 = vmatpush1.msra.mxu0 0.0
    %1255 = vmatprep.subr.mxu0 0.0
    %1256 = vmatpush1.msra.mxu0 0.0
    %1257 = vmatprep.subr.mxu0 0.0
    %1258 = vmatpush1.msra.mxu0 0.0
    %1259 = vmatprep.subr.mxu0 0.0
    %1260 = vmatpush1.msra.mxu0 0.0
    %1261 = vmatprep.subr.mxu0 0.0
    %1262 = vmatpush1.msra.mxu0 0.0
    %1263 = vmatprep.subr.mxu0 0.0
    %1264 = vmatpush1.msra.mxu0 0.0
    %1265 = vmatprep.subr.mxu0 0.0
    %1266 = vmatpush1.msra.mxu0 0.0
    %1267 = vmatprep.subr.mxu0 0.0
    %1268 = vmatpush1.msra.mxu0 0.0
    %1269 = vmatprep.subr.mxu0 0.0
    %1270 = vmatpush1.msra.mxu0 0.0
    %1271 = vmatprep.subr.mxu0 0.0
    %1272 = vmatpush1.msra.mxu0 0.0
    %1273 = vmatprep.subr.mxu0 0.0
    %1274 = vmatpush1.msra.mxu0 0.0
    %1275 = vmatprep.subr.mxu0 0.0
    %1276 = vmatpush1.msra.mxu0 0.0
    %1277 = vmatprep.subr.mxu0 0.0
    %1278 = vmatpush1.msra.mxu0 0.0
    %1279 = vmatprep.subr.mxu0 0.0
    %1280 = vmatpush1.msra.mxu0 0.0
    %1281 = vmatprep.subr.mxu0 0.0
    %1282 = vmatpush1.msra.mxu0 0.0
    %1283 = vmatprep.subr.mxu0 0.0
    %1284 = vmatpush1.msra.mxu0 0.0
    %1285 = vmatprep.subr.mxu0 0.0
    %1286 = vmatpush1.msra.mxu0 0.0
    %1287 = vmatprep.subr.mxu0 0.0
    %1288 = vmatpush1.msra.mxu0 0.0
    %1289 = vmatprep.subr.mxu0 0.0
    %1290 = vmatpush1.msra.mxu0 0.0
    %1291 = vmatprep.subr.mxu0 0.0
    %1292 = vmatpush1.msra.mxu0 0.0
    %1293 = vmatprep.subr.mxu0 0.0
    %1294 = vmatpush1.msra.mxu0 0.0
    %1295 = vmatprep.subr.mxu0 0.0
    %1296 = vmatpush1.msra.mxu0 0.0
    %1297 = vmatprep.mubr.f32.mxu0 0.0
    %1298 = vmatmul.mubr.f32.gmra.mrb[0].mxu0 %v243
    %v1299 = vpop.f32.mrb[0].mxu0
    %v1300 = vadd.f32 0.0, %v1299
    %v1301 = vpop.f32.mrb[0].mxu0
    %1302 = vdwg.mxu0
    %v1303 = vadd.f32 %v1232, %v1300
    %v1304 = vxor.u32 %v1303, 2147483648
    %v1305 = vmul.f32 %v1304, 1.442695
    %v1306 = vpow.pop %v1305
    %v1307 = vadd.f32 %v1306, 1.0
    %v1308 = vrcp.pop %v1307
    %v1309 = vmul.f32 1.0, %v1308
    %v1310 = vtanh.pop %v1303
    %v1311 = vmul.f32 %v1309, 0.0
    %1313 = vrot.lane.b32.xlu0 %v1310, 64
    %v1314 = vpop.permute.xlu0 %1313
    %v1316 = vmul.f32 %v1309, %v1314
    %1318 = vrot.lane.b32.xlu0 %v1316, 32
    %v1319 = vpop.permute.xlu0 %1318
    %v1321 = vadd.f32 %v1311, %v1319
    %v1322 = vtanh.pop %v1321
    %1324 = vrot.lane.b32.xlu0 %v1322, 64
    %v1325 = vpop.permute.xlu0 %1324
    %v1327 = vmul.f32 %v1309, %v1325
    %1329 = vrot.lane.b32.xlu0 %v1327, 32
    %v1330 = vpop.permute.xlu0 %1329
    %1332 = vst.msk [vmem:[#allocation3] sm:$0xff] %vm241, %v1330
    %v1333 = vld [vmem:[#allocation2 + $0x8] sm:$0xff]
    %v1334 = vsel %vm241, %v1330, 0
    %1336 = vmatprep.subr.mxu0 0.0
    %1337 = vmatpush1.msra.mxu0 %v1228
    %1338 = vmatprep.subr.mxu0 0.0
    %1339 = vmatpush1.msra.mxu0 %v1229
    %1340 = vmatprep.subr.mxu0 0.0
    %1341 = vmatpush1.msra.mxu0 %v1230
    %1342 = vmatprep.subr.mxu0 0.0
    %1343 = vmatpush1.msra.mxu0 %v1231
    %1344 = vmatprep.subr.mxu0 0.0
    %1345 = vmatpush1.msra.mxu0 0.0
    %1346 = vmatprep.subr.mxu0 0.0
    %1347 = vmatpush1.msra.mxu0 0.0
    %1348 = vmatprep.subr.mxu0 0.0
    %1349 = vmatpush1.msra.mxu0 0.0
    %1350 = vmatprep.subr.mxu0 0.0
    %1351 = vmatpush1.msra.mxu0 0.0
    %1352 = vmatprep.subr.mxu0 0.0
    %1353 = vmatpush1.msra.mxu0 0.0
    %1354 = vmatprep.subr.mxu0 0.0
    %1355 = vmatpush1.msra.mxu0 0.0
    %1356 = vmatprep.subr.mxu0 0.0
    %1357 = vmatpush1.msra.mxu0 0.0
    %1358 = vmatprep.subr.mxu0 0.0
    %1359 = vmatpush1.msra.mxu0 0.0
    %1360 = vmatprep.subr.mxu0 0.0
    %1361 = vmatpush1.msra.mxu0 0.0
    %1362 = vmatprep.subr.mxu0 0.0
    %1363 = vmatpush1.msra.mxu0 0.0
    %1364 = vmatprep.subr.mxu0 0.0
    %1365 = vmatpush1.msra.mxu0 0.0
    %1366 = vmatprep.subr.mxu0 0.0
    %1367 = vmatpush1.msra.mxu0 0.0
    %1368 = vmatprep.subr.mxu0 0.0
    %1369 = vmatpush1.msra.mxu0 0.0
    %1370 = vmatprep.subr.mxu0 0.0
    %1371 = vmatpush1.msra.mxu0 0.0
    %1372 = vmatprep.subr.mxu0 0.0
    %1373 = vmatpush1.msra.mxu0 0.0
    %1374 = vmatprep.subr.mxu0 0.0
    %1375 = vmatpush1.msra.mxu0 0.0
    %1376 = vmatprep.subr.mxu0 0.0
    %1377 = vmatpush1.msra.mxu0 0.0
    %1378 = vmatprep.subr.mxu0 0.0
    %1379 = vmatpush1.msra.mxu0 0.0
    %1380 = vmatprep.subr.mxu0 0.0
    %1381 = vmatpush1.msra.mxu0 0.0
    %1382 = vmatprep.subr.mxu0 0.0
    %1383 = vmatpush1.msra.mxu0 0.0
    %1384 = vmatprep.subr.mxu0 0.0
    %1385 = vmatpush1.msra.mxu0 0.0
    %1386 = vmatprep.subr.mxu0 0.0
    %1387 = vmatpush1.msra.mxu0 0.0
    %1388 = vmatprep.subr.mxu0 0.0
    %1389 = vmatpush1.msra.mxu0 0.0
    %1390 = vmatprep.subr.mxu0 0.0
    %1391 = vmatpush1.msra.mxu0 0.0
    %1392 = vmatprep.subr.mxu0 0.0
    %1393 = vmatpush1.msra.mxu0 0.0
    %1394 = vmatprep.subr.mxu0 0.0
    %1395 = vmatpush1.msra.mxu0 0.0
    %1396 = vmatprep.subr.mxu0 0.0
    %1397 = vmatpush1.msra.mxu0 0.0
    %1398 = vmatprep.subr.mxu0 0.0
    %1399 = vmatpush1.msra.mxu0 0.0
    %1400 = vmatprep.mubr.f32.mxu0 0.0
    %1401 = vmatmul.mubr.f32.gmra.mrb[0].mxu0 %v1334
    %v1402 = vpop.f32.mrb[0].mxu0
    %v1403 = vadd.f32 0.0, %v1402
    %v1404 = vpop.f32.mrb[0].mxu0
    %1405 = vdwg.mxu0
    %v1406 = vadd.f32 %v1333, %v1403
    %v1407 = vxor.u32 %v1406, 2147483648
    %v1408 = vmul.f32 %v1407, 1.442695
    %v1409 = vpow.pop %v1408
    %v1410 = vadd.f32 %v1409, 1.0
    %v1411 = vrcp.pop %v1410
    %v1412 = vmul.f32 1.0, %v1411
    %v1413 = vtanh.pop %v1406
    %v1414 = vmul.f32 %v1412, %v1321
    %1416 = vrot.lane.b32.xlu0 %v1413, 64
    %v1417 = vpop.permute.xlu0 %1416
    %v1419 = vmul.f32 %v1412, %v1417
    %1421 = vrot.lane.b32.xlu0 %v1419, 32
    %v1422 = vpop.permute.xlu0 %1421
    %v1424 = vadd.f32 %v1414, %v1422
    %v1425 = vtanh.pop %v1424
    %1427 = vrot.lane.b32.xlu0 %v1425, 64
    %v1428 = vpop.permute.xlu0 %1427
    %v1430 = vmul.f32 %v1412, %v1428
    %1432 = vrot.lane.b32.xlu0 %v1430, 32
    %v1433 = vpop.permute.xlu0 %1432
    %1435 = vst.msk [vmem:[#allocation3 + $0x8] sm:$0xff] %vm241, %v1433
    %v1436 = vld [vmem:[#allocation2 + $0x10] sm:$0xff]
    %v1437 = vsel %vm241, %v1433, 0
    %1439 = vmatprep.subr.mxu0 0.0
    %1440 = vmatpush1.msra.mxu0 %v1228
    %1441 = vmatprep.subr.mxu0 0.0
    %1442 = vmatpush1.msra.mxu0 %v1229
    %1443 = vmatprep.subr.mxu0 0.0
    %1444 = vmatpush1.msra.mxu0 %v1230
    %1445 = vmatprep.subr.mxu0 0.0
    %1446 = vmatpush1.msra.mxu0 %v1231
    %1447 = vmatprep.subr.mxu0 0.0
    %1448 = vmatpush1.msra.mxu0 0.0
    %1449 = vmatprep.subr.mxu0 0.0
    %1450 = vmatpush1.msra.mxu0 0.0
    %1451 = vmatprep.subr.mxu0 0.0
    %1452 = vmatpush1.msra.mxu0 0.0
    %1453 = vmatprep.subr.mxu0 0.0
    %1454 = vmatpush1.msra.mxu0 0.0
    %1455 = vmatprep.subr.mxu0 0.0
    %1456 = vmatpush1.msra.mxu0 0.0
    %1457 = vmatprep.subr.mxu0 0.0
    %1458 = vmatpush1.msra.mxu0 0.0
    %1459 = vmatprep.subr.mxu0 0.0
    %1460 = vmatpush1.msra.mxu0 0.0
    %1461 = vmatprep.subr.mxu0 0.0
    %1462 = vmatpush1.msra.mxu0 0.0
    %1463 = vmatprep.subr.mxu0 0.0
    %1464 = vmatpush1.msra.mxu0 0.0
    %1465 = vmatprep.subr.mxu0 0.0
    %1466 = vmatpush1.msra.mxu0 0.0
    %1467 = vmatprep.subr.mxu0 0.0
    %1468 = vmatpush1.msra.mxu0 0.0
    %1469 = vmatprep.subr.mxu0 0.0
    %1470 = vmatpush1.msra.mxu0 0.0
    %1471 = vmatprep.subr.mxu0 0.0
    %1472 = vmatpush1.msra.mxu0 0.0
    %1473 = vmatprep.subr.mxu0 0.0
    %1474 = vmatpush1.msra.mxu0 0.0
    %1475 = vmatprep.subr.mxu0 0.0
    %1476 = vmatpush1.msra.mxu0 0.0
    %1477 = vmatprep.subr.mxu0 0.0
    %1478 = vmatpush1.msra.mxu0 0.0
    %1479 = vmatprep.subr.mxu0 0.0
    %1480 = vmatpush1.msra.mxu0 0.0
    %1481 = vmatprep.subr.mxu0 0.0
    %1482 = vmatpush1.msra.mxu0 0.0
    %1483 = vmatprep.subr.mxu0 0.0
    %1484 = vmatpush1.msra.mxu0 0.0
    %1485 = vmatprep.subr.mxu0 0.0
    %1486 = vmatpush1.msra.mxu0 0.0
    %1487 = vmatprep.subr.mxu0 0.0
    %1488 = vmatpush1.msra.mxu0 0.0
    %1489 = vmatprep.subr.mxu0 0.0
    %1490 = vmatpush1.msra.mxu0 0.0
    %1491 = vmatprep.subr.mxu0 0.0
    %1492 = vmatpush1.msra.mxu0 0.0
    %1493 = vmatprep.subr.mxu0 0.0
    %1494 = vmatpush1.msra.mxu0 0.0
    %1495 = vmatprep.subr.mxu0 0.0
    %1496 = vmatpush1.msra.mxu0 0.0
    %1497 = vmatprep.subr.mxu0 0.0
    %1498 = vmatpush1.msra.mxu0 0.0
    %1499 = vmatprep.subr.mxu0 0.0
    %1500 = vmatpush1.msra.mxu0 0.0
    %1501 = vmatprep.subr.mxu0 0.0
    %1502 = vmatpush1.msra.mxu0 0.0
    %1503 = vmatprep.mubr.f32.mxu0 0.0
    %1504 = vmatmul.mubr.f32.gmra.mrb[0].mxu0 %v1437
    %v1505 = vpop.f32.mrb[0].mxu0
    %v1506 = vadd.f32 0.0, %v1505
    %v1507 = vpop.f32.mrb[0].mxu0
    %1508 = vdwg.mxu0
    %v1509 = vadd.f32 %v1436, %v1506
    %v1510 = vxor.u32 %v1509, 2147483648
    %v1511 = vmul.f32 %v1510, 1.442695
    %v1512 = vpow.pop %v1511
    %v1513 = vadd.f32 %v1512, 1.0
    %v1514 = vrcp.pop %v1513
    %v1515 = vmul.f32 1.0, %v1514
    %v1516 = vtanh.pop %v1509
    %v1517 = vmul.f32 %v1515, %v1424
    %1519 = vrot.lane.b32.xlu0 %v1516, 64
    %v1520 = vpop.permute.xlu0 %1519
    %v1522 = vmul.f32 %v1515, %v1520
    %1524 = vrot.lane.b32.xlu0 %v1522, 32
    %v1525 = vpop.permute.xlu0 %1524
    %v1527 = vadd.f32 %v1517, %v1525
    %v1528 = vtanh.pop %v1527
    %1530 = vrot.lane.b32.xlu0 %v1528, 64
    %v1531 = vpop.permute.xlu0 %1530
    %v1533 = vmul.f32 %v1515, %v1531
    %1535 = vrot.lane.b32.xlu0 %v1533, 32
    %v1536 = vpop.permute.xlu0 %1535
    %1538 = vst.msk [vmem:[#allocation3 + $0x10] sm:$0xff] %vm241, %v1536
    %v1539 = vld [vmem:[#allocation2 + $0x18] sm:$0xff]
    %v1540 = vsel %vm241, %v1536, 0
    %1542 = vmatprep.subr.mxu0 0.0
    %1543 = vmatpush1.msra.mxu0 %v1228
    %1544 = vmatprep.subr.mxu0 0.0
    %1545 = vmatpush1.msra.mxu0 %v1229
    %1546 = vmatprep.subr.mxu0 0.0
    %1547 = vmatpush1.msra.mxu0 %v1230
    %1548 = vmatprep.subr.mxu0 0.0
    %1549 = vmatpush1.msra.mxu0 %v1231
    %1550 = vmatprep.subr.mxu0 0.0
    %1551 = vmatpush1.msra.mxu0 0.0
    %1552 = vmatprep.subr.mxu0 0.0
    %1553 = vmatpush1.msra.mxu0 0.0
    %1554 = vmatprep.subr.mxu0 0.0
    %1555 = vmatpush1.msra.mxu0 0.0
    %1556 = vmatprep.subr.mxu0 0.0
    %1557 = vmatpush1.msra.mxu0 0.0
    %1558 = vmatprep.subr.mxu0 0.0
    %1559 = vmatpush1.msra.mxu0 0.0
    %1560 = vmatprep.subr.mxu0 0.0
    %1561 = vmatpush1.msra.mxu0 0.0
    %1562 = vmatprep.subr.mxu0 0.0
    %1563 = vmatpush1.msra.mxu0 0.0
    %1564 = vmatprep.subr.mxu0 0.0
    %1565 = vmatpush1.msra.mxu0 0.0
    %1566 = vmatprep.subr.mxu0 0.0
    %1567 = vmatpush1.msra.mxu0 0.0
    %1568 = vmatprep.subr.mxu0 0.0
    %1569 = vmatpush1.msra.mxu0 0.0
    %1570 = vmatprep.subr.mxu0 0.0
    %1571 = vmatpush1.msra.mxu0 0.0
    %1572 = vmatprep.subr.mxu0 0.0
    %1573 = vmatpush1.msra.mxu0 0.0
    %1574 = vmatprep.subr.mxu0 0.0
    %1575 = vmatpush1.msra.mxu0 0.0
    %1576 = vmatprep.subr.mxu0 0.0
    %1577 = vmatpush1.msra.mxu0 0.0
    %1578 = vmatprep.subr.mxu0 0.0
    %1579 = vmatpush1.msra.mxu0 0.0
    %1580 = vmatprep.subr.mxu0 0.0
    %1581 = vmatpush1.msra.mxu0 0.0
    %1582 = vmatprep.subr.mxu0 0.0
    %1583 = vmatpush1.msra.mxu0 0.0
    %1584 = vmatprep.subr.mxu0 0.0
    %1585 = vmatpush1.msra.mxu0 0.0
    %1586 = vmatprep.subr.mxu0 0.0
    %1587 = vmatpush1.msra.mxu0 0.0
    %1588 = vmatprep.subr.mxu0 0.0
    %1589 = vmatpush1.msra.mxu0 0.0
    %1590 = vmatprep.subr.mxu0 0.0
    %1591 = vmatpush1.msra.mxu0 0.0
    %1592 = vmatprep.subr.mxu0 0.0
    %1593 = vmatpush1.msra.mxu0 0.0
    %1594 = vmatprep.subr.mxu0 0.0
    %1595 = vmatpush1.msra.mxu0 0.0
    %1596 = vmatprep.subr.mxu0 0.0
    %1597 = vmatpush1.msra.mxu0 0.0
    %1598 = vmatprep.subr.mxu0 0.0
    %1599 = vmatpush1.msra.mxu0 0.0
    %1600 = vmatprep.subr.mxu0 0.0
    %1601 = vmatpush1.msra.mxu0 0.0
    %1602 = vmatprep.subr.mxu0 0.0
    %1603 = vmatpush1.msra.mxu0 0.0
    %1604 = vmatprep.subr.mxu0 0.0
    %1605 = vmatpush1.msra.mxu0 0.0
    %1606 = vmatprep.mubr.f32.mxu0 0.0
    %1607 = vmatmul.mubr.f32.gmra.mrb[0].mxu0 %v1540
    %v1608 = vpop.f32.mrb[0].mxu0
    %v1609 = vadd.f32 0.0, %v1608
    %v1610 = vpop.f32.mrb[0].mxu0
    %1611 = vdwg.mxu0
    %v1612 = vadd.f32 %v1539, %v1609
    %v1613 = vxor.u32 %v1612, 2147483648
    %v1614 = vmul.f32 %v1613, 1.442695
    %v1615 = vpow.pop %v1614
    %v1616 = vadd.f32 %v1615, 1.0
    %v1617 = vrcp.pop %v1616
    %v1618 = vmul.f32 1.0, %v1617
    %v1619 = vtanh.pop %v1612
    %v1620 = vmul.f32 %v1618, %v1527
    %1622 = vrot.lane.b32.xlu0 %v1619, 64
    %v1623 = vpop.permute.xlu0 %1622
    %v1625 = vmul.f32 %v1618, %v1623
    %1627 = vrot.lane.b32.xlu0 %v1625, 32
    %v1628 = vpop.permute.xlu0 %1627
    %v1630 = vadd.f32 %v1620, %v1628
    %v1631 = vtanh.pop %v1630
    %1633 = vrot.lane.b32.xlu0 %v1631, 64
    %v1634 = vpop.permute.xlu0 %1633
    %v1636 = vmul.f32 %v1618, %v1634
    %1638 = vrot.lane.b32.xlu0 %v1636, 32
    %v1639 = vpop.permute.xlu0 %1638
    %1641 = vst.msk [vmem:[#allocation3 + $0x18] sm:$0xff] %vm241, %v1639
    %v1642 = vld [vmem:[#allocation2 + $0x20] sm:$0xff]
    %v1643 = vsel %vm241, %v1639, 0
    %1645 = vmatprep.subr.mxu0 0.0
    %1646 = vmatpush1.msra.mxu0 %v1228
    %1647 = vmatprep.subr.mxu0 0.0
    %1648 = vmatpush1.msra.mxu0 %v1229
    %1649 = vmatprep.subr.mxu0 0.0
    %1650 = vmatpush1.msra.mxu0 %v1230
    %1651 = vmatprep.subr.mxu0 0.0
    %1652 = vmatpush1.msra.mxu0 %v1231
    %1653 = vmatprep.subr.mxu0 0.0
    %1654 = vmatpush1.msra.mxu0 0.0
    %1655 = vmatprep.subr.mxu0 0.0
    %1656 = vmatpush1.msra.mxu0 0.0
    %1657 = vmatprep.subr.mxu0 0.0
    %1658 = vmatpush1.msra.mxu0 0.0
    %1659 = vmatprep.subr.mxu0 0.0
    %1660 = vmatpush1.msra.mxu0 0.0
    %1661 = vmatprep.subr.mxu0 0.0
    %1662 = vmatpush1.msra.mxu0 0.0
    %1663 = vmatprep.subr.mxu0 0.0
    %1664 = vmatpush1.msra.mxu0 0.0
    %1665 = vmatprep.subr.mxu0 0.0
    %1666 = vmatpush1.msra.mxu0 0.0
    %1667 = vmatprep.subr.mxu0 0.0
    %1668 = vmatpush1.msra.mxu0 0.0
    %1669 = vmatprep.subr.mxu0 0.0
    %1670 = vmatpush1.msra.mxu0 0.0
    %1671 = vmatprep.subr.mxu0 0.0
    %1672 = vmatpush1.msra.mxu0 0.0
    %1673 = vmatprep.subr.mxu0 0.0
    %1674 = vmatpush1.msra.mxu0 0.0
    %1675 = vmatprep.subr.mxu0 0.0
    %1676 = vmatpush1.msra.mxu0 0.0
    %1677 = vmatprep.subr.mxu0 0.0
    %1678 = vmatpush1.msra.mxu0 0.0
    %1679 = vmatprep.subr.mxu0 0.0
    %1680 = vmatpush1.msra.mxu0 0.0
    %1681 = vmatprep.subr.mxu0 0.0
    %1682 = vmatpush1.msra.mxu0 0.0
    %1683 = vmatprep.subr.mxu0 0.0
    %1684 = vmatpush1.msra.mxu0 0.0
    %1685 = vmatprep.subr.mxu0 0.0
    %1686 = vmatpush1.msra.mxu0 0.0
    %1687 = vmatprep.subr.mxu0 0.0
    %1688 = vmatpush1.msra.mxu0 0.0
    %1689 = vmatprep.subr.mxu0 0.0
    %1690 = vmatpush1.msra.mxu0 0.0
    %1691 = vmatprep.subr.mxu0 0.0
    %1692 = vmatpush1.msra.mxu0 0.0
    %1693 = vmatprep.subr.mxu0 0.0
    %1694 = vmatpush1.msra.mxu0 0.0
    %1695 = vmatprep.subr.mxu0 0.0
    %1696 = vmatpush1.msra.mxu0 0.0
    %1697 = vmatprep.subr.mxu0 0.0
    %1698 = vmatpush1.msra.mxu0 0.0
    %1699 = vmatprep.subr.mxu0 0.0
    %1700 = vmatpush1.msra.mxu0 0.0
    %1701 = vmatprep.subr.mxu0 0.0
    %1702 = vmatpush1.msra.mxu0 0.0
    %1703 = vmatprep.subr.mxu0 0.0
    %1704 = vmatpush1.msra.mxu0 0.0
    %1705 = vmatprep.subr.mxu0 0.0
    %1706 = vmatpush1.msra.mxu0 0.0
    %1707 = vmatprep.subr.mxu0 0.0
    %1708 = vmatpush1.msra.mxu0 0.0
    %1709 = vmatprep.mubr.f32.mxu0 0.0
    %1710 = vmatmul.mubr.f32.gmra.mrb[0].mxu0 %v1643
    %v1711 = vpop.f32.mrb[0].mxu0
    %v1712 = vadd.f32 0.0, %v1711
    %v1713 = vpop.f32.mrb[0].mxu0
    %1714 = vdwg.mxu0
    %v1715 = vadd.f32 %v1642, %v1712
    %v1716 = vxor.u32 %v1715, 2147483648
    %v1717 = vmul.f32 %v1716, 1.442695
    %v1718 = vpow.pop %v1717
    %v1719 = vadd.f32 %v1718, 1.0
    %v1720 = vrcp.pop %v1719
    %v1721 = vmul.f32 1.0, %v1720
    %v1722 = vtanh.pop %v1715
    %v1723 = vmul.f32 %v1721, %v1630
    %1725 = vrot.lane.b32.xlu0 %v1722, 64
    %v1726 = vpop.permute.xlu0 %1725
    %v1728 = vmul.f32 %v1721, %v1726
    %1730 = vrot.lane.b32.xlu0 %v1728, 32
    %v1731 = vpop.permute.xlu0 %1730
    %v1733 = vadd.f32 %v1723, %v1731
    %v1734 = vtanh.pop %v1733
    %1736 = vrot.lane.b32.xlu0 %v1734, 64
    %v1737 = vpop.permute.xlu0 %1736
    %v1739 = vmul.f32 %v1721, %v1737
    %1741 = vrot.lane.b32.xlu0 %v1739, 32
    %v1742 = vpop.permute.xlu0 %1741
    %1744 = vst.msk [vmem:[#allocation3 + $0x20] sm:$0xff] %vm241, %v1742
    %v1745 = vld [vmem:[#allocation2 + $0x28] sm:$0xff]
    %v1746 = vsel %vm241, %v1742, 0
    %1748 = vmatprep.subr.mxu0 0.0
    %1749 = vmatpush1.msra.mxu0 %v1228
    %1750 = vmatprep.subr.mxu0 0.0
    %1751 = vmatpush1.msra.mxu0 %v1229
    %1752 = vmatprep.subr.mxu0 0.0
    %1753 = vmatpush1.msra.mxu0 %v1230
    %1754 = vmatprep.subr.mxu0 0.0
    %1755 = vmatpush1.msra.mxu0 %v1231
    %1756 = vmatprep.subr.mxu0 0.0
    %1757 = vmatpush1.msra.mxu0 0.0
    %1758 = vmatprep.subr.mxu0 0.0
    %1759 = vmatpush1.msra.mxu0 0.0
    %1760 = vmatprep.subr.mxu0 0.0
    %1761 = vmatpush1.msra.mxu0 0.0
    %1762 = vmatprep.subr.mxu0 0.0
    %1763 = vmatpush1.msra.mxu0 0.0
    %1764 = vmatprep.subr.mxu0 0.0
    %1765 = vmatpush1.msra.mxu0 0.0
    %1766 = vmatprep.subr.mxu0 0.0
    %1767 = vmatpush1.msra.mxu0 0.0
    %1768 = vmatprep.subr.mxu0 0.0
    %1769 = vmatpush1.msra.mxu0 0.0
    %1770 = vmatprep.subr.mxu0 0.0
    %1771 = vmatpush1.msra.mxu0 0.0
    %1772 = vmatprep.subr.mxu0 0.0
    %1773 = vmatpush1.msra.mxu0 0.0
    %1774 = vmatprep.subr.mxu0 0.0
    %1775 = vmatpush1.msra.mxu0 0.0
    %1776 = vmatprep.subr.mxu0 0.0
    %1777 = vmatpush1.msra.mxu0 0.0
    %1778 = vmatprep.subr.mxu0 0.0
    %1779 = vmatpush1.msra.mxu0 0.0
    %1780 = vmatprep.subr.mxu0 0.0
    %1781 = vmatpush1.msra.mxu0 0.0
    %1782 = vmatprep.subr.mxu0 0.0
    %1783 = vmatpush1.msra.mxu0 0.0
    %1784 = vmatprep.subr.mxu0 0.0
    %1785 = vmatpush1.msra.mxu0 0.0
    %1786 = vmatprep.subr.mxu0 0.0
    %1787 = vmatpush1.msra.mxu0 0.0
    %1788 = vmatprep.subr.mxu0 0.0
    %1789 = vmatpush1.msra.mxu0 0.0
    %1790 = vmatprep.subr.mxu0 0.0
    %1791 = vmatpush1.msra.mxu0 0.0
    %1792 = vmatprep.subr.mxu0 0.0
    %1793 = vmatpush1.msra.mxu0 0.0
    %1794 = vmatprep.subr.mxu0 0.0
    %1795 = vmatpush1.msra.mxu0 0.0
    %1796 = vmatprep.subr.mxu0 0.0
    %1797 = vmatpush1.msra.mxu0 0.0
    %1798 = vmatprep.subr.mxu0 0.0
    %1799 = vmatpush1.msra.mxu0 0.0
    %1800 = vmatprep.subr.mxu0 0.0
    %1801 = vmatpush1.msra.mxu0 0.0
    %1802 = vmatprep.subr.mxu0 0.0
    %1803 = vmatpush1.msra.mxu0 0.0
    %1804 = vmatprep.subr.mxu0 0.0
    %1805 = vmatpush1.msra.mxu0 0.0
    %1806 = vmatprep.subr.mxu0 0.0
    %1807 = vmatpush1.msra.mxu0 0.0
    %1808 = vmatprep.subr.mxu0 0.0
    %1809 = vmatpush1.msra.mxu0 0.0
    %1810 = vmatprep.subr.mxu0 0.0
    %1811 = vmatpush1.msra.mxu0 0.0
    %1812 = vmatprep.mubr.f32.mxu0 0.0
    %1813 = vmatmul.mubr.f32.gmra.mrb[0].mxu0 %v1746
    %v1814 = vpop.f32.mrb[0].mxu0
    %v1815 = vadd.f32 0.0, %v1814
    %v1816 = vpop.f32.mrb[0].mxu0
    %1817 = vdwg.mxu0
    %v1818 = vadd.f32 %v1745, %v1815
    %v1819 = vxor.u32 %v1818, 2147483648
    %v1820 = vmul.f32 %v1819, 1.442695
    %v1821 = vpow.pop %v1820
    %v1822 = vadd.f32 %v1821, 1.0
    %v1823 = vrcp.pop %v1822
    %v1824 = vmul.f32 1.0, %v1823
    %v1825 = vtanh.pop %v1818
    %v1826 = vmul.f32 %v1824, %v1733
    %1828 = vrot.lane.b32.xlu0 %v1825, 64
    %v1829 = vpop.permute.xlu0 %1828
    %v1831 = vmul.f32 %v1824, %v1829
    %1833 = vrot.lane.b32.xlu0 %v1831, 32
    %v1834 = vpop.permute.xlu0 %1833
    %v1836 = vadd.f32 %v1826, %v1834
    %v1837 = vtanh.pop %v1836
    %1839 = vrot.lane.b32.xlu0 %v1837, 64
    %v1840 = vpop.permute.xlu0 %1839
    %v1842 = vmul.f32 %v1824, %v1840
    %1844 = vrot.lane.b32.xlu0 %v1842, 32
    %v1845 = vpop.permute.xlu0 %1844
    %1847 = vst.msk [vmem:[#allocation3 + $0x28] sm:$0xff] %vm241, %v1845
    %v1848 = vld [vmem:[#allocation2 + $0x30] sm:$0xff]
    %v1849 = vsel %vm241, %v1845, 0
    %1851 = vmatprep.subr.mxu0 0.0
    %1852 = vmatpush1.msra.mxu0 %v1228
    %1853 = vmatprep.subr.mxu0 0.0
    %1854 = vmatpush1.msra.mxu0 %v1229
    %1855 = vmatprep.subr.mxu0 0.0
    %1856 = vmatpush1.msra.mxu0 %v1230
    %1857 = vmatprep.subr.mxu0 0.0
    %1858 = vmatpush1.msra.mxu0 %v1231
    %1859 = vmatprep.subr.mxu0 0.0
    %1860 = vmatpush1.msra.mxu0 0.0
    %1861 = vmatprep.subr.mxu0 0.0
    %1862 = vmatpush1.msra.mxu0 0.0
    %1863 = vmatprep.subr.mxu0 0.0
    %1864 = vmatpush1.msra.mxu0 0.0
    %1865 = vmatprep.subr.mxu0 0.0
    %1866 = vmatpush1.msra.mxu0 0.0
    %1867 = vmatprep.subr.mxu0 0.0
    %1868 = vmatpush1.msra.mxu0 0.0
    %1869 = vmatprep.subr.mxu0 0.0
    %1870 = vmatpush1.msra.mxu0 0.0
    %1871 = vmatprep.subr.mxu0 0.0
    %1872 = vmatpush1.msra.mxu0 0.0
    %1873 = vmatprep.subr.mxu0 0.0
    %1874 = vmatpush1.msra.mxu0 0.0
    %1875 = vmatprep.subr.mxu0 0.0
    %1876 = vmatpush1.msra.mxu0 0.0
    %1877 = vmatprep.subr.mxu0 0.0
    %1878 = vmatpush1.msra.mxu0 0.0
    %1879 = vmatprep.subr.mxu0 0.0
    %1880 = vmatpush1.msra.mxu0 0.0
    %1881 = vmatprep.subr.mxu0 0.0
    %1882 = vmatpush1.msra.mxu0 0.0
    %1883 = vmatprep.subr.mxu0 0.0
    %1884 = vmatpush1.msra.mxu0 0.0
    %1885 = vmatprep.subr.mxu0 0.0
    %1886 = vmatpush1.msra.mxu0 0.0
    %1887 = vmatprep.subr.mxu0 0.0
    %1888 = vmatpush1.msra.mxu0 0.0
    %1889 = vmatprep.subr.mxu0 0.0
    %1890 = vmatpush1.msra.mxu0 0.0
    %1891 = vmatprep.subr.mxu0 0.0
    %1892 = vmatpush1.msra.mxu0 0.0
    %1893 = vmatprep.subr.mxu0 0.0
    %1894 = vmatpush1.msra.mxu0 0.0
    %1895 = vmatprep.subr.mxu0 0.0
    %1896 = vmatpush1.msra.mxu0 0.0
    %1897 = vmatprep.subr.mxu0 0.0
    %1898 = vmatpush1.msra.mxu0 0.0
    %1899 = vmatprep.subr.mxu0 0.0
    %1900 = vmatpush1.msra.mxu0 0.0
    %1901 = vmatprep.subr.mxu0 0.0
    %1902 = vmatpush1.msra.mxu0 0.0
    %1903 = vmatprep.subr.mxu0 0.0
    %1904 = vmatpush1.msra.mxu0 0.0
    %1905 = vmatprep.subr.mxu0 0.0
    %1906 = vmatpush1.msra.mxu0 0.0
    %1907 = vmatprep.subr.mxu0 0.0
    %1908 = vmatpush1.msra.mxu0 0.0
    %1909 = vmatprep.subr.mxu0 0.0
    %1910 = vmatpush1.msra.mxu0 0.0
    %1911 = vmatprep.subr.mxu0 0.0
    %1912 = vmatpush1.msra.mxu0 0.0
    %1913 = vmatprep.subr.mxu0 0.0
    %1914 = vmatpush1.msra.mxu0 0.0
    %1915 = vmatprep.mubr.f32.mxu0 0.0
    %1916 = vmatmul.mubr.f32.gmra.mrb[0].mxu0 %v1849
    %v1917 = vpop.f32.mrb[0].mxu0
    %v1918 = vadd.f32 0.0, %v1917
    %v1919 = vpop.f32.mrb[0].mxu0
    %1920 = vdwg.mxu0
    %v1921 = vadd.f32 %v1848, %v1918
    %v1922 = vxor.u32 %v1921, 2147483648
    %v1923 = vmul.f32 %v1922, 1.442695
    %v1924 = vpow.pop %v1923
    %v1925 = vadd.f32 %v1924, 1.0
    %v1926 = vrcp.pop %v1925
    %v1927 = vmul.f32 1.0, %v1926
    %v1928 = vtanh.pop %v1921
    %v1929 = vmul.f32 %v1927, %v1836
    %1931 = vrot.lane.b32.xlu0 %v1928, 64
    %v1932 = vpop.permute.xlu0 %1931
    %v1934 = vmul.f32 %v1927, %v1932
    %1936 = vrot.lane.b32.xlu0 %v1934, 32
    %v1937 = vpop.permute.xlu0 %1936
    %v1939 = vadd.f32 %v1929, %v1937
    %v1940 = vtanh.pop %v1939
    %1942 = vrot.lane.b32.xlu0 %v1940, 64
    %v1943 = vpop.permute.xlu0 %1942
    %v1945 = vmul.f32 %v1927, %v1943
    %1947 = vrot.lane.b32.xlu0 %v1945, 32
    %v1948 = vpop.permute.xlu0 %1947
    %1950 = vst.msk [vmem:[#allocation3 + $0x30] sm:$0xff] %vm241, %v1948
    %v1951 = vld [vmem:[#allocation2 + $0x38] sm:$0xff]
    %v1952 = vsel %vm241, %v1948, 0
    %1954 = vmatprep.subr.mxu0 0.0
    %1955 = vmatpush1.msra.mxu0 %v1228
    %1956 = vmatprep.subr.mxu0 0.0
    %1957 = vmatpush1.msra.mxu0 %v1229
    %1958 = vmatprep.subr.mxu0 0.0
    %1959 = vmatpush1.msra.mxu0 %v1230
    %1960 = vmatprep.subr.mxu0 0.0
    %1961 = vmatpush1.msra.mxu0 %v1231
    %1962 = vmatprep.subr.mxu0 0.0
    %1963 = vmatpush1.msra.mxu0 0.0
    %1964 = vmatprep.subr.mxu0 0.0
    %1965 = vmatpush1.msra.mxu0 0.0
    %1966 = vmatprep.subr.mxu0 0.0
    %1967 = vmatpush1.msra.mxu0 0.0
    %1968 = vmatprep.subr.mxu0 0.0
    %1969 = vmatpush1.msra.mxu0 0.0
    %1970 = vmatprep.subr.mxu0 0.0
    %1971 = vmatpush1.msra.mxu0 0.0
    %1972 = vmatprep.subr.mxu0 0.0
    %1973 = vmatpush1.msra.mxu0 0.0
    %1974 = vmatprep.subr.mxu0 0.0
    %1975 = vmatpush1.msra.mxu0 0.0
    %1976 = vmatprep.subr.mxu0 0.0
    %1977 = vmatpush1.msra.mxu0 0.0
    %1978 = vmatprep.subr.mxu0 0.0
    %1979 = vmatpush1.msra.mxu0 0.0
    %1980 = vmatprep.subr.mxu0 0.0
    %1981 = vmatpush1.msra.mxu0 0.0
    %1982 = vmatprep.subr.mxu0 0.0
    %1983 = vmatpush1.msra.mxu0 0.0
    %1984 = vmatprep.subr.mxu0 0.0
    %1985 = vmatpush1.msra.mxu0 0.0
    %1986 = vmatprep.subr.mxu0 0.0
    %1987 = vmatpush1.msra.mxu0 0.0
    %1988 = vmatprep.subr.mxu0 0.0
    %1989 = vmatpush1.msra.mxu0 0.0
    %1990 = vmatprep.subr.mxu0 0.0
    %1991 = vmatpush1.msra.mxu0 0.0
    %1992 = vmatprep.subr.mxu0 0.0
    %1993 = vmatpush1.msra.mxu0 0.0
    %1994 = vmatprep.subr.mxu0 0.0
    %1995 = vmatpush1.msra.mxu0 0.0
    %1996 = vmatprep.subr.mxu0 0.0
    %1997 = vmatpush1.msra.mxu0 0.0
    %1998 = vmatprep.subr.mxu0 0.0
    %1999 = vmatpush1.msra.mxu0 0.0
    %2000 = vmatprep.subr.mxu0 0.0
    %2001 = vmatpush1.msra.mxu0 0.0
    %2002 = vmatprep.subr.mxu0 0.0
    %2003 = vmatpush1.msra.mxu0 0.0
    %2004 = vmatprep.subr.mxu0 0.0
    %2005 = vmatpush1.msra.mxu0 0.0
    %2006 = vmatprep.subr.mxu0 0.0
    %2007 = vmatpush1.msra.mxu0 0.0
    %2008 = vmatprep.subr.mxu0 0.0
    %2009 = vmatpush1.msra.mxu0 0.0
    %2010 = vmatprep.subr.mxu0 0.0
    %2011 = vmatpush1.msra.mxu0 0.0
    %2012 = vmatprep.subr.mxu0 0.0
    %2013 = vmatpush1.msra.mxu0 0.0
    %2014 = vmatprep.subr.mxu0 0.0
    %2015 = vmatpush1.msra.mxu0 0.0
    %2016 = vmatprep.subr.mxu0 0.0
    %2017 = vmatpush1.msra.mxu0 0.0
    %2018 = vmatprep.mubr.f32.mxu0 0.0
    %2019 = vmatmul.mubr.f32.gmra.mrb[0].mxu0 %v1952
    %v2020 = vpop.f32.mrb[0].mxu0
    %v2021 = vadd.f32 0.0, %v2020
    %v2022 = vpop.f32.mrb[0].mxu0
    %2023 = vdwg.mxu0
    %v2024 = vadd.f32 %v1951, %v2021
    %v2025 = vxor.u32 %v2024, 2147483648
    %v2026 = vmul.f32 %v2025, 1.442695
    %v2027 = vpow.pop %v2026
    %v2028 = vadd.f32 %v2027, 1.0
    %v2029 = vrcp.pop %v2028
    %v2030 = vmul.f32 1.0, %v2029
    %v2031 = vtanh.pop %v2024
    %v2032 = vmul.f32 %v2030, %v1939
    %2034 = vrot.lane.b32.xlu0 %v2031, 64
    %v2035 = vpop.permute.xlu0 %2034
    %v2037 = vmul.f32 %v2030, %v2035
    %2039 = vrot.lane.b32.xlu0 %v2037, 32
    %v2040 = vpop.permute.xlu0 %2039
    %v2042 = vadd.f32 %v2032, %v2040
    %v2043 = vtanh.pop %v2042
    %2045 = vrot.lane.b32.xlu0 %v2043, 64
    %v2046 = vpop.permute.xlu0 %2045
    %v2048 = vmul.f32 %v2030, %v2046
    %2050 = vrot.lane.b32.xlu0 %v2048, 32
    %v2051 = vpop.permute.xlu0 %2050
    %2053 = vst.msk [vmem:[#allocation3 + $0x38] sm:$0xff] %vm241, %v2051
    %s2054 = scalar_lea.vmem [#allocation10], 8
    %2055 = vst.msk [vmem:[%s2054] sm:$0xff] %vm241, %v2051
    %2057 = vrot.lane.b32.xlu0 %v2042, 96
    %v2058 = vpop.permute.xlu0 %2057
    %s2060 = scalar_lea.vmem [#allocation11], 8
    %2061 = vst.msk [vmem:[%s2060] sm:$0xff] %vm241, %v2058
    %v2062 = vld [vmem:[#allocation3] sm:$0xff]
    %v2063 = vld [vmem:[#allocation3 + $0x8] sm:$0xff]
    %v2064 = vld [vmem:[#allocation3 + $0x10] sm:$0xff]
    %v2065 = vld [vmem:[#allocation3 + $0x18] sm:$0xff]
    %v2066 = vld [vmem:[#allocation3 + $0x20] sm:$0xff]
    %v2067 = vld [vmem:[#allocation3 + $0x28] sm:$0xff]
    %v2068 = vld [vmem:[#allocation3 + $0x30] sm:$0xff]
    %v2069 = vld [vmem:[#allocation3 + $0x38] sm:$0xff]
    %v2070 = vld [vmem:[#allocation7] sm:$0xff]
    %v2071 = vld [vmem:[#allocation7 + $0x8] sm:$0xff]
    %v2072 = vld [vmem:[#allocation7 + $0x10] sm:$0xff]
    %v2073 = vld [vmem:[#allocation7 + $0x18] sm:$0xff]
    %v2074 = vld [vmem:[%s9] sm:$0x1]
    %v2076 = vlaneseq
    %v2077 = vshrl.u32 %v2076, 7
    %v2078 = vsub.s32 0, %v2077
    %v2079 = vrot.slane %v2074, %v2078
    %v2082 = vsel %vm241, %v2062, 0
    %v2085 = vsel %vm241, %v2063, 0
    %v2088 = vsel %vm241, %v2064, 0
    %v2091 = vsel %vm241, %v2065, 0
    %v2094 = vsel %vm241, %v2066, 0
    %v2097 = vsel %vm241, %v2067, 0
    %v2100 = vsel %vm241, %v2068, 0
    %v2103 = vsel %vm241, %v2069, 0
    %2105 = vmatprep.subr.mxu0 0.0
    %2106 = vmatpush1.msra.mxu0 %v2070
    %2107 = vmatprep.subr.mxu0 0.0
    %2108 = vmatpush1.msra.mxu0 %v2071
    %2109 = vmatprep.subr.mxu0 0.0
    %2110 = vmatpush1.msra.mxu0 %v2072
    %2111 = vmatprep.subr.mxu0 0.0
    %2112 = vmatpush1.msra.mxu0 %v2073
    %2113 = vmatprep.subr.mxu0 0.0
    %2114 = vmatpush1.msra.mxu0 0.0
    %2115 = vmatprep.subr.mxu0 0.0
    %2116 = vmatpush1.msra.mxu0 0.0
    %2117 = vmatprep.subr.mxu0 0.0
    %2118 = vmatpush1.msra.mxu0 0.0
    %2119 = vmatprep.subr.mxu0 0.0
    %2120 = vmatpush1.msra.mxu0 0.0
    %2121 = vmatprep.subr.mxu0 0.0
    %2122 = vmatpush1.msra.mxu0 0.0
    %2123 = vmatprep.subr.mxu0 0.0
    %2124 = vmatpush1.msra.mxu0 0.0
    %2125 = vmatprep.subr.mxu0 0.0
    %2126 = vmatpush1.msra.mxu0 0.0
    %2127 = vmatprep.subr.mxu0 0.0
    %2128 = vmatpush1.msra.mxu0 0.0
    %2129 = vmatprep.subr.mxu0 0.0
    %2130 = vmatpush1.msra.mxu0 0.0
    %2131 = vmatprep.subr.mxu0 0.0
    %2132 = vmatpush1.msra.mxu0 0.0
    %2133 = vmatprep.subr.mxu0 0.0
    %2134 = vmatpush1.msra.mxu0 0.0
    %2135 = vmatprep.subr.mxu0 0.0
    %2136 = vmatpush1.msra.mxu0 0.0
    %2137 = vmatprep.subr.mxu0 0.0
    %2138 = vmatpush1.msra.mxu0 0.0
    %2139 = vmatprep.subr.mxu0 0.0
    %2140 = vmatpush1.msra.mxu0 0.0
    %2141 = vmatprep.subr.mxu0 0.0
    %2142 = vmatpush1.msra.mxu0 0.0
    %2143 = vmatprep.subr.mxu0 0.0
    %2144 = vmatpush1.msra.mxu0 0.0
    %2145 = vmatprep.subr.mxu0 0.0
    %2146 = vmatpush1.msra.mxu0 0.0
    %2147 = vmatprep.subr.mxu0 0.0
    %2148 = vmatpush1.msra.mxu0 0.0
    %2149 = vmatprep.subr.mxu0 0.0
    %2150 = vmatpush1.msra.mxu0 0.0
    %2151 = vmatprep.subr.mxu0 0.0
    %2152 = vmatpush1.msra.mxu0 0.0
    %2153 = vmatprep.subr.mxu0 0.0
    %2154 = vmatpush1.msra.mxu0 0.0
    %2155 = vmatprep.subr.mxu0 0.0
    %2156 = vmatpush1.msra.mxu0 0.0
    %2157 = vmatprep.subr.mxu0 0.0
    %2158 = vmatpush1.msra.mxu0 0.0
    %2159 = vmatprep.subr.mxu0 0.0
    %2160 = vmatpush1.msra.mxu0 0.0
    %2161 = vmatprep.subr.mxu0 0.0
    %2162 = vmatpush1.msra.mxu0 0.0
    %2163 = vmatprep.subr.mxu0 0.0
    %2164 = vmatpush1.msra.mxu0 0.0
    %2165 = vmatprep.subr.mxu0 0.0
    %2166 = vmatpush1.msra.mxu0 0.0
    %2167 = vmatprep.subr.mxu0 0.0
    %2168 = vmatpush1.msra.mxu0 0.0
    %2169 = vmatprep.mubr.f32.mxu0 0.0
    %2170 = vmatmul.mubr.f32.gmra.mrb[0].mxu0 %v2082
    %v2171 = vpop.f32.mrb[0].mxu0
    %v2172 = vadd.f32 %v2079, %v2171
    %v2173 = vpop.f32.mrb[0].mxu0
    %2174 = vmatprep.mubr.f32.mxu0 0.0
    %2175 = vmatmul.mubr.f32.gmra.mrb[0].mxu0 %v2085
    %v2176 = vpop.f32.mrb[0].mxu0
    %v2177 = vadd.f32 %v2079, %v2176
    %v2178 = vpop.f32.mrb[0].mxu0
    %2179 = vmatprep.mubr.f32.mxu0 0.0
    %2180 = vmatmul.mubr.f32.gmra.mrb[0].mxu0 %v2088
    %v2181 = vpop.f32.mrb[0].mxu0
    %v2182 = vadd.f32 %v2079, %v2181
    %v2183 = vpop.f32.mrb[0].mxu0
    %2184 = vmatprep.mubr.f32.mxu0 0.0
    %2185 = vmatmul.mubr.f32.gmra.mrb[0].mxu0 %v2091
    %v2186 = vpop.f32.mrb[0].mxu0
    %v2187 = vadd.f32 %v2079, %v2186
    %v2188 = vpop.f32.mrb[0].mxu0
    %2189 = vmatprep.mubr.f32.mxu0 0.0
    %2190 = vmatmul.mubr.f32.gmra.mrb[0].mxu0 %v2094
    %v2191 = vpop.f32.mrb[0].mxu0
    %v2192 = vadd.f32 %v2079, %v2191
    %v2193 = vpop.f32.mrb[0].mxu0
    %2194 = vmatprep.mubr.f32.mxu0 0.0
    %2195 = vmatmul.mubr.f32.gmra.mrb[0].mxu0 %v2097
    %v2196 = vpop.f32.mrb[0].mxu0
    %v2197 = vadd.f32 %v2079, %v2196
    %v2198 = vpop.f32.mrb[0].mxu0
    %2199 = vmatprep.mubr.f32.mxu0 0.0
    %2200 = vmatmul.mubr.f32.gmra.mrb[0].mxu0 %v2100
    %v2201 = vpop.f32.mrb[0].mxu0
    %v2202 = vadd.f32 %v2079, %v2201
    %v2203 = vpop.f32.mrb[0].mxu0
    %2204 = vmatprep.mubr.f32.mxu0 0.0
    %2205 = vmatmul.mubr.f32.gmra.mrb[0].mxu0 %v2103
    %v2206 = vpop.f32.mrb[0].mxu0
    %v2207 = vadd.f32 %v2079, %v2206
    %v2208 = vpop.f32.mrb[0].mxu0
    %2209 = vdwg.mxu0
    %2210 = vst [vmem:[#allocation2] sm:$0xff] %v2172
    %2211 = vst [vmem:[#allocation2 + $0x8] sm:$0xff] %v2177
    %2212 = vst [vmem:[#allocation2 + $0x10] sm:$0xff] %v2182
    %2213 = vst [vmem:[#allocation2 + $0x18] sm:$0xff] %v2187
    %2214 = vst [vmem:[#allocation2 + $0x20] sm:$0xff] %v2192
    %2215 = vst [vmem:[#allocation2 + $0x28] sm:$0xff] %v2197
    %2216 = vst [vmem:[#allocation2 + $0x30] sm:$0xff] %v2202
    %2217 = vst [vmem:[#allocation2 + $0x38] sm:$0xff] %v2207
    %v2218 = vld [vmem:[#allocation9] sm:$0xff]
    %v2219 = vld [vmem:[#allocation9 + $0x8] sm:$0xff]
    %v2220 = vld [vmem:[#allocation9 + $0x10] sm:$0xff]
    %v2221 = vld [vmem:[#allocation9 + $0x18] sm:$0xff]
    %v2222 = vld [vmem:[#allocation2] sm:$0xff]
    %2223 = vmatprep.subr.mxu0 0.0
    %2224 = vmatpush1.msra.mxu0 %v2218
    %2225 = vmatprep.subr.mxu0 0.0
    %2226 = vmatpush1.msra.mxu0 %v2219
    %2227 = vmatprep.subr.mxu0 0.0
    %2228 = vmatpush1.msra.mxu0 %v2220
    %2229 = vmatprep.subr.mxu0 0.0
    %2230 = vmatpush1.msra.mxu0 %v2221
    %2231 = vmatprep.subr.mxu0 0.0
    %2232 = vmatpush1.msra.mxu0 0.0
    %2233 = vmatprep.subr.mxu0 0.0
    %2234 = vmatpush1.msra.mxu0 0.0
    %2235 = vmatprep.subr.mxu0 0.0
    %2236 = vmatpush1.msra.mxu0 0.0
    %2237 = vmatprep.subr.mxu0 0.0
    %2238 = vmatpush1.msra.mxu0 0.0
    %2239 = vmatprep.subr.mxu0 0.0
    %2240 = vmatpush1.msra.mxu0 0.0
    %2241 = vmatprep.subr.mxu0 0.0
    %2242 = vmatpush1.msra.mxu0 0.0
    %2243 = vmatprep.subr.mxu0 0.0
    %2244 = vmatpush1.msra.mxu0 0.0
    %2245 = vmatprep.subr.mxu0 0.0
    %2246 = vmatpush1.msra.mxu0 0.0
    %2247 = vmatprep.subr.mxu0 0.0
    %2248 = vmatpush1.msra.mxu0 0.0
    %2249 = vmatprep.subr.mxu0 0.0
    %2250 = vmatpush1.msra.mxu0 0.0
    %2251 = vmatprep.subr.mxu0 0.0
    %2252 = vmatpush1.msra.mxu0 0.0
    %2253 = vmatprep.subr.mxu0 0.0
    %2254 = vmatpush1.msra.mxu0 0.0
    %2255 = vmatprep.subr.mxu0 0.0
    %2256 = vmatpush1.msra.mxu0 0.0
    %2257 = vmatprep.subr.mxu0 0.0
    %2258 = vmatpush1.msra.mxu0 0.0
    %2259 = vmatprep.subr.mxu0 0.0
    %2260 = vmatpush1.msra.mxu0 0.0
    %2261 = vmatprep.subr.mxu0 0.0
    %2262 = vmatpush1.msra.mxu0 0.0
    %2263 = vmatprep.subr.mxu0 0.0
    %2264 = vmatpush1.msra.mxu0 0.0
    %2265 = vmatprep.subr.mxu0 0.0
    %2266 = vmatpush1.msra.mxu0 0.0
    %2267 = vmatprep.subr.mxu0 0.0
    %2268 = vmatpush1.msra.mxu0 0.0
    %2269 = vmatprep.subr.mxu0 0.0
    %2270 = vmatpush1.msra.mxu0 0.0
    %2271 = vmatprep.subr.mxu0 0.0
    %2272 = vmatpush1.msra.mxu0 0.0
    %2273 = vmatprep.subr.mxu0 0.0
    %2274 = vmatpush1.msra.mxu0 0.0
    %2275 = vmatprep.subr.mxu0 0.0
    %2276 = vmatpush1.msra.mxu0 0.0
    %2277 = vmatprep.subr.mxu0 0.0
    %2278 = vmatpush1.msra.mxu0 0.0
    %2279 = vmatprep.subr.mxu0 0.0
    %2280 = vmatpush1.msra.mxu0 0.0
    %2281 = vmatprep.subr.mxu0 0.0
    %2282 = vmatpush1.msra.mxu0 0.0
    %2283 = vmatprep.subr.mxu0 0.0
    %2284 = vmatpush1.msra.mxu0 0.0
    %2285 = vmatprep.subr.mxu0 0.0
    %2286 = vmatpush1.msra.mxu0 0.0
    %2287 = vmatprep.mubr.f32.mxu0 0.0
    %2288 = vmatmul.mubr.f32.gmra.mrb[0].mxu0 %v243
    %v2289 = vpop.f32.mrb[0].mxu0
    %v2290 = vadd.f32 0.0, %v2289
    %v2291 = vpop.f32.mrb[0].mxu0
    %2292 = vdwg.mxu0
    %v2293 = vadd.f32 %v2222, %v2290
    %v2294 = vxor.u32 %v2293, 2147483648
    %v2295 = vmul.f32 %v2294, 1.442695
    %v2296 = vpow.pop %v2295
    %v2297 = vadd.f32 %v2296, 1.0
    %v2298 = vrcp.pop %v2297
    %v2299 = vmul.f32 1.0, %v2298
    %v2300 = vtanh.pop %v2293
    %v2301 = vmul.f32 %v2299, 0.0
    %2303 = vrot.lane.b32.xlu0 %v2300, 64
    %v2304 = vpop.permute.xlu0 %2303
    %v2306 = vmul.f32 %v2299, %v2304
    %2308 = vrot.lane.b32.xlu0 %v2306, 32
    %v2309 = vpop.permute.xlu0 %2308
    %v2311 = vadd.f32 %v2301, %v2309
    %v2312 = vtanh.pop %v2311
    %2314 = vrot.lane.b32.xlu0 %v2312, 64
    %v2315 = vpop.permute.xlu0 %2314
    %v2317 = vmul.f32 %v2299, %v2315
    %2319 = vrot.lane.b32.xlu0 %v2317, 32
    %v2320 = vpop.permute.xlu0 %2319
    %2322 = vst.msk [vmem:[%s10] sm:$0xff] %vm241, %v2320
    %v2323 = vld [vmem:[#allocation2 + $0x8] sm:$0xff]
    %v2324 = vsel %vm241, %v2320, 0
    %2326 = vmatprep.subr.mxu0 0.0
    %2327 = vmatpush1.msra.mxu0 %v2218
    %2328 = vmatprep.subr.mxu0 0.0
    %2329 = vmatpush1.msra.mxu0 %v2219
    %2330 = vmatprep.subr.mxu0 0.0
    %2331 = vmatpush1.msra.mxu0 %v2220
    %2332 = vmatprep.subr.mxu0 0.0
    %2333 = vmatpush1.msra.mxu0 %v2221
    %2334 = vmatprep.subr.mxu0 0.0
    %2335 = vmatpush1.msra.mxu0 0.0
    %2336 = vmatprep.subr.mxu0 0.0
    %2337 = vmatpush1.msra.mxu0 0.0
    %2338 = vmatprep.subr.mxu0 0.0
    %2339 = vmatpush1.msra.mxu0 0.0
    %2340 = vmatprep.subr.mxu0 0.0
    %2341 = vmatpush1.msra.mxu0 0.0
    %2342 = vmatprep.subr.mxu0 0.0
    %2343 = vmatpush1.msra.mxu0 0.0
    %2344 = vmatprep.subr.mxu0 0.0
    %2345 = vmatpush1.msra.mxu0 0.0
    %2346 = vmatprep.subr.mxu0 0.0
    %2347 = vmatpush1.msra.mxu0 0.0
    %2348 = vmatprep.subr.mxu0 0.0
    %2349 = vmatpush1.msra.mxu0 0.0
    %2350 = vmatprep.subr.mxu0 0.0
    %2351 = vmatpush1.msra.mxu0 0.0
    %2352 = vmatprep.subr.mxu0 0.0
    %2353 = vmatpush1.msra.mxu0 0.0
    %2354 = vmatprep.subr.mxu0 0.0
    %2355 = vmatpush1.msra.mxu0 0.0
    %2356 = vmatprep.subr.mxu0 0.0
    %2357 = vmatpush1.msra.mxu0 0.0
    %2358 = vmatprep.subr.mxu0 0.0
    %2359 = vmatpush1.msra.mxu0 0.0
    %2360 = vmatprep.subr.mxu0 0.0
    %2361 = vmatpush1.msra.mxu0 0.0
    %2362 = vmatprep.subr.mxu0 0.0
    %2363 = vmatpush1.msra.mxu0 0.0
    %2364 = vmatprep.subr.mxu0 0.0
    %2365 = vmatpush1.msra.mxu0 0.0
    %2366 = vmatprep.subr.mxu0 0.0
    %2367 = vmatpush1.msra.mxu0 0.0
    %2368 = vmatprep.subr.mxu0 0.0
    %2369 = vmatpush1.msra.mxu0 0.0
    %2370 = vmatprep.subr.mxu0 0.0
    %2371 = vmatpush1.msra.mxu0 0.0
    %2372 = vmatprep.subr.mxu0 0.0
    %2373 = vmatpush1.msra.mxu0 0.0
    %2374 = vmatprep.subr.mxu0 0.0
    %2375 = vmatpush1.msra.mxu0 0.0
    %2376 = vmatprep.subr.mxu0 0.0
    %2377 = vmatpush1.msra.mxu0 0.0
    %2378 = vmatprep.subr.mxu0 0.0
    %2379 = vmatpush1.msra.mxu0 0.0
    %2380 = vmatprep.subr.mxu0 0.0
    %2381 = vmatpush1.msra.mxu0 0.0
    %2382 = vmatprep.subr.mxu0 0.0
    %2383 = vmatpush1.msra.mxu0 0.0
    %2384 = vmatprep.subr.mxu0 0.0
    %2385 = vmatpush1.msra.mxu0 0.0
    %2386 = vmatprep.subr.mxu0 0.0
    %2387 = vmatpush1.msra.mxu0 0.0
    %2388 = vmatprep.subr.mxu0 0.0
    %2389 = vmatpush1.msra.mxu0 0.0
    %2390 = vmatprep.mubr.f32.mxu0 0.0
    %2391 = vmatmul.mubr.f32.gmra.mrb[0].mxu0 %v2324
    %v2392 = vpop.f32.mrb[0].mxu0
    %v2393 = vadd.f32 0.0, %v2392
    %v2394 = vpop.f32.mrb[0].mxu0
    %2395 = vdwg.mxu0
    %v2396 = vadd.f32 %v2323, %v2393
    %v2397 = vxor.u32 %v2396, 2147483648
    %v2398 = vmul.f32 %v2397, 1.442695
    %v2399 = vpow.pop %v2398
    %v2400 = vadd.f32 %v2399, 1.0
    %v2401 = vrcp.pop %v2400
    %v2402 = vmul.f32 1.0, %v2401
    %v2403 = vtanh.pop %v2396
    %v2404 = vmul.f32 %v2402, %v2311
    %2406 = vrot.lane.b32.xlu0 %v2403, 64
    %v2407 = vpop.permute.xlu0 %2406
    %v2409 = vmul.f32 %v2402, %v2407
    %2411 = vrot.lane.b32.xlu0 %v2409, 32
    %v2412 = vpop.permute.xlu0 %2411
    %v2414 = vadd.f32 %v2404, %v2412
    %v2415 = vtanh.pop %v2414
    %2417 = vrot.lane.b32.xlu0 %v2415, 64
    %v2418 = vpop.permute.xlu0 %2417
    %v2420 = vmul.f32 %v2402, %v2418
    %2422 = vrot.lane.b32.xlu0 %v2420, 32
    %v2423 = vpop.permute.xlu0 %2422
    %2425 = vst.msk [vmem:[%s10 + $0x8] sm:$0xff] %vm241, %v2423
    %v2426 = vld [vmem:[#allocation2 + $0x10] sm:$0xff]
    %v2427 = vsel %vm241, %v2423, 0
    %2429 = vmatprep.subr.mxu0 0.0
    %2430 = vmatpush1.msra.mxu0 %v2218
    %2431 = vmatprep.subr.mxu0 0.0
    %2432 = vmatpush1.msra.mxu0 %v2219
    %2433 = vmatprep.subr.mxu0 0.0
    %2434 = vmatpush1.msra.mxu0 %v2220
    %2435 = vmatprep.subr.mxu0 0.0
    %2436 = vmatpush1.msra.mxu0 %v2221
    %2437 = vmatprep.subr.mxu0 0.0
    %2438 = vmatpush1.msra.mxu0 0.0
    %2439 = vmatprep.subr.mxu0 0.0
    %2440 = vmatpush1.msra.mxu0 0.0
    %2441 = vmatprep.subr.mxu0 0.0
    %2442 = vmatpush1.msra.mxu0 0.0
    %2443 = vmatprep.subr.mxu0 0.0
    %2444 = vmatpush1.msra.mxu0 0.0
    %2445 = vmatprep.subr.mxu0 0.0
    %2446 = vmatpush1.msra.mxu0 0.0
    %2447 = vmatprep.subr.mxu0 0.0
    %2448 = vmatpush1.msra.mxu0 0.0
    %2449 = vmatprep.subr.mxu0 0.0
    %2450 = vmatpush1.msra.mxu0 0.0
    %2451 = vmatprep.subr.mxu0 0.0
    %2452 = vmatpush1.msra.mxu0 0.0
    %2453 = vmatprep.subr.mxu0 0.0
    %2454 = vmatpush1.msra.mxu0 0.0
    %2455 = vmatprep.subr.mxu0 0.0
    %2456 = vmatpush1.msra.mxu0 0.0
    %2457 = vmatprep.subr.mxu0 0.0
    %2458 = vmatpush1.msra.mxu0 0.0
    %2459 = vmatprep.subr.mxu0 0.0
    %2460 = vmatpush1.msra.mxu0 0.0
    %2461 = vmatprep.subr.mxu0 0.0
    %2462 = vmatpush1.msra.mxu0 0.0
    %2463 = vmatprep.subr.mxu0 0.0
    %2464 = vmatpush1.msra.mxu0 0.0
    %2465 = vmatprep.subr.mxu0 0.0
    %2466 = vmatpush1.msra.mxu0 0.0
    %2467 = vmatprep.subr.mxu0 0.0
    %2468 = vmatpush1.msra.mxu0 0.0
    %2469 = vmatprep.subr.mxu0 0.0
    %2470 = vmatpush1.msra.mxu0 0.0
    %2471 = vmatprep.subr.mxu0 0.0
    %2472 = vmatpush1.msra.mxu0 0.0
    %2473 = vmatprep.subr.mxu0 0.0
    %2474 = vmatpush1.msra.mxu0 0.0
    %2475 = vmatprep.subr.mxu0 0.0
    %2476 = vmatpush1.msra.mxu0 0.0
    %2477 = vmatprep.subr.mxu0 0.0
    %2478 = vmatpush1.msra.mxu0 0.0
    %2479 = vmatprep.subr.mxu0 0.0
    %2480 = vmatpush1.msra.mxu0 0.0
    %2481 = vmatprep.subr.mxu0 0.0
    %2482 = vmatpush1.msra.mxu0 0.0
    %2483 = vmatprep.subr.mxu0 0.0
    %2484 = vmatpush1.msra.mxu0 0.0
    %2485 = vmatprep.subr.mxu0 0.0
    %2486 = vmatpush1.msra.mxu0 0.0
    %2487 = vmatprep.subr.mxu0 0.0
    %2488 = vmatpush1.msra.mxu0 0.0
    %2489 = vmatprep.subr.mxu0 0.0
    %2490 = vmatpush1.msra.mxu0 0.0
    %2491 = vmatprep.subr.mxu0 0.0
    %2492 = vmatpush1.msra.mxu0 0.0
    %2493 = vmatprep.mubr.f32.mxu0 0.0
    %2494 = vmatmul.mubr.f32.gmra.mrb[0].mxu0 %v2427
    %v2495 = vpop.f32.mrb[0].mxu0
    %v2496 = vadd.f32 0.0, %v2495
    %v2497 = vpop.f32.mrb[0].mxu0
    %2498 = vdwg.mxu0
    %v2499 = vadd.f32 %v2426, %v2496
    %v2500 = vxor.u32 %v2499, 2147483648
    %v2501 = vmul.f32 %v2500, 1.442695
    %v2502 = vpow.pop %v2501
    %v2503 = vadd.f32 %v2502, 1.0
    %v2504 = vrcp.pop %v2503
    %v2505 = vmul.f32 1.0, %v2504
    %v2506 = vtanh.pop %v2499
    %v2507 = vmul.f32 %v2505, %v2414
    %2509 = vrot.lane.b32.xlu0 %v2506, 64
    %v2510 = vpop.permute.xlu0 %2509
    %v2512 = vmul.f32 %v2505, %v2510
    %2514 = vrot.lane.b32.xlu0 %v2512, 32
    %v2515 = vpop.permute.xlu0 %2514
    %v2517 = vadd.f32 %v2507, %v2515
    %v2518 = vtanh.pop %v2517
    %2520 = vrot.lane.b32.xlu0 %v2518, 64
    %v2521 = vpop.permute.xlu0 %2520
    %v2523 = vmul.f32 %v2505, %v2521
    %2525 = vrot.lane.b32.xlu0 %v2523, 32
    %v2526 = vpop.permute.xlu0 %2525
    %2528 = vst.msk [vmem:[%s10 + $0x10] sm:$0xff] %vm241, %v2526
    %v2529 = vld [vmem:[#allocation2 + $0x18] sm:$0xff]
    %v2530 = vsel %vm241, %v2526, 0
    %2532 = vmatprep.subr.mxu0 0.0
    %2533 = vmatpush1.msra.mxu0 %v2218
    %2534 = vmatprep.subr.mxu0 0.0
    %2535 = vmatpush1.msra.mxu0 %v2219
    %2536 = vmatprep.subr.mxu0 0.0
    %2537 = vmatpush1.msra.mxu0 %v2220
    %2538 = vmatprep.subr.mxu0 0.0
    %2539 = vmatpush1.msra.mxu0 %v2221
    %2540 = vmatprep.subr.mxu0 0.0
    %2541 = vmatpush1.msra.mxu0 0.0
    %2542 = vmatprep.subr.mxu0 0.0
    %2543 = vmatpush1.msra.mxu0 0.0
    %2544 = vmatprep.subr.mxu0 0.0
    %2545 = vmatpush1.msra.mxu0 0.0
    %2546 = vmatprep.subr.mxu0 0.0
    %2547 = vmatpush1.msra.mxu0 0.0
    %2548 = vmatprep.subr.mxu0 0.0
    %2549 = vmatpush1.msra.mxu0 0.0
    %2550 = vmatprep.subr.mxu0 0.0
    %2551 = vmatpush1.msra.mxu0 0.0
    %2552 = vmatprep.subr.mxu0 0.0
    %2553 = vmatpush1.msra.mxu0 0.0
    %2554 = vmatprep.subr.mxu0 0.0
    %2555 = vmatpush1.msra.mxu0 0.0
    %2556 = vmatprep.subr.mxu0 0.0
    %2557 = vmatpush1.msra.mxu0 0.0
    %2558 = vmatprep.subr.mxu0 0.0
    %2559 = vmatpush1.msra.mxu0 0.0
    %2560 = vmatprep.subr.mxu0 0.0
    %2561 = vmatpush1.msra.mxu0 0.0
    %2562 = vmatprep.subr.mxu0 0.0
    %2563 = vmatpush1.msra.mxu0 0.0
    %2564 = vmatprep.subr.mxu0 0.0
    %2565 = vmatpush1.msra.mxu0 0.0
    %2566 = vmatprep.subr.mxu0 0.0
    %2567 = vmatpush1.msra.mxu0 0.0
    %2568 = vmatprep.subr.mxu0 0.0
    %2569 = vmatpush1.msra.mxu0 0.0
    %2570 = vmatprep.subr.mxu0 0.0
    %2571 = vmatpush1.msra.mxu0 0.0
    %2572 = vmatprep.subr.mxu0 0.0
    %2573 = vmatpush1.msra.mxu0 0.0
    %2574 = vmatprep.subr.mxu0 0.0
    %2575 = vmatpush1.msra.mxu0 0.0
    %2576 = vmatprep.subr.mxu0 0.0
    %2577 = vmatpush1.msra.mxu0 0.0
    %2578 = vmatprep.subr.mxu0 0.0
    %2579 = vmatpush1.msra.mxu0 0.0
    %2580 = vmatprep.subr.mxu0 0.0
    %2581 = vmatpush1.msra.mxu0 0.0
    %2582 = vmatprep.subr.mxu0 0.0
    %2583 = vmatpush1.msra.mxu0 0.0
    %2584 = vmatprep.subr.mxu0 0.0
    %2585 = vmatpush1.msra.mxu0 0.0
    %2586 = vmatprep.subr.mxu0 0.0
    %2587 = vmatpush1.msra.mxu0 0.0
    %2588 = vmatprep.subr.mxu0 0.0
    %2589 = vmatpush1.msra.mxu0 0.0
    %2590 = vmatprep.subr.mxu0 0.0
    %2591 = vmatpush1.msra.mxu0 0.0
    %2592 = vmatprep.subr.mxu0 0.0
    %2593 = vmatpush1.msra.mxu0 0.0
    %2594 = vmatprep.subr.mxu0 0.0
    %2595 = vmatpush1.msra.mxu0 0.0
    %2596 = vmatprep.mubr.f32.mxu0 0.0
    %2597 = vmatmul.mubr.f32.gmra.mrb[0].mxu0 %v2530
    %v2598 = vpop.f32.mrb[0].mxu0
    %v2599 = vadd.f32 0.0, %v2598
    %v2600 = vpop.f32.mrb[0].mxu0
    %2601 = vdwg.mxu0
    %v2602 = vadd.f32 %v2529, %v2599
    %v2603 = vxor.u32 %v2602, 2147483648
    %v2604 = vmul.f32 %v2603, 1.442695
    %v2605 = vpow.pop %v2604
    %v2606 = vadd.f32 %v2605, 1.0
    %v2607 = vrcp.pop %v2606
    %v2608 = vmul.f32 1.0, %v2607
    %v2609 = vtanh.pop %v2602
    %v2610 = vmul.f32 %v2608, %v2517
    %2612 = vrot.lane.b32.xlu0 %v2609, 64
    %v2613 = vpop.permute.xlu0 %2612
    %v2615 = vmul.f32 %v2608, %v2613
    %2617 = vrot.lane.b32.xlu0 %v2615, 32
    %v2618 = vpop.permute.xlu0 %2617
    %v2620 = vadd.f32 %v2610, %v2618
    %v2621 = vtanh.pop %v2620
    %2623 = vrot.lane.b32.xlu0 %v2621, 64
    %v2624 = vpop.permute.xlu0 %2623
    %v2626 = vmul.f32 %v2608, %v2624
    %2628 = vrot.lane.b32.xlu0 %v2626, 32
    %v2629 = vpop.permute.xlu0 %2628
    %2631 = vst.msk [vmem:[%s10 + $0x18] sm:$0xff] %vm241, %v2629
    %v2632 = vld [vmem:[#allocation2 + $0x20] sm:$0xff]
    %v2633 = vsel %vm241, %v2629, 0
    %2635 = vmatprep.subr.mxu0 0.0
    %2636 = vmatpush1.msra.mxu0 %v2218
    %2637 = vmatprep.subr.mxu0 0.0
    %2638 = vmatpush1.msra.mxu0 %v2219
    %2639 = vmatprep.subr.mxu0 0.0
    %2640 = vmatpush1.msra.mxu0 %v2220
    %2641 = vmatprep.subr.mxu0 0.0
    %2642 = vmatpush1.msra.mxu0 %v2221
    %2643 = vmatprep.subr.mxu0 0.0
    %2644 = vmatpush1.msra.mxu0 0.0
    %2645 = vmatprep.subr.mxu0 0.0
    %2646 = vmatpush1.msra.mxu0 0.0
    %2647 = vmatprep.subr.mxu0 0.0
    %2648 = vmatpush1.msra.mxu0 0.0
    %2649 = vmatprep.subr.mxu0 0.0
    %2650 = vmatpush1.msra.mxu0 0.0
    %2651 = vmatprep.subr.mxu0 0.0
    %2652 = vmatpush1.msra.mxu0 0.0
    %2653 = vmatprep.subr.mxu0 0.0
    %2654 = vmatpush1.msra.mxu0 0.0
    %2655 = vmatprep.subr.mxu0 0.0
    %2656 = vmatpush1.msra.mxu0 0.0
    %2657 = vmatprep.subr.mxu0 0.0
    %2658 = vmatpush1.msra.mxu0 0.0
    %2659 = vmatprep.subr.mxu0 0.0
    %2660 = vmatpush1.msra.mxu0 0.0
    %2661 = vmatprep.subr.mxu0 0.0
    %2662 = vmatpush1.msra.mxu0 0.0
    %2663 = vmatprep.subr.mxu0 0.0
    %2664 = vmatpush1.msra.mxu0 0.0
    %2665 = vmatprep.subr.mxu0 0.0
    %2666 = vmatpush1.msra.mxu0 0.0
    %2667 = vmatprep.subr.mxu0 0.0
    %2668 = vmatpush1.msra.mxu0 0.0
    %2669 = vmatprep.subr.mxu0 0.0
    %2670 = vmatpush1.msra.mxu0 0.0
    %2671 = vmatprep.subr.mxu0 0.0
    %2672 = vmatpush1.msra.mxu0 0.0
    %2673 = vmatprep.subr.mxu0 0.0
    %2674 = vmatpush1.msra.mxu0 0.0
    %2675 = vmatprep.subr.mxu0 0.0
    %2676 = vmatpush1.msra.mxu0 0.0
    %2677 = vmatprep.subr.mxu0 0.0
    %2678 = vmatpush1.msra.mxu0 0.0
    %2679 = vmatprep.subr.mxu0 0.0
    %2680 = vmatpush1.msra.mxu0 0.0
    %2681 = vmatprep.subr.mxu0 0.0
    %2682 = vmatpush1.msra.mxu0 0.0
    %2683 = vmatprep.subr.mxu0 0.0
    %2684 = vmatpush1.msra.mxu0 0.0
    %2685 = vmatprep.subr.mxu0 0.0
    %2686 = vmatpush1.msra.mxu0 0.0
    %2687 = vmatprep.subr.mxu0 0.0
    %2688 = vmatpush1.msra.mxu0 0.0
    %2689 = vmatprep.subr.mxu0 0.0
    %2690 = vmatpush1.msra.mxu0 0.0
    %2691 = vmatprep.subr.mxu0 0.0
    %2692 = vmatpush1.msra.mxu0 0.0
    %2693 = vmatprep.subr.mxu0 0.0
    %2694 = vmatpush1.msra.mxu0 0.0
    %2695 = vmatprep.subr.mxu0 0.0
    %2696 = vmatpush1.msra.mxu0 0.0
    %2697 = vmatprep.subr.mxu0 0.0
    %2698 = vmatpush1.msra.mxu0 0.0
    %2699 = vmatprep.mubr.f32.mxu0 0.0
    %2700 = vmatmul.mubr.f32.gmra.mrb[0].mxu0 %v2633
    %v2701 = vpop.f32.mrb[0].mxu0
    %v2702 = vadd.f32 0.0, %v2701
    %v2703 = vpop.f32.mrb[0].mxu0
    %2704 = vdwg.mxu0
    %v2705 = vadd.f32 %v2632, %v2702
    %v2706 = vxor.u32 %v2705, 2147483648
    %v2707 = vmul.f32 %v2706, 1.442695
    %v2708 = vpow.pop %v2707
    %v2709 = vadd.f32 %v2708, 1.0
    %v2710 = vrcp.pop %v2709
    %v2711 = vmul.f32 1.0, %v2710
    %v2712 = vtanh.pop %v2705
    %v2713 = vmul.f32 %v2711, %v2620
    %2715 = vrot.lane.b32.xlu0 %v2712, 64
    %v2716 = vpop.permute.xlu0 %2715
    %v2718 = vmul.f32 %v2711, %v2716
    %2720 = vrot.lane.b32.xlu0 %v2718, 32
    %v2721 = vpop.permute.xlu0 %2720
    %v2723 = vadd.f32 %v2713, %v2721
    %v2724 = vtanh.pop %v2723
    %2726 = vrot.lane.b32.xlu0 %v2724, 64
    %v2727 = vpop.permute.xlu0 %2726
    %v2729 = vmul.f32 %v2711, %v2727
    %2731 = vrot.lane.b32.xlu0 %v2729, 32
    %v2732 = vpop.permute.xlu0 %2731
    %2734 = vst.msk [vmem:[%s10 + $0x20] sm:$0xff] %vm241, %v2732
    %v2735 = vld [vmem:[#allocation2 + $0x28] sm:$0xff]
    %v2736 = vsel %vm241, %v2732, 0
    %2738 = vmatprep.subr.mxu0 0.0
    %2739 = vmatpush1.msra.mxu0 %v2218
    %2740 = vmatprep.subr.mxu0 0.0
    %2741 = vmatpush1.msra.mxu0 %v2219
    %2742 = vmatprep.subr.mxu0 0.0
    %2743 = vmatpush1.msra.mxu0 %v2220
    %2744 = vmatprep.subr.mxu0 0.0
    %2745 = vmatpush1.msra.mxu0 %v2221
    %2746 = vmatprep.subr.mxu0 0.0
    %2747 = vmatpush1.msra.mxu0 0.0
    %2748 = vmatprep.subr.mxu0 0.0
    %2749 = vmatpush1.msra.mxu0 0.0
    %2750 = vmatprep.subr.mxu0 0.0
    %2751 = vmatpush1.msra.mxu0 0.0
    %2752 = vmatprep.subr.mxu0 0.0
    %2753 = vmatpush1.msra.mxu0 0.0
    %2754 = vmatprep.subr.mxu0 0.0
    %2755 = vmatpush1.msra.mxu0 0.0
    %2756 = vmatprep.subr.mxu0 0.0
    %2757 = vmatpush1.msra.mxu0 0.0
    %2758 = vmatprep.subr.mxu0 0.0
    %2759 = vmatpush1.msra.mxu0 0.0
    %2760 = vmatprep.subr.mxu0 0.0
    %2761 = vmatpush1.msra.mxu0 0.0
    %2762 = vmatprep.subr.mxu0 0.0
    %2763 = vmatpush1.msra.mxu0 0.0
    %2764 = vmatprep.subr.mxu0 0.0
    %2765 = vmatpush1.msra.mxu0 0.0
    %2766 = vmatprep.subr.mxu0 0.0
    %2767 = vmatpush1.msra.mxu0 0.0
    %2768 = vmatprep.subr.mxu0 0.0
    %2769 = vmatpush1.msra.mxu0 0.0
    %2770 = vmatprep.subr.mxu0 0.0
    %2771 = vmatpush1.msra.mxu0 0.0
    %2772 = vmatprep.subr.mxu0 0.0
    %2773 = vmatpush1.msra.mxu0 0.0
    %2774 = vmatprep.subr.mxu0 0.0
    %2775 = vmatpush1.msra.mxu0 0.0
    %2776 = vmatprep.subr.mxu0 0.0
    %2777 = vmatpush1.msra.mxu0 0.0
    %2778 = vmatprep.subr.mxu0 0.0
    %2779 = vmatpush1.msra.mxu0 0.0
    %2780 = vmatprep.subr.mxu0 0.0
    %2781 = vmatpush1.msra.mxu0 0.0
    %2782 = vmatprep.subr.mxu0 0.0
    %2783 = vmatpush1.msra.mxu0 0.0
    %2784 = vmatprep.subr.mxu0 0.0
    %2785 = vmatpush1.msra.mxu0 0.0
    %2786 = vmatprep.subr.mxu0 0.0
    %2787 = vmatpush1.msra.mxu0 0.0
    %2788 = vmatprep.subr.mxu0 0.0
    %2789 = vmatpush1.msra.mxu0 0.0
    %2790 = vmatprep.subr.mxu0 0.0
    %2791 = vmatpush1.msra.mxu0 0.0
    %2792 = vmatprep.subr.mxu0 0.0
    %2793 = vmatpush1.msra.mxu0 0.0
    %2794 = vmatprep.subr.mxu0 0.0
    %2795 = vmatpush1.msra.mxu0 0.0
    %2796 = vmatprep.subr.mxu0 0.0
    %2797 = vmatpush1.msra.mxu0 0.0
    %2798 = vmatprep.subr.mxu0 0.0
    %2799 = vmatpush1.msra.mxu0 0.0
    %2800 = vmatprep.subr.mxu0 0.0
    %2801 = vmatpush1.msra.mxu0 0.0
    %2802 = vmatprep.mubr.f32.mxu0 0.0
    %2803 = vmatmul.mubr.f32.gmra.mrb[0].mxu0 %v2736
    %v2804 = vpop.f32.mrb[0].mxu0
    %v2805 = vadd.f32 0.0, %v2804
    %v2806 = vpop.f32.mrb[0].mxu0
    %2807 = vdwg.mxu0
    %v2808 = vadd.f32 %v2735, %v2805
    %v2809 = vxor.u32 %v2808, 2147483648
    %v2810 = vmul.f32 %v2809, 1.442695
    %v2811 = vpow.pop %v2810
    %v2812 = vadd.f32 %v2811, 1.0
    %v2813 = vrcp.pop %v2812
    %v2814 = vmul.f32 1.0, %v2813
    %v2815 = vtanh.pop %v2808
    %v2816 = vmul.f32 %v2814, %v2723
    %2818 = vrot.lane.b32.xlu0 %v2815, 64
    %v2819 = vpop.permute.xlu0 %2818
    %v2821 = vmul.f32 %v2814, %v2819
    %2823 = vrot.lane.b32.xlu0 %v2821, 32
    %v2824 = vpop.permute.xlu0 %2823
    %v2826 = vadd.f32 %v2816, %v2824
    %v2827 = vtanh.pop %v2826
    %2829 = vrot.lane.b32.xlu0 %v2827, 64
    %v2830 = vpop.permute.xlu0 %2829
    %v2832 = vmul.f32 %v2814, %v2830
    %2834 = vrot.lane.b32.xlu0 %v2832, 32
    %v2835 = vpop.permute.xlu0 %2834
    %2837 = vst.msk [vmem:[%s10 + $0x28] sm:$0xff] %vm241, %v2835
    %v2838 = vld [vmem:[#allocation2 + $0x30] sm:$0xff]
    %v2839 = vsel %vm241, %v2835, 0
    %2841 = vmatprep.subr.mxu0 0.0
    %2842 = vmatpush1.msra.mxu0 %v2218
    %2843 = vmatprep.subr.mxu0 0.0
    %2844 = vmatpush1.msra.mxu0 %v2219
    %2845 = vmatprep.subr.mxu0 0.0
    %2846 = vmatpush1.msra.mxu0 %v2220
    %2847 = vmatprep.subr.mxu0 0.0
    %2848 = vmatpush1.msra.mxu0 %v2221
    %2849 = vmatprep.subr.mxu0 0.0
    %2850 = vmatpush1.msra.mxu0 0.0
    %2851 = vmatprep.subr.mxu0 0.0
    %2852 = vmatpush1.msra.mxu0 0.0
    %2853 = vmatprep.subr.mxu0 0.0
    %2854 = vmatpush1.msra.mxu0 0.0
    %2855 = vmatprep.subr.mxu0 0.0
    %2856 = vmatpush1.msra.mxu0 0.0
    %2857 = vmatprep.subr.mxu0 0.0
    %2858 = vmatpush1.msra.mxu0 0.0
    %2859 = vmatprep.subr.mxu0 0.0
    %2860 = vmatpush1.msra.mxu0 0.0
    %2861 = vmatprep.subr.mxu0 0.0
    %2862 = vmatpush1.msra.mxu0 0.0
    %2863 = vmatprep.subr.mxu0 0.0
    %2864 = vmatpush1.msra.mxu0 0.0
    %2865 = vmatprep.subr.mxu0 0.0
    %2866 = vmatpush1.msra.mxu0 0.0
    %2867 = vmatprep.subr.mxu0 0.0
    %2868 = vmatpush1.msra.mxu0 0.0
    %2869 = vmatprep.subr.mxu0 0.0
    %2870 = vmatpush1.msra.mxu0 0.0
    %2871 = vmatprep.subr.mxu0 0.0
    %2872 = vmatpush1.msra.mxu0 0.0
    %2873 = vmatprep.subr.mxu0 0.0
    %2874 = vmatpush1.msra.mxu0 0.0
    %2875 = vmatprep.subr.mxu0 0.0
    %2876 = vmatpush1.msra.mxu0 0.0
    %2877 = vmatprep.subr.mxu0 0.0
    %2878 = vmatpush1.msra.mxu0 0.0
    %2879 = vmatprep.subr.mxu0 0.0
    %2880 = vmatpush1.msra.mxu0 0.0
    %2881 = vmatprep.subr.mxu0 0.0
    %2882 = vmatpush1.msra.mxu0 0.0
    %2883 = vmatprep.subr.mxu0 0.0
    %2884 = vmatpush1.msra.mxu0 0.0
    %2885 = vmatprep.subr.mxu0 0.0
    %2886 = vmatpush1.msra.mxu0 0.0
    %2887 = vmatprep.subr.mxu0 0.0
    %2888 = vmatpush1.msra.mxu0 0.0
    %2889 = vmatprep.subr.mxu0 0.0
    %2890 = vmatpush1.msra.mxu0 0.0
    %2891 = vmatprep.subr.mxu0 0.0
    %2892 = vmatpush1.msra.mxu0 0.0
    %2893 = vmatprep.subr.mxu0 0.0
    %2894 = vmatpush1.msra.mxu0 0.0
    %2895 = vmatprep.subr.mxu0 0.0
    %2896 = vmatpush1.msra.mxu0 0.0
    %2897 = vmatprep.subr.mxu0 0.0
    %2898 = vmatpush1.msra.mxu0 0.0
    %2899 = vmatprep.subr.mxu0 0.0
    %2900 = vmatpush1.msra.mxu0 0.0
    %2901 = vmatprep.subr.mxu0 0.0
    %2902 = vmatpush1.msra.mxu0 0.0
    %2903 = vmatprep.subr.mxu0 0.0
    %2904 = vmatpush1.msra.mxu0 0.0
    %2905 = vmatprep.mubr.f32.mxu0 0.0
    %2906 = vmatmul.mubr.f32.gmra.mrb[0].mxu0 %v2839
    %v2907 = vpop.f32.mrb[0].mxu0
    %v2908 = vadd.f32 0.0, %v2907
    %v2909 = vpop.f32.mrb[0].mxu0
    %2910 = vdwg.mxu0
    %v2911 = vadd.f32 %v2838, %v2908
    %v2912 = vxor.u32 %v2911, 2147483648
    %v2913 = vmul.f32 %v2912, 1.442695
    %v2914 = vpow.pop %v2913
    %v2915 = vadd.f32 %v2914, 1.0
    %v2916 = vrcp.pop %v2915
    %v2917 = vmul.f32 1.0, %v2916
    %v2918 = vtanh.pop %v2911
    %v2919 = vmul.f32 %v2917, %v2826
    %2921 = vrot.lane.b32.xlu0 %v2918, 64
    %v2922 = vpop.permute.xlu0 %2921
    %v2924 = vmul.f32 %v2917, %v2922
    %2926 = vrot.lane.b32.xlu0 %v2924, 32
    %v2927 = vpop.permute.xlu0 %2926
    %v2929 = vadd.f32 %v2919, %v2927
    %v2930 = vtanh.pop %v2929
    %2932 = vrot.lane.b32.xlu0 %v2930, 64
    %v2933 = vpop.permute.xlu0 %2932
    %v2935 = vmul.f32 %v2917, %v2933
    %2937 = vrot.lane.b32.xlu0 %v2935, 32
    %v2938 = vpop.permute.xlu0 %2937
    %2940 = vst.msk [vmem:[%s10 + $0x30] sm:$0xff] %vm241, %v2938
    %v2941 = vld [vmem:[#allocation2 + $0x38] sm:$0xff]
    %v2942 = vsel %vm241, %v2938, 0
    %2944 = vmatprep.subr.mxu0 0.0
    %2945 = vmatpush1.msra.mxu0 %v2218
    %2946 = vmatprep.subr.mxu0 0.0
    %2947 = vmatpush1.msra.mxu0 %v2219
    %2948 = vmatprep.subr.mxu0 0.0
    %2949 = vmatpush1.msra.mxu0 %v2220
    %2950 = vmatprep.subr.mxu0 0.0
    %2951 = vmatpush1.msra.mxu0 %v2221
    %2952 = vmatprep.subr.mxu0 0.0
    %2953 = vmatpush1.msra.mxu0 0.0
    %2954 = vmatprep.subr.mxu0 0.0
    %2955 = vmatpush1.msra.mxu0 0.0
    %2956 = vmatprep.subr.mxu0 0.0
    %2957 = vmatpush1.msra.mxu0 0.0
    %2958 = vmatprep.subr.mxu0 0.0
    %2959 = vmatpush1.msra.mxu0 0.0
    %2960 = vmatprep.subr.mxu0 0.0
    %2961 = vmatpush1.msra.mxu0 0.0
    %2962 = vmatprep.subr.mxu0 0.0
    %2963 = vmatpush1.msra.mxu0 0.0
    %2964 = vmatprep.subr.mxu0 0.0
    %2965 = vmatpush1.msra.mxu0 0.0
    %2966 = vmatprep.subr.mxu0 0.0
    %2967 = vmatpush1.msra.mxu0 0.0
    %2968 = vmatprep.subr.mxu0 0.0
    %2969 = vmatpush1.msra.mxu0 0.0
    %2970 = vmatprep.subr.mxu0 0.0
    %2971 = vmatpush1.msra.mxu0 0.0
    %2972 = vmatprep.subr.mxu0 0.0
    %2973 = vmatpush1.msra.mxu0 0.0
    %2974 = vmatprep.subr.mxu0 0.0
    %2975 = vmatpush1.msra.mxu0 0.0
    %2976 = vmatprep.subr.mxu0 0.0
    %2977 = vmatpush1.msra.mxu0 0.0
    %2978 = vmatprep.subr.mxu0 0.0
    %2979 = vmatpush1.msra.mxu0 0.0
    %2980 = vmatprep.subr.mxu0 0.0
    %2981 = vmatpush1.msra.mxu0 0.0
    %2982 = vmatprep.subr.mxu0 0.0
    %2983 = vmatpush1.msra.mxu0 0.0
    %2984 = vmatprep.subr.mxu0 0.0
    %2985 = vmatpush1.msra.mxu0 0.0
    %2986 = vmatprep.subr.mxu0 0.0
    %2987 = vmatpush1.msra.mxu0 0.0
    %2988 = vmatprep.subr.mxu0 0.0
    %2989 = vmatpush1.msra.mxu0 0.0
    %2990 = vmatprep.subr.mxu0 0.0
    %2991 = vmatpush1.msra.mxu0 0.0
    %2992 = vmatprep.subr.mxu0 0.0
    %2993 = vmatpush1.msra.mxu0 0.0
    %2994 = vmatprep.subr.mxu0 0.0
    %2995 = vmatpush1.msra.mxu0 0.0
    %2996 = vmatprep.subr.mxu0 0.0
    %2997 = vmatpush1.msra.mxu0 0.0
    %2998 = vmatprep.subr.mxu0 0.0
    %2999 = vmatpush1.msra.mxu0 0.0
    %3000 = vmatprep.subr.mxu0 0.0
    %3001 = vmatpush1.msra.mxu0 0.0
    %3002 = vmatprep.subr.mxu0 0.0
    %3003 = vmatpush1.msra.mxu0 0.0
    %3004 = vmatprep.subr.mxu0 0.0
    %3005 = vmatpush1.msra.mxu0 0.0
    %3006 = vmatprep.subr.mxu0 0.0
    %3007 = vmatpush1.msra.mxu0 0.0
    %3008 = vmatprep.mubr.f32.mxu0 0.0
    %3009 = vmatmul.mubr.f32.gmra.mrb[0].mxu0 %v2942
    %v3010 = vpop.f32.mrb[0].mxu0
    %v3011 = vadd.f32 0.0, %v3010
    %v3012 = vpop.f32.mrb[0].mxu0
    %3013 = vdwg.mxu0
    %v3014 = vadd.f32 %v2941, %v3011
    %v3015 = vxor.u32 %v3014, 2147483648
    %v3016 = vmul.f32 %v3015, 1.442695
    %v3017 = vpow.pop %v3016
    %v3018 = vadd.f32 %v3017, 1.0
    %v3019 = vrcp.pop %v3018
    %v3020 = vmul.f32 1.0, %v3019
    %v3021 = vtanh.pop %v3014
    %v3022 = vmul.f32 %v3020, %v2929
    %3024 = vrot.lane.b32.xlu0 %v3021, 64
    %v3025 = vpop.permute.xlu0 %3024
    %v3027 = vmul.f32 %v3020, %v3025
    %3029 = vrot.lane.b32.xlu0 %v3027, 32
    %v3030 = vpop.permute.xlu0 %3029
    %v3032 = vadd.f32 %v3022, %v3030
    %v3033 = vtanh.pop %v3032
    %3035 = vrot.lane.b32.xlu0 %v3033, 64
    %v3036 = vpop.permute.xlu0 %3035
    %v3038 = vmul.f32 %v3020, %v3036
    %3040 = vrot.lane.b32.xlu0 %v3038, 32
    %v3041 = vpop.permute.xlu0 %3040
    %3043 = vst.msk [vmem:[%s10 + $0x38] sm:$0xff] %vm241, %v3041
    %s3044 = scalar_lea.vmem [#allocation10], 16
    %3045 = vst.msk [vmem:[%s3044] sm:$0xff] %vm241, %v3041
    %3047 = vrot.lane.b32.xlu0 %v3032, 96
    %v3048 = vpop.permute.xlu0 %3047
    %s3050 = scalar_lea.vmem [#allocation11], 16
    %3051 = vst.msk [vmem:[%s3050] sm:$0xff] %vm241, %v3048
    // Predicated region
    $region54: #{tpu_custom_call.1} parent=1 // pred_check
      _
    $region55: #{tpu_custom_call.1} parent=1 // pred_check_branch
      %3053 = sbr.rel (0) target = $region57
    $region56: #{tpu_custom_call.1} parent=1 // pred_region
      _
    $region57: #{tpu_custom_call.1} parent=1 // pred_fallthru
      _
    // Predicated region
    $region58: #{tpu_custom_call.1} parent=1 // pred_check
      _
    $region59: #{tpu_custom_call.1} parent=1 // pred_check_branch
      %3055 = sbr.rel (0) target = $region61
    $region60: #{tpu_custom_call.1} parent=1 // pred_region
      %s3057 = ssub.s32 384, 384
      %3058 = vsyncadd [#allocation6], %s3057
      %s3059 = sshll.u32 [#allocation10], 4
      %s3060 = int_to_ptr.vmem [resolvable:$true] %s3059
      %3065 = dma.vmem_to_hbm [thread:$0]  %s3060, 384, %s11, [#allocation6], 128, 128, 8
    $region61: #{tpu_custom_call.1} parent=1 // pred_fallthru
      _
    // Predicated region
    $region62: #{tpu_custom_call.1} parent=1 // pred_check
      _
    $region63: #{tpu_custom_call.1} parent=1 // pred_check_branch
      %3067 = sbr.rel (0) target = $region65
    $region64: #{tpu_custom_call.1} parent=1 // pred_region
      %s3069 = ssub.s32 384, 384
      %3070 = vsyncadd [#allocation12], %s3069
      %s3071 = sshll.u32 [#allocation11], 4
      %s3072 = int_to_ptr.vmem [resolvable:$true] %s3071
      %3077 = dma.vmem_to_hbm [thread:$0]  %s3072, 384, %s12, [#allocation12], 128, 128, 8
    $region65: #{tpu_custom_call.1} parent=1 // pred_fallthru
      _
    // Predicated region
    $region66: #{tpu_custom_call.1} parent=1 // pred_check
      _
    $region67: #{tpu_custom_call.1} parent=1 // pred_check_branch
      %3079 = sbr.rel (0) target = $region69
    $region68: #{tpu_custom_call.1} parent=1 // pred_region
      _
    $region69: #{tpu_custom_call.1} parent=1 // pred_fallthru
      _
    // Predicated region
    $region70: #{tpu_custom_call.1} parent=1 // pred_check
      _
    $region71: #{tpu_custom_call.1} parent=1 // pred_check_branch
      %3081 = sbr.rel (0) target = $region73
    $region72: #{tpu_custom_call.1} parent=1 // pred_region
      %3082 = dma.done [#allocation6], 384
    $region73: #{tpu_custom_call.1} parent=1 // pred_fallthru
      _
    // Predicated region
    $region74: #{tpu_custom_call.1} parent=1 // pred_check
      _
    $region75: #{tpu_custom_call.1} parent=1 // pred_check_branch
      %3084 = sbr.rel (0) target = $region77
    $region76: #{tpu_custom_call.1} parent=1 // pred_region
      %3085 = dma.done [#allocation12], 384
    $region77: #{tpu_custom_call.1} parent=1 // pred_fallthru
      _
    %3086 = vsyncpa [#allocation5], 1
    %3087 = vsyncpa [#allocation8], 1
    %3088 = vsyncpa [#allocation6], 1
    %3089 = vsyncpa [#allocation12], 1

</llo_original>
